<compile_context>
chip_gen: v5e
topology: v5e:2x2
jax: 0.10.0
libtpu: 0.0.40
codegen_flags: <defaults>
</compile_context>

<pallas_src>
import functools

import jax
import jax.numpy as jnp
from jax import lax
from jax.experimental import pallas as pl
from jax.experimental.pallas import tpu as pltpu


LANE = 128


def _round_up(x, m):
    return ((x + m - 1) // m) * m


def _safedrug_kernel(
    i1_ref, i2_ref,                                   # (TP, E) summed visit embeddings
    wih1_ref, whh1_ref, bih1_ref, bhh1_ref,           # diag GRU
    wih2_ref, whh2_ref, bih2_ref, bhh2_ref,           # proc GRU
    wq1_ref, wq2_ref, bq_ref,                         # query Linear(2E->E) split in two
    mpnn_embT_ref,                                    # (E, V2P)  MPNN_emb^T, lane padded
    wmo_ref, bmo_ref,                                 # MPNN_output Linear(V2->V2), padded
    ln_g_ref, ln_b_ref,                               # LayerNorm(V2) gamma/beta, padded
    wbt_ref, bbt_ref,                                 # bipartite_transform Linear(E->H), padded
    wbo_ref,                                          # (HP, V2P)  W_bo * ddi_mask_H^T, padded
    ddi_adj_ref,                                      # (V2P, V2P) ddi adjacency, padded
    result_ref,                                       # out: (1, V2P)
    bn_ref,                                           # out: (1, 1) batch_neg
    *,
    emb_dim,
    seq_len,
    v2,
    ln_eps,
):
    E = emb_dim

    # ---- GRU encoders -------------------------------------------------------
    # Input-side gate projections for ALL timesteps at once (full-sublane MXU
    # matmuls, hoisted out of the sequential recurrence).
    gi1_all = (jnp.dot(i1_ref[...], wih1_ref[...],
                       preferred_element_type=jnp.float32) + bih1_ref[...])    # (TP, 3E)
    gi2_all = (jnp.dot(i2_ref[...], wih2_ref[...],
                       preferred_element_type=jnp.float32) + bih2_ref[...])    # (TP, 3E)

    whh1, bhh1 = whh1_ref[...], bhh1_ref[...]
    whh2, bhh2 = whh2_ref[...], bhh2_ref[...]

    def gru_cell(gi_t, h, whh, bhh):
        # PyTorch nn.GRU cell, gate order (r, z, n).
        gh = jnp.dot(h, whh, preferred_element_type=jnp.float32) + bhh         # (1, 3E)
        r = jax.nn.sigmoid(gi_t[:, :E] + gh[:, :E])
        z = jax.nn.sigmoid(gi_t[:, E:2 * E] + gh[:, E:2 * E])
        n = jnp.tanh(gi_t[:, 2 * E:] + r * gh[:, 2 * E:])
        return (1.0 - z) * n + z * h

    h1 = jnp.zeros((1, E), jnp.float32)
    h2 = jnp.zeros((1, E), jnp.float32)
    # Unrolled (seq_len is a small static int); static slices of gi*_all are
    # free, and the two independent recurrences interleave on the MXU.
    for t in range(seq_len):
        h1 = gru_cell(gi1_all[t:t + 1, :], h1, whh1, bhh1)
        h2 = gru_cell(gi2_all[t:t + 1, :], h2, whh2, bhh2)

    # ---- query = Linear(2E->E)(ReLU([o1[-1], o2[-1]])), concat split --------
    q = (jnp.dot(jnp.maximum(h1, 0.0), wq1_ref[...], preferred_element_type=jnp.float32)
         + jnp.dot(jnp.maximum(h2, 0.0), wq2_ref[...], preferred_element_type=jnp.float32)
         + bq_ref[...])                                                         # (1, E)

    # ---- MPNN branch: sigmoid(q @ MPNN_emb^T), x + Linear(x), masked LN -----
    match = jax.nn.sigmoid(
        jnp.dot(q, mpnn_embT_ref[...], preferred_element_type=jnp.float32))    # (1, V2P)
    att_in = match + jnp.dot(match, wmo_ref[...],
                             preferred_element_type=jnp.float32) + bmo_ref[...]

    v2p = att_in.shape[-1]
    valid = (lax.broadcasted_iota(jnp.int32, (1, v2p), 1) < v2).astype(jnp.float32)
    mean = jnp.sum(att_in * valid, axis=-1, keepdims=True) * (1.0 / v2)
    cent = (att_in - mean) * valid
    var = jnp.sum(cent * cent, axis=-1, keepdims=True) * (1.0 / v2)
    att = cent * lax.rsqrt(var + ln_eps) * ln_g_ref[...] + ln_b_ref[...]        # (1, V2P)

    # ---- bipartite branch: MaskLinear(H, V2, bias=False), mask=ddi_mask_H^T -
    bip_h = jax.nn.sigmoid(
        jnp.dot(q, wbt_ref[...], preferred_element_type=jnp.float32) + bbt_ref[...])  # (1, HP)
    bip = jnp.dot(bip_h, wbo_ref[...], preferred_element_type=jnp.float32)     # (1, V2P)

    result = bip * att                                                          # padded cols stay 0
    result_ref[...] = result

    # batch_neg = 0.0005 * sum_ij sig(result)_i * ddi_adj_ij * sig(result)_j
    neg = jax.nn.sigmoid(result)
    tmp = jnp.dot(neg, ddi_adj_ref[...], preferred_element_type=jnp.float32)    # (1, V2P)
    bn_ref[...] = 0.0005 * jnp.sum(tmp * neg, axis=-1, keepdims=True)


def safedrug_forward(params, diag_codes, diag_mask, proc_codes, proc_mask):
    """Eval-mode SafeDrugModel.forward for one patient. Returns (result (1, V2), batch_neg)."""
    emb0, emb1 = params["emb0"], params["emb1"]
    E = emb0.shape[1]
    V2 = params["mpnn_emb"].shape[0]
    H = params["ddi_mask_H"].shape[1]
    T = diag_codes.shape[0]

    V2P = _round_up(V2, LANE)
    HP = _round_up(H, LANE)
    TP = _round_up(T, 8)

    # glue: embedding lookup + per-visit masked sum (dropout = identity in eval)
    i1 = (emb0[diag_codes] * diag_mask[..., None]).sum(axis=1).astype(jnp.float32)   # (T, E)
    i2 = (emb1[proc_codes] * proc_mask[..., None]).sum(axis=1).astype(jnp.float32)
    i1 = jnp.pad(i1, ((0, TP - T), (0, 0)))
    i2 = jnp.pad(i2, ((0, TP - T), (0, 0)))

    def pad2(x, r, c):
        return jnp.pad(x, ((0, r - x.shape[0]), (0, c - x.shape[1])))

    mpnn_embT = pad2(params["mpnn_emb"].T, E, V2P)                 # (E, V2P)
    wmo = pad2(params["wmo"], V2P, V2P)
    bmo = pad2(params["bmo"], 1, V2P)
    ln_g = pad2(params["ln_g"], 1, V2P)
    ln_b = pad2(params["ln_b"], 1, V2P)
    wbt = pad2(params["wbt"], E, HP)
    bbt = pad2(params["bbt"], 1, HP)
    wbo_masked = pad2(params["wbo"] * params["ddi_mask_H"].T, HP, V2P)
    ddi_adj = pad2(params["ddi_adj"], V2P, V2P)

    inputs = (
        i1, i2,
        params["wih1"], params["whh1"], params["bih1"], params["bhh1"],
        params["wih2"], params["whh2"], params["bih2"], params["bhh2"],
        params["wq1"], params["wq2"], params["bq"],
        mpnn_embT, wmo, bmo, ln_g, ln_b,
        wbt, bbt, wbo_masked, ddi_adj,
    )

    kernel = functools.partial(
        _safedrug_kernel, emb_dim=E, seq_len=T, v2=V2, ln_eps=1e-5)

    vmem = pl.BlockSpec(memory_space=pltpu.MemorySpace.VMEM)
    result_pad, bn = pl.pallas_call(
        kernel,
        out_shape=(jax.ShapeDtypeStruct((1, V2P), jnp.float32),
                   jax.ShapeDtypeStruct((1, 1), jnp.float32)),
        in_specs=[vmem] * len(inputs),
        out_specs=(vmem, vmem),
        compiler_params=pltpu.CompilerParams(vmem_limit_bytes=32 * 1024 * 1024),
    )(*inputs)

    return result_pad[:, :V2], bn[0, 0]


def reference_forward(params, diag_codes, diag_mask, proc_codes, proc_mask):
    """Plain-JAX mirror of the eval-mode forward, for numerical validation."""
    E = params["emb0"].shape[1]
    i1 = (params["emb0"][diag_codes] * diag_mask[..., None]).sum(axis=1)
    i2 = (params["emb1"][proc_codes] * proc_mask[..., None]).sum(axis=1)

    def run_gru(x_seq, wih, whh, bih, bhh):
        def step(h, x):
            gi = x[None, :] @ wih + bih
            gh = h @ whh + bhh
            r = jax.nn.sigmoid(gi[:, :E] + gh[:, :E])
            z = jax.nn.sigmoid(gi[:, E:2 * E] + gh[:, E:2 * E])
            n = jnp.tanh(gi[:, 2 * E:] + r * gh[:, 2 * E:])
            return (1.0 - z) * n + z * h, None
        hT, _ = lax.scan(step, jnp.zeros((1, E), jnp.float32), x_seq)
        return hT

    h1 = run_gru(i1, params["wih1"], params["whh1"], params["bih1"], params["bhh1"])
    h2 = run_gru(i2, params["wih2"], params["whh2"], params["bih2"], params["bhh2"])

    q = (jnp.maximum(h1, 0.0) @ params["wq1"]
         + jnp.maximum(h2, 0.0) @ params["wq2"] + params["bq"])

    match = jax.nn.sigmoid(q @ params["mpnn_emb"].T)
    att_in = match + match @ params["wmo"] + params["bmo"]
    mean = att_in.mean(axis=-1, keepdims=True)
    var = ((att_in - mean) ** 2).mean(axis=-1, keepdims=True)
    att = (att_in - mean) / jnp.sqrt(var + 1e-5) * params["ln_g"] + params["ln_b"]

    bip_h = jax.nn.sigmoid(q @ params["wbt"] + params["bbt"])
    bip = bip_h @ (params["wbo"] * params["ddi_mask_H"].T)

    result = bip * att
    neg = jax.nn.sigmoid(result)
    batch_neg = 0.0005 * jnp.sum((neg.T * neg) * params["ddi_adj"])
    return result, batch_neg


def mpnn_molecular_embeddings(key, n_fingerprints, dim, layer_hidden, n_mols, atoms_per_mol):
    """__init__-time MolecularGraphNeuralNetwork.forward (runs once, plain JAX)."""
    ks = jax.random.split(key, 2 + 2 * layer_hidden)
    embed = 0.1 * jax.random.normal(ks[0], (n_fingerprints, dim), dtype=jnp.float32)
    total = n_mols * atoms_per_mol
    fingerprints = jax.random.randint(ks[1], (total,), 0, n_fingerprints, dtype=jnp.int32)
    # block-diagonal symmetric adjacency (the torch `pad` of per-molecule adjacencies)
    adj = jnp.zeros((total, total), jnp.float32)
    for m in range(n_mols):
        kb = jax.random.fold_in(ks[1], m)
        blk = (jax.random.uniform(kb, (atoms_per_mol, atoms_per_mol)) > 0.5).astype(jnp.float32)
        blk = jnp.maximum(blk, blk.T)
        s = m * atoms_per_mol
        adj = adj.at[s:s + atoms_per_mol, s:s + atoms_per_mol].set(blk)
    vecs = embed[fingerprints]
    for l in range(layer_hidden):
        w = 0.1 * jax.random.normal(ks[2 + 2 * l], (dim, dim), dtype=jnp.float32)
        b = 0.1 * jax.random.normal(ks[3 + 2 * l], (1, dim), dtype=jnp.float32)
        hs = jax.nn.relu(vecs @ w + b)
        vecs = hs + adj @ hs
    mol_vecs = vecs.reshape(n_mols, atoms_per_mol, dim).sum(axis=1)
    # average_projection == identity in this demo (one molecule per drug)
    return mol_vecs


def init_params(key, vocab_size, emb_dim, H, ddi_adj, ddi_mask_H, mpnn_emb):
    E = emb_dim
    V2 = vocab_size[2]
    ks = jax.random.split(key, 20)

    def init(k, shape, scale=0.1):
        return (scale * jax.random.normal(k, shape)).astype(jnp.float32)

    # all linear weights stored pre-transposed as (in, out); GRU gate order (r, z, n)
    return {
        "emb0": init(ks[0], (vocab_size[0], E)),
        "emb1": init(ks[1], (vocab_size[1], E)),
        "wih1": init(ks[2], (E, 3 * E)), "whh1": init(ks[3], (E, 3 * E)),
        "bih1": init(ks[4], (1, 3 * E)), "bhh1": init(ks[5], (1, 3 * E)),
        "wih2": init(ks[6], (E, 3 * E)), "whh2": init(ks[7], (E, 3 * E)),
        "bih2": init(ks[8], (1, 3 * E)), "bhh2": init(ks[9], (1, 3 * E)),
        "wq1": init(ks[10], (E, E)), "wq2": init(ks[11], (E, E)), "bq": init(ks[12], (1, E)),
        "mpnn_emb": mpnn_emb.astype(jnp.float32),      # (V2, E), __init__-time constant
        "wmo": init(ks[13], (V2, V2)), "bmo": init(ks[14], (1, V2)),
        "ln_g": 1.0 + init(ks[15], (1, V2)), "ln_b": init(ks[16], (1, V2)),
        "wbt": init(ks[17], (E, H)), "bbt": init(ks[18], (1, H)),
        "wbo": init(ks[19], (H, V2)),
        "ddi_adj": ddi_adj.astype(jnp.float32),
        "ddi_mask_H": ddi_mask_H.astype(jnp.float32),
    }


if __name__ == "__main__":
    vocab_size = (12, 9, 10)     # (diag, proc, med) vocab sizes
    emb_dim = 128
    T, Dmax, Pmax = 6, 5, 4      # admissions per patient, max diag / proc codes per visit
    H = 20                       # ddi_mask_H.shape[1] (substructure dim)
    V2 = vocab_size[2]

    key = jax.random.PRNGKey(0)
    k_mpnn, k_par, k_adj, k_msk, kd, kp, kdl, kpl = jax.random.split(key, 8)

    # __init__-time constants of SafeDrugModel
    mpnn_emb = mpnn_molecular_embeddings(k_mpnn, n_fingerprints=17, dim=emb_dim,
                                         layer_hidden=2, n_mols=V2, atoms_per_mol=4)
    adj_up = (jax.random.uniform(k_adj, (V2, V2)) > 0.7).astype(jnp.float32)
    ddi_adj = jnp.maximum(adj_up, adj_up.T) * (1.0 - jnp.eye(V2, dtype=jnp.float32))
    ddi_mask_H = (jax.random.uniform(k_msk, (V2, H)) > 0.5).astype(jnp.float32)

    params = init_params(k_par, vocab_size, emb_dim, H, ddi_adj, ddi_mask_H, mpnn_emb)

    # one patient: T admissions, ragged code lists as padded indices + validity masks
    diag_codes = jax.random.randint(kd, (T, Dmax), 0, vocab_size[0], dtype=jnp.int32)
    proc_codes = jax.random.randint(kp, (T, Pmax), 0, vocab_size[1], dtype=jnp.int32)
    d_len = jax.random.randint(kdl, (T, 1), 1, Dmax + 1)
    p_len = jax.random.randint(kpl, (T, 1), 1, Pmax + 1)
    diag_mask = (jnp.arange(Dmax)[None, :] < d_len).astype(jnp.float32)
    proc_mask = (jnp.arange(Pmax)[None, :] < p_len).astype(jnp.float32)

    result, batch_neg = safedrug_forward(params, diag_codes, diag_mask, proc_codes, proc_mask)
    result, batch_neg = jax.block_until_ready((result, batch_neg))

    ref_result, ref_bn = reference_forward(params, diag_codes, diag_mask, proc_codes, proc_mask)
    assert result.shape == (1, V2), result.shape
    ok = (jnp.allclose(result, ref_result, atol=2e-3, rtol=2e-3)
          and jnp.allclose(batch_neg, ref_bn, atol=2e-3, rtol=2e-3))
    if not ok:
        raise AssertionError("Pallas kernel does not match JAX reference")

    print("KERNEL_OK")
</pallas_src>

<mosaic_0001>
module attributes {stable_mosaic.version = 11 : i64} {
  func.func @_safedrug_kernel(%arg0: memref<8x128xf32, #tpu.memory_space<vmem>>, %arg1: memref<8x128xf32, #tpu.memory_space<vmem>>, %arg2: memref<128x384xf32, #tpu.memory_space<vmem>>, %arg3: memref<128x384xf32, #tpu.memory_space<vmem>>, %arg4: memref<1x384xf32, #tpu.memory_space<vmem>>, %arg5: memref<1x384xf32, #tpu.memory_space<vmem>>, %arg6: memref<128x384xf32, #tpu.memory_space<vmem>>, %arg7: memref<128x384xf32, #tpu.memory_space<vmem>>, %arg8: memref<1x384xf32, #tpu.memory_space<vmem>>, %arg9: memref<1x384xf32, #tpu.memory_space<vmem>>, %arg10: memref<128x128xf32, #tpu.memory_space<vmem>>, %arg11: memref<128x128xf32, #tpu.memory_space<vmem>>, %arg12: memref<1x128xf32, #tpu.memory_space<vmem>>, %arg13: memref<128x128xf32, #tpu.memory_space<vmem>>, %arg14: memref<128x128xf32, #tpu.memory_space<vmem>>, %arg15: memref<1x128xf32, #tpu.memory_space<vmem>>, %arg16: memref<1x128xf32, #tpu.memory_space<vmem>>, %arg17: memref<1x128xf32, #tpu.memory_space<vmem>>, %arg18: memref<128x128xf32, #tpu.memory_space<vmem>>, %arg19: memref<1x128xf32, #tpu.memory_space<vmem>>, %arg20: memref<128x128xf32, #tpu.memory_space<vmem>>, %arg21: memref<128x128xf32, #tpu.memory_space<vmem>>, %arg22: memref<1x128xf32, #tpu.memory_space<vmem>>, %arg23: memref<1x1xf32, #tpu.memory_space<vmem>>) attributes {dimension_semantics = [], scalar_prefetch = 0 : i64, scratch_operands = 0 : i64, tpu.core_type = #tpu.core_type<tc>} {
    %c0 = arith.constant 0 : index
    %c0_0 = arith.constant 0 : index
    %0 = vector.load %arg0[%c0, %c0_0] : memref<8x128xf32, #tpu.memory_space<vmem>>, vector<8x128xf32>
    %c0_1 = arith.constant 0 : index
    %c0_2 = arith.constant 0 : index
    %1 = vector.load %arg2[%c0_1, %c0_2] : memref<128x384xf32, #tpu.memory_space<vmem>>, vector<128x384xf32>
    %cst = arith.constant dense<0.000000e+00> : vector<8x384xf32>
    %2 = tpu.matmul %0, %1, %cst {dimension_numbers = #tpu.dot_dimension_numbers<[1], [0], [0], [1], [0, 0, 1, 1], [], []>} : vector<8x128xf32>, vector<128x384xf32>, vector<8x384xf32> -> vector<8x384xf32>
    %c0_3 = arith.constant 0 : index
    %c0_4 = arith.constant 0 : index
    %3 = vector.load %arg4[%c0_3, %c0_4] : memref<1x384xf32, #tpu.memory_space<vmem>>, vector<1x384xf32>
    %4 = vector.broadcast %3 : vector<1x384xf32> to vector<8x384xf32>
    %5 = arith.addf %2, %4 : vector<8x384xf32>
    %c0_5 = arith.constant 0 : index
    %c0_6 = arith.constant 0 : index
    %6 = vector.load %arg1[%c0_5, %c0_6] : memref<8x128xf32, #tpu.memory_space<vmem>>, vector<8x128xf32>
    %c0_7 = arith.constant 0 : index
    %c0_8 = arith.constant 0 : index
    %7 = vector.load %arg6[%c0_7, %c0_8] : memref<128x384xf32, #tpu.memory_space<vmem>>, vector<128x384xf32>
    %cst_9 = arith.constant dense<0.000000e+00> : vector<8x384xf32>
    %8 = tpu.matmul %6, %7, %cst_9 {dimension_numbers = #tpu.dot_dimension_numbers<[1], [0], [0], [1], [0, 0, 1, 1], [], []>} : vector<8x128xf32>, vector<128x384xf32>, vector<8x384xf32> -> vector<8x384xf32>
    %c0_10 = arith.constant 0 : index
    %c0_11 = arith.constant 0 : index
    %9 = vector.load %arg8[%c0_10, %c0_11] : memref<1x384xf32, #tpu.memory_space<vmem>>, vector<1x384xf32>
    %10 = vector.broadcast %9 : vector<1x384xf32> to vector<8x384xf32>
    %11 = arith.addf %8, %10 : vector<8x384xf32>
    %c0_12 = arith.constant 0 : index
    %c0_13 = arith.constant 0 : index
    %12 = vector.load %arg3[%c0_12, %c0_13] : memref<128x384xf32, #tpu.memory_space<vmem>>, vector<128x384xf32>
    %c0_14 = arith.constant 0 : index
    %c0_15 = arith.constant 0 : index
    %13 = vector.load %arg5[%c0_14, %c0_15] : memref<1x384xf32, #tpu.memory_space<vmem>>, vector<1x384xf32>
    %c0_16 = arith.constant 0 : index
    %c0_17 = arith.constant 0 : index
    %14 = vector.load %arg7[%c0_16, %c0_17] : memref<128x384xf32, #tpu.memory_space<vmem>>, vector<128x384xf32>
    %c0_18 = arith.constant 0 : index
    %c0_19 = arith.constant 0 : index
    %15 = vector.load %arg9[%c0_18, %c0_19] : memref<1x384xf32, #tpu.memory_space<vmem>>, vector<1x384xf32>
    %cst_20 = arith.constant 0.000000e+00 : f32
    %16 = vector.broadcast %cst_20 : f32 to vector<1x128xf32>
    %cst_21 = arith.constant 0.000000e+00 : f32
    %17 = vector.broadcast %cst_21 : f32 to vector<1x128xf32>
    %18 = vector.extract_strided_slice %5 {offsets = [0, 0], sizes = [1, 384], strides = [1, 1]} : vector<8x384xf32> to vector<1x384xf32>
    %cst_22 = arith.constant dense<0.000000e+00> : vector<1x384xf32>
    %19 = tpu.matmul %16, %12, %cst_22 {dimension_numbers = #tpu.dot_dimension_numbers<[1], [0], [0], [1], [0, 0, 1, 1], [], []>} : vector<1x128xf32>, vector<128x384xf32>, vector<1x384xf32> -> vector<1x384xf32>
    %20 = arith.addf %19, %13 : vector<1x384xf32>
    %21 = vector.extract_strided_slice %18 {offsets = [0, 0], sizes = [1, 128], strides = [1, 1]} : vector<1x384xf32> to vector<1x128xf32>
    %22 = vector.extract_strided_slice %20 {offsets = [0, 0], sizes = [1, 128], strides = [1, 1]} : vector<1x384xf32> to vector<1x128xf32>
    %23 = arith.addf %21, %22 : vector<1x128xf32>
    %24 = arith.negf %23 : vector<1x128xf32>
    %25 = math.exp %24 : vector<1x128xf32>
    %cst_23 = arith.constant 1.000000e+00 : f32
    %26 = vector.broadcast %cst_23 : f32 to vector<1x128xf32>
    %27 = arith.addf %26, %25 : vector<1x128xf32>
    %28 = arith.divf %26, %27 : vector<1x128xf32>
    %29 = vector.extract_strided_slice %18 {offsets = [0, 128], sizes = [1, 128], strides = [1, 1]} : vector<1x384xf32> to vector<1x128xf32>
    %30 = vector.extract_strided_slice %20 {offsets = [0, 128], sizes = [1, 128], strides = [1, 1]} : vector<1x384xf32> to vector<1x128xf32>
    %31 = arith.addf %29, %30 : vector<1x128xf32>
    %32 = arith.negf %31 : vector<1x128xf32>
    %33 = math.exp %32 : vector<1x128xf32>
    %cst_24 = arith.constant 1.000000e+00 : f32
    %34 = vector.broadcast %cst_24 : f32 to vector<1x128xf32>
    %35 = arith.addf %34, %33 : vector<1x128xf32>
    %36 = arith.divf %34, %35 : vector<1x128xf32>
    %37 = vector.extract_strided_slice %18 {offsets = [0, 256], sizes = [1, 128], strides = [1, 1]} : vector<1x384xf32> to vector<1x128xf32>
    %38 = vector.extract_strided_slice %20 {offsets = [0, 256], sizes = [1, 128], strides = [1, 1]} : vector<1x384xf32> to vector<1x128xf32>
    %39 = arith.mulf %28, %38 : vector<1x128xf32>
    %40 = arith.addf %37, %39 : vector<1x128xf32>
    %41 = math.tanh %40 : vector<1x128xf32>
    %cst_25 = arith.constant 1.000000e+00 : f32
    %42 = vector.broadcast %cst_25 : f32 to vector<1x128xf32>
    %43 = arith.subf %42, %36 : vector<1x128xf32>
    %44 = arith.mulf %43, %41 : vector<1x128xf32>
    %45 = arith.mulf %36, %16 : vector<1x128xf32>
    %46 = arith.addf %44, %45 : vector<1x128xf32>
    %47 = vector.extract_strided_slice %11 {offsets = [0, 0], sizes = [1, 384], strides = [1, 1]} : vector<8x384xf32> to vector<1x384xf32>
    %cst_26 = arith.constant dense<0.000000e+00> : vector<1x384xf32>
    %48 = tpu.matmul %17, %14, %cst_26 {dimension_numbers = #tpu.dot_dimension_numbers<[1], [0], [0], [1], [0, 0, 1, 1], [], []>} : vector<1x128xf32>, vector<128x384xf32>, vector<1x384xf32> -> vector<1x384xf32>
    %49 = arith.addf %48, %15 : vector<1x384xf32>
    %50 = vector.extract_strided_slice %47 {offsets = [0, 0], sizes = [1, 128], strides = [1, 1]} : vector<1x384xf32> to vector<1x128xf32>
    %51 = vector.extract_strided_slice %49 {offsets = [0, 0], sizes = [1, 128], strides = [1, 1]} : vector<1x384xf32> to vector<1x128xf32>
    %52 = arith.addf %50, %51 : vector<1x128xf32>
    %53 = arith.negf %52 : vector<1x128xf32>
    %54 = math.exp %53 : vector<1x128xf32>
    %cst_27 = arith.constant 1.000000e+00 : f32
    %55 = vector.broadcast %cst_27 : f32 to vector<1x128xf32>
    %56 = arith.addf %55, %54 : vector<1x128xf32>
    %57 = arith.divf %55, %56 : vector<1x128xf32>
    %58 = vector.extract_strided_slice %47 {offsets = [0, 128], sizes = [1, 128], strides = [1, 1]} : vector<1x384xf32> to vector<1x128xf32>
    %59 = vector.extract_strided_slice %49 {offsets = [0, 128], sizes = [1, 128], strides = [1, 1]} : vector<1x384xf32> to vector<1x128xf32>
    %60 = arith.addf %58, %59 : vector<1x128xf32>
    %61 = arith.negf %60 : vector<1x128xf32>
    %62 = math.exp %61 : vector<1x128xf32>
    %cst_28 = arith.constant 1.000000e+00 : f32
    %63 = vector.broadcast %cst_28 : f32 to vector<1x128xf32>
    %64 = arith.addf %63, %62 : vector<1x128xf32>
    %65 = arith.divf %63, %64 : vector<1x128xf32>
    %66 = vector.extract_strided_slice %47 {offsets = [0, 256], sizes = [1, 128], strides = [1, 1]} : vector<1x384xf32> to vector<1x128xf32>
    %67 = vector.extract_strided_slice %49 {offsets = [0, 256], sizes = [1, 128], strides = [1, 1]} : vector<1x384xf32> to vector<1x128xf32>
    %68 = arith.mulf %57, %67 : vector<1x128xf32>
    %69 = arith.addf %66, %68 : vector<1x128xf32>
    %70 = math.tanh %69 : vector<1x128xf32>
    %cst_29 = arith.constant 1.000000e+00 : f32
    %71 = vector.broadcast %cst_29 : f32 to vector<1x128xf32>
    %72 = arith.subf %71, %65 : vector<1x128xf32>
    %73 = arith.mulf %72, %70 : vector<1x128xf32>
    %74 = arith.mulf %65, %17 : vector<1x128xf32>
    %75 = arith.addf %73, %74 : vector<1x128xf32>
    %76 = vector.extract_strided_slice %5 {offsets = [1, 0], sizes = [1, 384], strides = [1, 1]} : vector<8x384xf32> to vector<1x384xf32>
    %cst_30 = arith.constant dense<0.000000e+00> : vector<1x384xf32>
    %77 = tpu.matmul %46, %12, %cst_30 {dimension_numbers = #tpu.dot_dimension_numbers<[1], [0], [0], [1], [0, 0, 1, 1], [], []>} : vector<1x128xf32>, vector<128x384xf32>, vector<1x384xf32> -> vector<1x384xf32>
    %78 = arith.addf %77, %13 : vector<1x384xf32>
    %79 = vector.extract_strided_slice %76 {offsets = [0, 0], sizes = [1, 128], strides = [1, 1]} : vector<1x384xf32> to vector<1x128xf32>
    %80 = vector.extract_strided_slice %78 {offsets = [0, 0], sizes = [1, 128], strides = [1, 1]} : vector<1x384xf32> to vector<1x128xf32>
    %81 = arith.addf %79, %80 : vector<1x128xf32>
    %82 = arith.negf %81 : vector<1x128xf32>
    %83 = math.exp %82 : vector<1x128xf32>
    %cst_31 = arith.constant 1.000000e+00 : f32
    %84 = vector.broadcast %cst_31 : f32 to vector<1x128xf32>
    %85 = arith.addf %84, %83 : vector<1x128xf32>
    %86 = arith.divf %84, %85 : vector<1x128xf32>
    %87 = vector.extract_strided_slice %76 {offsets = [0, 128], sizes = [1, 128], strides = [1, 1]} : vector<1x384xf32> to vector<1x128xf32>
    %88 = vector.extract_strided_slice %78 {offsets = [0, 128], sizes = [1, 128], strides = [1, 1]} : vector<1x384xf32> to vector<1x128xf32>
    %89 = arith.addf %87, %88 : vector<1x128xf32>
    %90 = arith.negf %89 : vector<1x128xf32>
    %91 = math.exp %90 : vector<1x128xf32>
    %cst_32 = arith.constant 1.000000e+00 : f32
    %92 = vector.broadcast %cst_32 : f32 to vector<1x128xf32>
    %93 = arith.addf %92, %91 : vector<1x128xf32>
    %94 = arith.divf %92, %93 : vector<1x128xf32>
    %95 = vector.extract_strided_slice %76 {offsets = [0, 256], sizes = [1, 128], strides = [1, 1]} : vector<1x384xf32> to vector<1x128xf32>
    %96 = vector.extract_strided_slice %78 {offsets = [0, 256], sizes = [1, 128], strides = [1, 1]} : vector<1x384xf32> to vector<1x128xf32>
    %97 = arith.mulf %86, %96 : vector<1x128xf32>
    %98 = arith.addf %95, %97 : vector<1x128xf32>
    %99 = math.tanh %98 : vector<1x128xf32>
    %cst_33 = arith.constant 1.000000e+00 : f32
    %100 = vector.broadcast %cst_33 : f32 to vector<1x128xf32>
    %101 = arith.subf %100, %94 : vector<1x128xf32>
    %102 = arith.mulf %101, %99 : vector<1x128xf32>
    %103 = arith.mulf %94, %46 : vector<1x128xf32>
    %104 = arith.addf %102, %103 : vector<1x128xf32>
    %105 = vector.extract_strided_slice %11 {offsets = [1, 0], sizes = [1, 384], strides = [1, 1]} : vector<8x384xf32> to vector<1x384xf32>
    %cst_34 = arith.constant dense<0.000000e+00> : vector<1x384xf32>
    %106 = tpu.matmul %75, %14, %cst_34 {dimension_numbers = #tpu.dot_dimension_numbers<[1], [0], [0], [1], [0, 0, 1, 1], [], []>} : vector<1x128xf32>, vector<128x384xf32>, vector<1x384xf32> -> vector<1x384xf32>
    %107 = arith.addf %106, %15 : vector<1x384xf32>
    %108 = vector.extract_strided_slice %105 {offsets = [0, 0], sizes = [1, 128], strides = [1, 1]} : vector<1x384xf32> to vector<1x128xf32>
    %109 = vector.extract_strided_slice %107 {offsets = [0, 0], sizes = [1, 128], strides = [1, 1]} : vector<1x384xf32> to vector<1x128xf32>
    %110 = arith.addf %108, %109 : vector<1x128xf32>
    %111 = arith.negf %110 : vector<1x128xf32>
    %112 = math.exp %111 : vector<1x128xf32>
    %cst_35 = arith.constant 1.000000e+00 : f32
    %113 = vector.broadcast %cst_35 : f32 to vector<1x128xf32>
    %114 = arith.addf %113, %112 : vector<1x128xf32>
    %115 = arith.divf %113, %114 : vector<1x128xf32>
    %116 = vector.extract_strided_slice %105 {offsets = [0, 128], sizes = [1, 128], strides = [1, 1]} : vector<1x384xf32> to vector<1x128xf32>
    %117 = vector.extract_strided_slice %107 {offsets = [0, 128], sizes = [1, 128], strides = [1, 1]} : vector<1x384xf32> to vector<1x128xf32>
    %118 = arith.addf %116, %117 : vector<1x128xf32>
    %119 = arith.negf %118 : vector<1x128xf32>
    %120 = math.exp %119 : vector<1x128xf32>
    %cst_36 = arith.constant 1.000000e+00 : f32
    %121 = vector.broadcast %cst_36 : f32 to vector<1x128xf32>
    %122 = arith.addf %121, %120 : vector<1x128xf32>
    %123 = arith.divf %121, %122 : vector<1x128xf32>
    %124 = vector.extract_strided_slice %105 {offsets = [0, 256], sizes = [1, 128], strides = [1, 1]} : vector<1x384xf32> to vector<1x128xf32>
    %125 = vector.extract_strided_slice %107 {offsets = [0, 256], sizes = [1, 128], strides = [1, 1]} : vector<1x384xf32> to vector<1x128xf32>
    %126 = arith.mulf %115, %125 : vector<1x128xf32>
    %127 = arith.addf %124, %126 : vector<1x128xf32>
    %128 = math.tanh %127 : vector<1x128xf32>
    %cst_37 = arith.constant 1.000000e+00 : f32
    %129 = vector.broadcast %cst_37 : f32 to vector<1x128xf32>
    %130 = arith.subf %129, %123 : vector<1x128xf32>
    %131 = arith.mulf %130, %128 : vector<1x128xf32>
    %132 = arith.mulf %123, %75 : vector<1x128xf32>
    %133 = arith.addf %131, %132 : vector<1x128xf32>
    %134 = vector.extract_strided_slice %5 {offsets = [2, 0], sizes = [1, 384], strides = [1, 1]} : vector<8x384xf32> to vector<1x384xf32>
    %cst_38 = arith.constant dense<0.000000e+00> : vector<1x384xf32>
    %135 = tpu.matmul %104, %12, %cst_38 {dimension_numbers = #tpu.dot_dimension_numbers<[1], [0], [0], [1], [0, 0, 1, 1], [], []>} : vector<1x128xf32>, vector<128x384xf32>, vector<1x384xf32> -> vector<1x384xf32>
    %136 = arith.addf %135, %13 : vector<1x384xf32>
    %137 = vector.extract_strided_slice %134 {offsets = [0, 0], sizes = [1, 128], strides = [1, 1]} : vector<1x384xf32> to vector<1x128xf32>
    %138 = vector.extract_strided_slice %136 {offsets = [0, 0], sizes = [1, 128], strides = [1, 1]} : vector<1x384xf32> to vector<1x128xf32>
    %139 = arith.addf %137, %138 : vector<1x128xf32>
    %140 = arith.negf %139 : vector<1x128xf32>
    %141 = math.exp %140 : vector<1x128xf32>
    %cst_39 = arith.constant 1.000000e+00 : f32
    %142 = vector.broadcast %cst_39 : f32 to vector<1x128xf32>
    %143 = arith.addf %142, %141 : vector<1x128xf32>
    %144 = arith.divf %142, %143 : vector<1x128xf32>
    %145 = vector.extract_strided_slice %134 {offsets = [0, 128], sizes = [1, 128], strides = [1, 1]} : vector<1x384xf32> to vector<1x128xf32>
    %146 = vector.extract_strided_slice %136 {offsets = [0, 128], sizes = [1, 128], strides = [1, 1]} : vector<1x384xf32> to vector<1x128xf32>
    %147 = arith.addf %145, %146 : vector<1x128xf32>
    %148 = arith.negf %147 : vector<1x128xf32>
    %149 = math.exp %148 : vector<1x128xf32>
    %cst_40 = arith.constant 1.000000e+00 : f32
    %150 = vector.broadcast %cst_40 : f32 to vector<1x128xf32>
    %151 = arith.addf %150, %149 : vector<1x128xf32>
    %152 = arith.divf %150, %151 : vector<1x128xf32>
    %153 = vector.extract_strided_slice %134 {offsets = [0, 256], sizes = [1, 128], strides = [1, 1]} : vector<1x384xf32> to vector<1x128xf32>
    %154 = vector.extract_strided_slice %136 {offsets = [0, 256], sizes = [1, 128], strides = [1, 1]} : vector<1x384xf32> to vector<1x128xf32>
    %155 = arith.mulf %144, %154 : vector<1x128xf32>
    %156 = arith.addf %153, %155 : vector<1x128xf32>
    %157 = math.tanh %156 : vector<1x128xf32>
    %cst_41 = arith.constant 1.000000e+00 : f32
    %158 = vector.broadcast %cst_41 : f32 to vector<1x128xf32>
    %159 = arith.subf %158, %152 : vector<1x128xf32>
    %160 = arith.mulf %159, %157 : vector<1x128xf32>
    %161 = arith.mulf %152, %104 : vector<1x128xf32>
    %162 = arith.addf %160, %161 : vector<1x128xf32>
    %163 = vector.extract_strided_slice %11 {offsets = [2, 0], sizes = [1, 384], strides = [1, 1]} : vector<8x384xf32> to vector<1x384xf32>
    %cst_42 = arith.constant dense<0.000000e+00> : vector<1x384xf32>
    %164 = tpu.matmul %133, %14, %cst_42 {dimension_numbers = #tpu.dot_dimension_numbers<[1], [0], [0], [1], [0, 0, 1, 1], [], []>} : vector<1x128xf32>, vector<128x384xf32>, vector<1x384xf32> -> vector<1x384xf32>
    %165 = arith.addf %164, %15 : vector<1x384xf32>
    %166 = vector.extract_strided_slice %163 {offsets = [0, 0], sizes = [1, 128], strides = [1, 1]} : vector<1x384xf32> to vector<1x128xf32>
    %167 = vector.extract_strided_slice %165 {offsets = [0, 0], sizes = [1, 128], strides = [1, 1]} : vector<1x384xf32> to vector<1x128xf32>
    %168 = arith.addf %166, %167 : vector<1x128xf32>
    %169 = arith.negf %168 : vector<1x128xf32>
    %170 = math.exp %169 : vector<1x128xf32>
    %cst_43 = arith.constant 1.000000e+00 : f32
    %171 = vector.broadcast %cst_43 : f32 to vector<1x128xf32>
    %172 = arith.addf %171, %170 : vector<1x128xf32>
    %173 = arith.divf %171, %172 : vector<1x128xf32>
    %174 = vector.extract_strided_slice %163 {offsets = [0, 128], sizes = [1, 128], strides = [1, 1]} : vector<1x384xf32> to vector<1x128xf32>
    %175 = vector.extract_strided_slice %165 {offsets = [0, 128], sizes = [1, 128], strides = [1, 1]} : vector<1x384xf32> to vector<1x128xf32>
    %176 = arith.addf %174, %175 : vector<1x128xf32>
    %177 = arith.negf %176 : vector<1x128xf32>
    %178 = math.exp %177 : vector<1x128xf32>
    %cst_44 = arith.constant 1.000000e+00 : f32
    %179 = vector.broadcast %cst_44 : f32 to vector<1x128xf32>
    %180 = arith.addf %179, %178 : vector<1x128xf32>
    %181 = arith.divf %179, %180 : vector<1x128xf32>
    %182 = vector.extract_strided_slice %163 {offsets = [0, 256], sizes = [1, 128], strides = [1, 1]} : vector<1x384xf32> to vector<1x128xf32>
    %183 = vector.extract_strided_slice %165 {offsets = [0, 256], sizes = [1, 128], strides = [1, 1]} : vector<1x384xf32> to vector<1x128xf32>
    %184 = arith.mulf %173, %183 : vector<1x128xf32>
    %185 = arith.addf %182, %184 : vector<1x128xf32>
    %186 = math.tanh %185 : vector<1x128xf32>
    %cst_45 = arith.constant 1.000000e+00 : f32
    %187 = vector.broadcast %cst_45 : f32 to vector<1x128xf32>
    %188 = arith.subf %187, %181 : vector<1x128xf32>
    %189 = arith.mulf %188, %186 : vector<1x128xf32>
    %190 = arith.mulf %181, %133 : vector<1x128xf32>
    %191 = arith.addf %189, %190 : vector<1x128xf32>
    %192 = vector.extract_strided_slice %5 {offsets = [3, 0], sizes = [1, 384], strides = [1, 1]} : vector<8x384xf32> to vector<1x384xf32>
    %cst_46 = arith.constant dense<0.000000e+00> : vector<1x384xf32>
    %193 = tpu.matmul %162, %12, %cst_46 {dimension_numbers = #tpu.dot_dimension_numbers<[1], [0], [0], [1], [0, 0, 1, 1], [], []>} : vector<1x128xf32>, vector<128x384xf32>, vector<1x384xf32> -> vector<1x384xf32>
    %194 = arith.addf %193, %13 : vector<1x384xf32>
    %195 = vector.extract_strided_slice %192 {offsets = [0, 0], sizes = [1, 128], strides = [1, 1]} : vector<1x384xf32> to vector<1x128xf32>
    %196 = vector.extract_strided_slice %194 {offsets = [0, 0], sizes = [1, 128], strides = [1, 1]} : vector<1x384xf32> to vector<1x128xf32>
    %197 = arith.addf %195, %196 : vector<1x128xf32>
    %198 = arith.negf %197 : vector<1x128xf32>
    %199 = math.exp %198 : vector<1x128xf32>
    %cst_47 = arith.constant 1.000000e+00 : f32
    %200 = vector.broadcast %cst_47 : f32 to vector<1x128xf32>
    %201 = arith.addf %200, %199 : vector<1x128xf32>
    %202 = arith.divf %200, %201 : vector<1x128xf32>
    %203 = vector.extract_strided_slice %192 {offsets = [0, 128], sizes = [1, 128], strides = [1, 1]} : vector<1x384xf32> to vector<1x128xf32>
    %204 = vector.extract_strided_slice %194 {offsets = [0, 128], sizes = [1, 128], strides = [1, 1]} : vector<1x384xf32> to vector<1x128xf32>
    %205 = arith.addf %203, %204 : vector<1x128xf32>
    %206 = arith.negf %205 : vector<1x128xf32>
    %207 = math.exp %206 : vector<1x128xf32>
    %cst_48 = arith.constant 1.000000e+00 : f32
    %208 = vector.broadcast %cst_48 : f32 to vector<1x128xf32>
    %209 = arith.addf %208, %207 : vector<1x128xf32>
    %210 = arith.divf %208, %209 : vector<1x128xf32>
    %211 = vector.extract_strided_slice %192 {offsets = [0, 256], sizes = [1, 128], strides = [1, 1]} : vector<1x384xf32> to vector<1x128xf32>
    %212 = vector.extract_strided_slice %194 {offsets = [0, 256], sizes = [1, 128], strides = [1, 1]} : vector<1x384xf32> to vector<1x128xf32>
    %213 = arith.mulf %202, %212 : vector<1x128xf32>
    %214 = arith.addf %211, %213 : vector<1x128xf32>
    %215 = math.tanh %214 : vector<1x128xf32>
    %cst_49 = arith.constant 1.000000e+00 : f32
    %216 = vector.broadcast %cst_49 : f32 to vector<1x128xf32>
    %217 = arith.subf %216, %210 : vector<1x128xf32>
    %218 = arith.mulf %217, %215 : vector<1x128xf32>
    %219 = arith.mulf %210, %162 : vector<1x128xf32>
    %220 = arith.addf %218, %219 : vector<1x128xf32>
    %221 = vector.extract_strided_slice %11 {offsets = [3, 0], sizes = [1, 384], strides = [1, 1]} : vector<8x384xf32> to vector<1x384xf32>
    %cst_50 = arith.constant dense<0.000000e+00> : vector<1x384xf32>
    %222 = tpu.matmul %191, %14, %cst_50 {dimension_numbers = #tpu.dot_dimension_numbers<[1], [0], [0], [1], [0, 0, 1, 1], [], []>} : vector<1x128xf32>, vector<128x384xf32>, vector<1x384xf32> -> vector<1x384xf32>
    %223 = arith.addf %222, %15 : vector<1x384xf32>
    %224 = vector.extract_strided_slice %221 {offsets = [0, 0], sizes = [1, 128], strides = [1, 1]} : vector<1x384xf32> to vector<1x128xf32>
    %225 = vector.extract_strided_slice %223 {offsets = [0, 0], sizes = [1, 128], strides = [1, 1]} : vector<1x384xf32> to vector<1x128xf32>
    %226 = arith.addf %224, %225 : vector<1x128xf32>
    %227 = arith.negf %226 : vector<1x128xf32>
    %228 = math.exp %227 : vector<1x128xf32>
    %cst_51 = arith.constant 1.000000e+00 : f32
    %229 = vector.broadcast %cst_51 : f32 to vector<1x128xf32>
    %230 = arith.addf %229, %228 : vector<1x128xf32>
    %231 = arith.divf %229, %230 : vector<1x128xf32>
    %232 = vector.extract_strided_slice %221 {offsets = [0, 128], sizes = [1, 128], strides = [1, 1]} : vector<1x384xf32> to vector<1x128xf32>
    %233 = vector.extract_strided_slice %223 {offsets = [0, 128], sizes = [1, 128], strides = [1, 1]} : vector<1x384xf32> to vector<1x128xf32>
    %234 = arith.addf %232, %233 : vector<1x128xf32>
    %235 = arith.negf %234 : vector<1x128xf32>
    %236 = math.exp %235 : vector<1x128xf32>
    %cst_52 = arith.constant 1.000000e+00 : f32
    %237 = vector.broadcast %cst_52 : f32 to vector<1x128xf32>
    %238 = arith.addf %237, %236 : vector<1x128xf32>
    %239 = arith.divf %237, %238 : vector<1x128xf32>
    %240 = vector.extract_strided_slice %221 {offsets = [0, 256], sizes = [1, 128], strides = [1, 1]} : vector<1x384xf32> to vector<1x128xf32>
    %241 = vector.extract_strided_slice %223 {offsets = [0, 256], sizes = [1, 128], strides = [1, 1]} : vector<1x384xf32> to vector<1x128xf32>
    %242 = arith.mulf %231, %241 : vector<1x128xf32>
    %243 = arith.addf %240, %242 : vector<1x128xf32>
    %244 = math.tanh %243 : vector<1x128xf32>
    %cst_53 = arith.constant 1.000000e+00 : f32
    %245 = vector.broadcast %cst_53 : f32 to vector<1x128xf32>
    %246 = arith.subf %245, %239 : vector<1x128xf32>
    %247 = arith.mulf %246, %244 : vector<1x128xf32>
    %248 = arith.mulf %239, %191 : vector<1x128xf32>
    %249 = arith.addf %247, %248 : vector<1x128xf32>
    %250 = vector.extract_strided_slice %5 {offsets = [4, 0], sizes = [1, 384], strides = [1, 1]} : vector<8x384xf32> to vector<1x384xf32>
    %cst_54 = arith.constant dense<0.000000e+00> : vector<1x384xf32>
    %251 = tpu.matmul %220, %12, %cst_54 {dimension_numbers = #tpu.dot_dimension_numbers<[1], [0], [0], [1], [0, 0, 1, 1], [], []>} : vector<1x128xf32>, vector<128x384xf32>, vector<1x384xf32> -> vector<1x384xf32>
    %252 = arith.addf %251, %13 : vector<1x384xf32>
    %253 = vector.extract_strided_slice %250 {offsets = [0, 0], sizes = [1, 128], strides = [1, 1]} : vector<1x384xf32> to vector<1x128xf32>
    %254 = vector.extract_strided_slice %252 {offsets = [0, 0], sizes = [1, 128], strides = [1, 1]} : vector<1x384xf32> to vector<1x128xf32>
    %255 = arith.addf %253, %254 : vector<1x128xf32>
    %256 = arith.negf %255 : vector<1x128xf32>
    %257 = math.exp %256 : vector<1x128xf32>
    %cst_55 = arith.constant 1.000000e+00 : f32
    %258 = vector.broadcast %cst_55 : f32 to vector<1x128xf32>
    %259 = arith.addf %258, %257 : vector<1x128xf32>
    %260 = arith.divf %258, %259 : vector<1x128xf32>
    %261 = vector.extract_strided_slice %250 {offsets = [0, 128], sizes = [1, 128], strides = [1, 1]} : vector<1x384xf32> to vector<1x128xf32>
    %262 = vector.extract_strided_slice %252 {offsets = [0, 128], sizes = [1, 128], strides = [1, 1]} : vector<1x384xf32> to vector<1x128xf32>
    %263 = arith.addf %261, %262 : vector<1x128xf32>
    %264 = arith.negf %263 : vector<1x128xf32>
    %265 = math.exp %264 : vector<1x128xf32>
    %cst_56 = arith.constant 1.000000e+00 : f32
    %266 = vector.broadcast %cst_56 : f32 to vector<1x128xf32>
    %267 = arith.addf %266, %265 : vector<1x128xf32>
    %268 = arith.divf %266, %267 : vector<1x128xf32>
    %269 = vector.extract_strided_slice %250 {offsets = [0, 256], sizes = [1, 128], strides = [1, 1]} : vector<1x384xf32> to vector<1x128xf32>
    %270 = vector.extract_strided_slice %252 {offsets = [0, 256], sizes = [1, 128], strides = [1, 1]} : vector<1x384xf32> to vector<1x128xf32>
    %271 = arith.mulf %260, %270 : vector<1x128xf32>
    %272 = arith.addf %269, %271 : vector<1x128xf32>
    %273 = math.tanh %272 : vector<1x128xf32>
    %cst_57 = arith.constant 1.000000e+00 : f32
    %274 = vector.broadcast %cst_57 : f32 to vector<1x128xf32>
    %275 = arith.subf %274, %268 : vector<1x128xf32>
    %276 = arith.mulf %275, %273 : vector<1x128xf32>
    %277 = arith.mulf %268, %220 : vector<1x128xf32>
    %278 = arith.addf %276, %277 : vector<1x128xf32>
    %279 = vector.extract_strided_slice %11 {offsets = [4, 0], sizes = [1, 384], strides = [1, 1]} : vector<8x384xf32> to vector<1x384xf32>
    %cst_58 = arith.constant dense<0.000000e+00> : vector<1x384xf32>
    %280 = tpu.matmul %249, %14, %cst_58 {dimension_numbers = #tpu.dot_dimension_numbers<[1], [0], [0], [1], [0, 0, 1, 1], [], []>} : vector<1x128xf32>, vector<128x384xf32>, vector<1x384xf32> -> vector<1x384xf32>
    %281 = arith.addf %280, %15 : vector<1x384xf32>
    %282 = vector.extract_strided_slice %279 {offsets = [0, 0], sizes = [1, 128], strides = [1, 1]} : vector<1x384xf32> to vector<1x128xf32>
    %283 = vector.extract_strided_slice %281 {offsets = [0, 0], sizes = [1, 128], strides = [1, 1]} : vector<1x384xf32> to vector<1x128xf32>
    %284 = arith.addf %282, %283 : vector<1x128xf32>
    %285 = arith.negf %284 : vector<1x128xf32>
    %286 = math.exp %285 : vector<1x128xf32>
    %cst_59 = arith.constant 1.000000e+00 : f32
    %287 = vector.broadcast %cst_59 : f32 to vector<1x128xf32>
    %288 = arith.addf %287, %286 : vector<1x128xf32>
    %289 = arith.divf %287, %288 : vector<1x128xf32>
    %290 = vector.extract_strided_slice %279 {offsets = [0, 128], sizes = [1, 128], strides = [1, 1]} : vector<1x384xf32> to vector<1x128xf32>
    %291 = vector.extract_strided_slice %281 {offsets = [0, 128], sizes = [1, 128], strides = [1, 1]} : vector<1x384xf32> to vector<1x128xf32>
    %292 = arith.addf %290, %291 : vector<1x128xf32>
    %293 = arith.negf %292 : vector<1x128xf32>
    %294 = math.exp %293 : vector<1x128xf32>
    %cst_60 = arith.constant 1.000000e+00 : f32
    %295 = vector.broadcast %cst_60 : f32 to vector<1x128xf32>
    %296 = arith.addf %295, %294 : vector<1x128xf32>
    %297 = arith.divf %295, %296 : vector<1x128xf32>
    %298 = vector.extract_strided_slice %279 {offsets = [0, 256], sizes = [1, 128], strides = [1, 1]} : vector<1x384xf32> to vector<1x128xf32>
    %299 = vector.extract_strided_slice %281 {offsets = [0, 256], sizes = [1, 128], strides = [1, 1]} : vector<1x384xf32> to vector<1x128xf32>
    %300 = arith.mulf %289, %299 : vector<1x128xf32>
    %301 = arith.addf %298, %300 : vector<1x128xf32>
    %302 = math.tanh %301 : vector<1x128xf32>
    %cst_61 = arith.constant 1.000000e+00 : f32
    %303 = vector.broadcast %cst_61 : f32 to vector<1x128xf32>
    %304 = arith.subf %303, %297 : vector<1x128xf32>
    %305 = arith.mulf %304, %302 : vector<1x128xf32>
    %306 = arith.mulf %297, %249 : vector<1x128xf32>
    %307 = arith.addf %305, %306 : vector<1x128xf32>
    %308 = vector.extract_strided_slice %5 {offsets = [5, 0], sizes = [1, 384], strides = [1, 1]} : vector<8x384xf32> to vector<1x384xf32>
    %cst_62 = arith.constant dense<0.000000e+00> : vector<1x384xf32>
    %309 = tpu.matmul %278, %12, %cst_62 {dimension_numbers = #tpu.dot_dimension_numbers<[1], [0], [0], [1], [0, 0, 1, 1], [], []>} : vector<1x128xf32>, vector<128x384xf32>, vector<1x384xf32> -> vector<1x384xf32>
    %310 = arith.addf %309, %13 : vector<1x384xf32>
    %311 = vector.extract_strided_slice %308 {offsets = [0, 0], sizes = [1, 128], strides = [1, 1]} : vector<1x384xf32> to vector<1x128xf32>
    %312 = vector.extract_strided_slice %310 {offsets = [0, 0], sizes = [1, 128], strides = [1, 1]} : vector<1x384xf32> to vector<1x128xf32>
    %313 = arith.addf %311, %312 : vector<1x128xf32>
    %314 = arith.negf %313 : vector<1x128xf32>
    %315 = math.exp %314 : vector<1x128xf32>
    %cst_63 = arith.constant 1.000000e+00 : f32
    %316 = vector.broadcast %cst_63 : f32 to vector<1x128xf32>
    %317 = arith.addf %316, %315 : vector<1x128xf32>
    %318 = arith.divf %316, %317 : vector<1x128xf32>
    %319 = vector.extract_strided_slice %308 {offsets = [0, 128], sizes = [1, 128], strides = [1, 1]} : vector<1x384xf32> to vector<1x128xf32>
    %320 = vector.extract_strided_slice %310 {offsets = [0, 128], sizes = [1, 128], strides = [1, 1]} : vector<1x384xf32> to vector<1x128xf32>
    %321 = arith.addf %319, %320 : vector<1x128xf32>
    %322 = arith.negf %321 : vector<1x128xf32>
    %323 = math.exp %322 : vector<1x128xf32>
    %cst_64 = arith.constant 1.000000e+00 : f32
    %324 = vector.broadcast %cst_64 : f32 to vector<1x128xf32>
    %325 = arith.addf %324, %323 : vector<1x128xf32>
    %326 = arith.divf %324, %325 : vector<1x128xf32>
    %327 = vector.extract_strided_slice %308 {offsets = [0, 256], sizes = [1, 128], strides = [1, 1]} : vector<1x384xf32> to vector<1x128xf32>
    %328 = vector.extract_strided_slice %310 {offsets = [0, 256], sizes = [1, 128], strides = [1, 1]} : vector<1x384xf32> to vector<1x128xf32>
    %329 = arith.mulf %318, %328 : vector<1x128xf32>
    %330 = arith.addf %327, %329 : vector<1x128xf32>
    %331 = math.tanh %330 : vector<1x128xf32>
    %cst_65 = arith.constant 1.000000e+00 : f32
    %332 = vector.broadcast %cst_65 : f32 to vector<1x128xf32>
    %333 = arith.subf %332, %326 : vector<1x128xf32>
    %334 = arith.mulf %333, %331 : vector<1x128xf32>
    %335 = arith.mulf %326, %278 : vector<1x128xf32>
    %336 = arith.addf %334, %335 : vector<1x128xf32>
    %337 = vector.extract_strided_slice %11 {offsets = [5, 0], sizes = [1, 384], strides = [1, 1]} : vector<8x384xf32> to vector<1x384xf32>
    %cst_66 = arith.constant dense<0.000000e+00> : vector<1x384xf32>
    %338 = tpu.matmul %307, %14, %cst_66 {dimension_numbers = #tpu.dot_dimension_numbers<[1], [0], [0], [1], [0, 0, 1, 1], [], []>} : vector<1x128xf32>, vector<128x384xf32>, vector<1x384xf32> -> vector<1x384xf32>
    %339 = arith.addf %338, %15 : vector<1x384xf32>
    %340 = vector.extract_strided_slice %337 {offsets = [0, 0], sizes = [1, 128], strides = [1, 1]} : vector<1x384xf32> to vector<1x128xf32>
    %341 = vector.extract_strided_slice %339 {offsets = [0, 0], sizes = [1, 128], strides = [1, 1]} : vector<1x384xf32> to vector<1x128xf32>
    %342 = arith.addf %340, %341 : vector<1x128xf32>
    %343 = arith.negf %342 : vector<1x128xf32>
    %344 = math.exp %343 : vector<1x128xf32>
    %cst_67 = arith.constant 1.000000e+00 : f32
    %345 = vector.broadcast %cst_67 : f32 to vector<1x128xf32>
    %346 = arith.addf %345, %344 : vector<1x128xf32>
    %347 = arith.divf %345, %346 : vector<1x128xf32>
    %348 = vector.extract_strided_slice %337 {offsets = [0, 128], sizes = [1, 128], strides = [1, 1]} : vector<1x384xf32> to vector<1x128xf32>
    %349 = vector.extract_strided_slice %339 {offsets = [0, 128], sizes = [1, 128], strides = [1, 1]} : vector<1x384xf32> to vector<1x128xf32>
    %350 = arith.addf %348, %349 : vector<1x128xf32>
    %351 = arith.negf %350 : vector<1x128xf32>
    %352 = math.exp %351 : vector<1x128xf32>
    %cst_68 = arith.constant 1.000000e+00 : f32
    %353 = vector.broadcast %cst_68 : f32 to vector<1x128xf32>
    %354 = arith.addf %353, %352 : vector<1x128xf32>
    %355 = arith.divf %353, %354 : vector<1x128xf32>
    %356 = vector.extract_strided_slice %337 {offsets = [0, 256], sizes = [1, 128], strides = [1, 1]} : vector<1x384xf32> to vector<1x128xf32>
    %357 = vector.extract_strided_slice %339 {offsets = [0, 256], sizes = [1, 128], strides = [1, 1]} : vector<1x384xf32> to vector<1x128xf32>
    %358 = arith.mulf %347, %357 : vector<1x128xf32>
    %359 = arith.addf %356, %358 : vector<1x128xf32>
    %360 = math.tanh %359 : vector<1x128xf32>
    %cst_69 = arith.constant 1.000000e+00 : f32
    %361 = vector.broadcast %cst_69 : f32 to vector<1x128xf32>
    %362 = arith.subf %361, %355 : vector<1x128xf32>
    %363 = arith.mulf %362, %360 : vector<1x128xf32>
    %364 = arith.mulf %355, %307 : vector<1x128xf32>
    %365 = arith.addf %363, %364 : vector<1x128xf32>
    %cst_70 = arith.constant 0.000000e+00 : f32
    %366 = vector.broadcast %cst_70 : f32 to vector<1x128xf32>
    %367 = arith.maximumf %336, %366 : vector<1x128xf32>
    %c0_71 = arith.constant 0 : index
    %c0_72 = arith.constant 0 : index
    %368 = vector.load %arg10[%c0_71, %c0_72] : memref<128x128xf32, #tpu.memory_space<vmem>>, vector<128x128xf32>
    %cst_73 = arith.constant dense<0.000000e+00> : vector<1x128xf32>
    %369 = tpu.matmul %367, %368, %cst_73 {dimension_numbers = #tpu.dot_dimension_numbers<[1], [0], [0], [1], [0, 0, 1, 1], [], []>} : vector<1x128xf32>, vector<128x128xf32>, vector<1x128xf32> -> vector<1x128xf32>
    %cst_74 = arith.constant 0.000000e+00 : f32
    %370 = vector.broadcast %cst_74 : f32 to vector<1x128xf32>
    %371 = arith.maximumf %365, %370 : vector<1x128xf32>
    %c0_75 = arith.constant 0 : index
    %c0_76 = arith.constant 0 : index
    %372 = vector.load %arg11[%c0_75, %c0_76] : memref<128x128xf32, #tpu.memory_space<vmem>>, vector<128x128xf32>
    %cst_77 = arith.constant dense<0.000000e+00> : vector<1x128xf32>
    %373 = tpu.matmul %371, %372, %cst_77 {dimension_numbers = #tpu.dot_dimension_numbers<[1], [0], [0], [1], [0, 0, 1, 1], [], []>} : vector<1x128xf32>, vector<128x128xf32>, vector<1x128xf32> -> vector<1x128xf32>
    %374 = arith.addf %369, %373 : vector<1x128xf32>
    %c0_78 = arith.constant 0 : index
    %c0_79 = arith.constant 0 : index
    %375 = vector.load %arg12[%c0_78, %c0_79] : memref<1x128xf32, #tpu.memory_space<vmem>>, vector<1x128xf32>
    %376 = arith.addf %374, %375 : vector<1x128xf32>
    %c0_80 = arith.constant 0 : index
    %c0_81 = arith.constant 0 : index
    %377 = vector.load %arg13[%c0_80, %c0_81] : memref<128x128xf32, #tpu.memory_space<vmem>>, vector<128x128xf32>
    %cst_82 = arith.constant dense<0.000000e+00> : vector<1x128xf32>
    %378 = tpu.matmul %376, %377, %cst_82 {dimension_numbers = #tpu.dot_dimension_numbers<[1], [0], [0], [1], [0, 0, 1, 1], [], []>} : vector<1x128xf32>, vector<128x128xf32>, vector<1x128xf32> -> vector<1x128xf32>
    %379 = arith.negf %378 : vector<1x128xf32>
    %380 = math.exp %379 : vector<1x128xf32>
    %cst_83 = arith.constant 1.000000e+00 : f32
    %381 = vector.broadcast %cst_83 : f32 to vector<1x128xf32>
    %382 = arith.addf %381, %380 : vector<1x128xf32>
    %383 = arith.divf %381, %382 : vector<1x128xf32>
    %c0_84 = arith.constant 0 : index
    %c0_85 = arith.constant 0 : index
    %384 = vector.load %arg14[%c0_84, %c0_85] : memref<128x128xf32, #tpu.memory_space<vmem>>, vector<128x128xf32>
    %cst_86 = arith.constant dense<0.000000e+00> : vector<1x128xf32>
    %385 = tpu.matmul %383, %384, %cst_86 {dimension_numbers = #tpu.dot_dimension_numbers<[1], [0], [0], [1], [0, 0, 1, 1], [], []>} : vector<1x128xf32>, vector<128x128xf32>, vector<1x128xf32> -> vector<1x128xf32>
    %386 = arith.addf %383, %385 : vector<1x128xf32>
    %c0_87 = arith.constant 0 : index
    %c0_88 = arith.constant 0 : index
    %387 = vector.load %arg15[%c0_87, %c0_88] : memref<1x128xf32, #tpu.memory_space<vmem>>, vector<1x128xf32>
    %388 = arith.addf %386, %387 : vector<1x128xf32>
    %389 = tpu.iota {dimensions = array<i32: 1>} : vector<1x128xi32>
    %c10_i32 = arith.constant 10 : i32
    %390 = vector.broadcast %c10_i32 : i32 to vector<1x128xi32>
    %391 = arith.cmpi slt, %389, %390 : vector<1x128xi32>
    %392 = arith.extui %391 : vector<1x128xi1> to vector<1x128xi32>
    %393 = arith.sitofp %392 : vector<1x128xi32> to vector<1x128xf32>
    %394 = arith.mulf %388, %393 : vector<1x128xf32>
    %cst_89 = arith.constant dense<0.000000e+00> : vector<1xf32>
    %395 = vector.multi_reduction <add>, %394, %cst_89 [1] : vector<1x128xf32> to vector<1xf32>
    %396 = vector.shape_cast %395 : vector<1xf32> to vector<1x1xf32>
    %cst_90 = arith.constant 1.000000e-01 : f32
    %397 = vector.broadcast %cst_90 : f32 to vector<1x1xf32>
    %398 = arith.mulf %396, %397 : vector<1x1xf32>
    %399 = vector.broadcast %398 : vector<1x1xf32> to vector<1x128xf32>
    %400 = arith.subf %388, %399 : vector<1x128xf32>
    %401 = arith.mulf %400, %393 : vector<1x128xf32>
    %402 = arith.mulf %401, %401 : vector<1x128xf32>
    %cst_91 = arith.constant dense<0.000000e+00> : vector<1xf32>
    %403 = vector.multi_reduction <add>, %402, %cst_91 [1] : vector<1x128xf32> to vector<1xf32>
    %404 = vector.shape_cast %403 : vector<1xf32> to vector<1x1xf32>
    %cst_92 = arith.constant 1.000000e-01 : f32
    %405 = vector.broadcast %cst_92 : f32 to vector<1x1xf32>
    %406 = arith.mulf %404, %405 : vector<1x1xf32>
    %cst_93 = arith.constant 9.99999974E-6 : f32
    %407 = vector.broadcast %cst_93 : f32 to vector<1x1xf32>
    %408 = arith.addf %406, %407 : vector<1x1xf32>
    %409 = math.rsqrt %408 : vector<1x1xf32>
    %410 = vector.broadcast %409 : vector<1x1xf32> to vector<1x128xf32>
    %411 = arith.mulf %401, %410 : vector<1x128xf32>
    %c0_94 = arith.constant 0 : index
    %c0_95 = arith.constant 0 : index
    %412 = vector.load %arg16[%c0_94, %c0_95] : memref<1x128xf32, #tpu.memory_space<vmem>>, vector<1x128xf32>
    %413 = arith.mulf %411, %412 : vector<1x128xf32>
    %c0_96 = arith.constant 0 : index
    %c0_97 = arith.constant 0 : index
    %414 = vector.load %arg17[%c0_96, %c0_97] : memref<1x128xf32, #tpu.memory_space<vmem>>, vector<1x128xf32>
    %415 = arith.addf %413, %414 : vector<1x128xf32>
    %c0_98 = arith.constant 0 : index
    %c0_99 = arith.constant 0 : index
    %416 = vector.load %arg18[%c0_98, %c0_99] : memref<128x128xf32, #tpu.memory_space<vmem>>, vector<128x128xf32>
    %cst_100 = arith.constant dense<0.000000e+00> : vector<1x128xf32>
    %417 = tpu.matmul %376, %416, %cst_100 {dimension_numbers = #tpu.dot_dimension_numbers<[1], [0], [0], [1], [0, 0, 1, 1], [], []>} : vector<1x128xf32>, vector<128x128xf32>, vector<1x128xf32> -> vector<1x128xf32>
    %c0_101 = arith.constant 0 : index
    %c0_102 = arith.constant 0 : index
    %418 = vector.load %arg19[%c0_101, %c0_102] : memref<1x128xf32, #tpu.memory_space<vmem>>, vector<1x128xf32>
    %419 = arith.addf %417, %418 : vector<1x128xf32>
    %420 = arith.negf %419 : vector<1x128xf32>
    %421 = math.exp %420 : vector<1x128xf32>
    %cst_103 = arith.constant 1.000000e+00 : f32
    %422 = vector.broadcast %cst_103 : f32 to vector<1x128xf32>
    %423 = arith.addf %422, %421 : vector<1x128xf32>
    %424 = arith.divf %422, %423 : vector<1x128xf32>
    %c0_104 = arith.constant 0 : index
    %c0_105 = arith.constant 0 : index
    %425 = vector.load %arg20[%c0_104, %c0_105] : memref<128x128xf32, #tpu.memory_space<vmem>>, vector<128x128xf32>
    %cst_106 = arith.constant dense<0.000000e+00> : vector<1x128xf32>
    %426 = tpu.matmul %424, %425, %cst_106 {dimension_numbers = #tpu.dot_dimension_numbers<[1], [0], [0], [1], [0, 0, 1, 1], [], []>} : vector<1x128xf32>, vector<128x128xf32>, vector<1x128xf32> -> vector<1x128xf32>
    %427 = arith.mulf %426, %415 : vector<1x128xf32>
    %c0_107 = arith.constant 0 : index
    %c0_108 = arith.constant 0 : index
    %428 = vector.load %arg22[%c0_107, %c0_108] : memref<1x128xf32, #tpu.memory_space<vmem>>, vector<1x128xf32>
    tpu.vector_store %arg22[%c0_107, %c0_108], %427 {strides = array<i32>} : memref<1x128xf32, #tpu.memory_space<vmem>>, vector<1x128xf32>,
    %429 = arith.negf %427 : vector<1x128xf32>
    %430 = math.exp %429 : vector<1x128xf32>
    %cst_109 = arith.constant 1.000000e+00 : f32
    %431 = vector.broadcast %cst_109 : f32 to vector<1x128xf32>
    %432 = arith.addf %431, %430 : vector<1x128xf32>
    %433 = arith.divf %431, %432 : vector<1x128xf32>
    %c0_110 = arith.constant 0 : index
    %c0_111 = arith.constant 0 : index
    %434 = vector.load %arg21[%c0_110, %c0_111] : memref<128x128xf32, #tpu.memory_space<vmem>>, vector<128x128xf32>
    %cst_112 = arith.constant dense<0.000000e+00> : vector<1x128xf32>
    %435 = tpu.matmul %433, %434, %cst_112 {dimension_numbers = #tpu.dot_dimension_numbers<[1], [0], [0], [1], [0, 0, 1, 1], [], []>} : vector<1x128xf32>, vector<128x128xf32>, vector<1x128xf32> -> vector<1x128xf32>
    %436 = arith.mulf %435, %433 : vector<1x128xf32>
    %cst_113 = arith.constant dense<0.000000e+00> : vector<1xf32>
    %437 = vector.multi_reduction <add>, %436, %cst_113 [1] : vector<1x128xf32> to vector<1xf32>
    %438 = vector.shape_cast %437 : vector<1xf32> to vector<1x1xf32>
    %cst_114 = arith.constant 5.000000e-04 : f32
    %439 = vector.broadcast %cst_114 : f32 to vector<1x1xf32>
    %440 = arith.mulf %439, %438 : vector<1x1xf32>
    %c0_115 = arith.constant 0 : index
    %c0_116 = arith.constant 0 : index
    %441 = vector.load %arg23[%c0_115, %c0_116] : memref<1x1xf32, #tpu.memory_space<vmem>>, vector<1x1xf32>
    tpu.vector_store %arg23[%c0_115, %c0_116], %440 {strides = array<i32>} : memref<1x1xf32, #tpu.memory_space<vmem>>, vector<1x1xf32>,
    return
  }
}

</mosaic_0001>

<llo_original>
// kernel: tpu_custom_call.1
$region0: #{tpu_custom_call.1}
  #allocation0 [shape = 'u32[]', space=smem, size = 0x4, offset = 0x4, fixed_abs, tag = 'smem constant byte address 0x4 - core index']
  #allocation1 [shape = 'u32[72,128]{1,0:T(1,128)}', space=vmem, size = 0x9000, scoped, tag = 'internal scratch']
  %s0 = inlined_call_operand.hbm [shape: f32[8,128], index: 0, kind: input, shape index: {}]
  %s1 = inlined_call_operand.hbm [shape: f32[8,128], index: 1, kind: input, shape index: {}]
  %s2 = inlined_call_operand.hbm [shape: f32[128,384], index: 2, kind: input, shape index: {}]
  %s3 = inlined_call_operand.hbm [shape: f32[128,384], index: 3, kind: input, shape index: {}]
  %s4 = inlined_call_operand.vmem [shape: f32[1,384], index: 4, kind: input, shape index: {}]
  %s5 = inlined_call_operand.hbm [shape: f32[1,384], index: 5, kind: input, shape index: {}]
  %s6 = inlined_call_operand.hbm [shape: f32[128,384], index: 6, kind: input, shape index: {}]
  %s7 = inlined_call_operand.hbm [shape: f32[128,384], index: 7, kind: input, shape index: {}]
  %s8 = inlined_call_operand.vmem [shape: f32[1,384], index: 8, kind: input, shape index: {}]
  %s9 = inlined_call_operand.hbm [shape: f32[1,384], index: 9, kind: input, shape index: {}]
  %s10 = inlined_call_operand.hbm [shape: f32[128,128], index: 10, kind: input, shape index: {}]
  %s11 = inlined_call_operand.hbm [shape: f32[128,128], index: 11, kind: input, shape index: {}]
  %s12 = inlined_call_operand.vmem [shape: f32[1,128], index: 12, kind: input, shape index: {}]
  %s13 = inlined_call_operand.hbm [shape: f32[128,128], index: 13, kind: input, shape index: {}]
  %s14 = inlined_call_operand.hbm [shape: f32[128,128], index: 14, kind: input, shape index: {}]
  %s15 = inlined_call_operand.vmem [shape: f32[1,128], index: 15, kind: input, shape index: {}]
  %s16 = inlined_call_operand.vmem [shape: f32[1,128], index: 16, kind: input, shape index: {}]
  %s17 = inlined_call_operand.vmem [shape: f32[1,128], index: 17, kind: input, shape index: {}]
  %s18 = inlined_call_operand.hbm [shape: f32[128,128], index: 18, kind: input, shape index: {}]
  %s19 = inlined_call_operand.vmem [shape: f32[1,128], index: 19, kind: input, shape index: {}]
  %s20 = inlined_call_operand.hbm [shape: f32[128,128], index: 20, kind: input, shape index: {}]
  %s21 = inlined_call_operand.hbm [shape: f32[128,128], index: 21, kind: input, shape index: {}]
  %s22 = inlined_call_operand.hbm [shape: f32[1,128], index: 22, kind: output, shape index: {0}]
  %s23 = inlined_call_operand.hbm [shape: f32[1,1], index: 23, kind: output, shape index: {1}]
  %24 = xla_tuple %s22, %s23
  %s25 = sld [smem:[#allocation0]]
  $region166: #{tpu_custom_call.1} parent=0
    _
  %s27 = ssub.s32 1, %s25
  %s28 = scalar_select 0, %s27, %s25
  $region1: #{tpu_custom_call.1} parent=0
    #allocation2 [shape = 'u8[4096]{0}', space=vmem, size = 0x1000, scoped, tag = 'input window, operand 0, single buffered']
    #allocation3 [shape = 's32[1]{0}', space=sflag, size = 0x4, scoped, tag = 'scoped memory for tpu_custom_call.1']
    #allocation4 [shape = 's32[1]{0}', space=sflag, size = 0x4, scoped, tag = 'scoped memory for tpu_custom_call.1']
    #allocation5 [shape = 'u8[4096]{0}', space=vmem, size = 0x1000, scoped, tag = 'input window, operand 1, single buffered']
    #allocation6 [shape = 's32[1]{0}', space=sflag, size = 0x4, scoped, tag = 'scoped memory for tpu_custom_call.1']
    #allocation7 [shape = 'u8[196608]{0}', space=vmem, size = 0x30000, scoped, tag = 'input window, operand 2, single buffered']
    #allocation8 [shape = 'u8[196608]{0}', space=vmem, size = 0x30000, scoped, tag = 'input window, operand 3, single buffered']
    #allocation9 [shape = 's32[1]{0}', space=sflag, size = 0x4, scoped, tag = 'scoped memory for tpu_custom_call.1']
    #allocation10 [shape = 'u8[1536]{0}', space=vmem, size = 0x800, scoped, tag = 'input window, operand 5, single buffered']
    #allocation11 [shape = 'u8[196608]{0}', space=vmem, size = 0x30000, scoped, tag = 'input window, operand 6, single buffered']
    #allocation12 [shape = 's32[1]{0}', space=sflag, size = 0x4, scoped, tag = 'scoped memory for tpu_custom_call.1']
    #allocation13 [shape = 'u8[196608]{0}', space=vmem, size = 0x30000, scoped, tag = 'input window, operand 7, single buffered']
    #allocation14 [shape = 'u8[1536]{0}', space=vmem, size = 0x800, scoped, tag = 'input window, operand 9, single buffered']
    #allocation15 [shape = 's32[1]{0}', space=sflag, size = 0x4, scoped, tag = 'scoped memory for tpu_custom_call.1']
    #allocation16 [shape = 'u8[65536]{0}', space=vmem, size = 0x10000, scoped, tag = 'input window, operand 10, single buffered']
    #allocation17 [shape = 'u8[65536]{0}', space=vmem, size = 0x10000, scoped, tag = 'input window, operand 11, single buffered']
    #allocation18 [shape = 's32[1]{0}', space=sflag, size = 0x4, scoped, tag = 'scoped memory for tpu_custom_call.1']
    #allocation19 [shape = 'u8[65536]{0}', space=vmem, size = 0x10000, scoped, tag = 'input window, operand 13, single buffered']
    #allocation20 [shape = 'u8[65536]{0}', space=vmem, size = 0x10000, scoped, tag = 'input window, operand 14, single buffered']
    #allocation21 [shape = 's32[1]{0}', space=sflag, size = 0x4, scoped, tag = 'scoped memory for tpu_custom_call.1']
    #allocation22 [shape = 'u8[65536]{0}', space=vmem, size = 0x10000, scoped, tag = 'input window, operand 18, single buffered']
    #allocation23 [shape = 'u8[65536]{0}', space=vmem, size = 0x10000, scoped, tag = 'input window, operand 20, single buffered']
    #allocation24 [shape = 's32[1]{0}', space=sflag, size = 0x4, scoped, tag = 'scoped memory for tpu_custom_call.1']
    #allocation25 [shape = 'u8[65536]{0}', space=vmem, size = 0x10000, scoped, tag = 'input window, operand 21, single buffered']
    #allocation26 [shape = 'u8[512]{0}', space=vmem, size = 0x400, scoped, tag = 'output window, operand 0, single buffered']
    #allocation27 [shape = 'u8[512]{0}', space=vmem, size = 0x400, scoped, tag = 'output window, operand 1, single buffered']
    #allocation28 [shape = 's32[1]{0}', space=sflag, size = 0x4, scoped, tag = 'scoped memory for tpu_custom_call.1']
    %29 = vsyncpa [#allocation3], 0
    %30 = vsyncpa [#allocation6], 0
    %31 = vsyncpa [#allocation9], 0
    %32 = vsyncpa [#allocation12], 0
    %33 = vsyncpa [#allocation15], 0
    %34 = vsyncpa [#allocation18], 0
    %35 = vsyncpa [#allocation21], 0
    %36 = vsyncpa [#allocation24], 0
    %37 = vsyncpa [#allocation4], 0
    %38 = vsyncpa [#allocation28], 0
    // Predicated region
    $region2: #{tpu_custom_call.1} parent=1 // pred_check
      _
    $region3: #{tpu_custom_call.1} parent=1 // pred_check_branch
      %40 = sbr.rel (0) target = $region5
    $region4: #{tpu_custom_call.1} parent=1 // pred_region
      %42 = vsyncadd [#allocation3], 0
      %s44 = sshll.u32 %s0, 4
      %s45 = int_to_ptr.hbm [resolvable:$true] %s44
      %s46 = sshll.u32 [#allocation2], 4
      %s47 = int_to_ptr.vmem [resolvable:$true] %s46
      %49 = dma.hbm_to_vmem [thread:$0]  %s45, 128, %s47, [#allocation3]
    $region5: #{tpu_custom_call.1} parent=1 // pred_fallthru
      _
    // Predicated region
    $region6: #{tpu_custom_call.1} parent=1 // pred_check
      _
    $region7: #{tpu_custom_call.1} parent=1 // pred_check_branch
      %51 = sbr.rel (0) target = $region9
    $region8: #{tpu_custom_call.1} parent=1 // pred_region
      %53 = vsyncadd [#allocation6], 0
      %s55 = sshll.u32 %s1, 4
      %s56 = int_to_ptr.hbm [resolvable:$true] %s55
      %s57 = sshll.u32 [#allocation5], 4
      %s58 = int_to_ptr.vmem [resolvable:$true] %s57
      %60 = dma.hbm_to_vmem [thread:$0]  %s56, 128, %s58, [#allocation6]
    $region9: #{tpu_custom_call.1} parent=1 // pred_fallthru
      _
    // Predicated region
    $region10: #{tpu_custom_call.1} parent=1 // pred_check
      _
    $region11: #{tpu_custom_call.1} parent=1 // pred_check_branch
      %62 = sbr.rel (0) target = $region13
    $region12: #{tpu_custom_call.1} parent=1 // pred_region
      %64 = vsyncadd [#allocation6], 0
      %s65 = sshll.u32 %s2, 4
      %s66 = int_to_ptr.hbm [resolvable:$true] %s65
      %s67 = sshll.u32 [#allocation7], 4
      %s68 = int_to_ptr.vmem [resolvable:$true] %s67
      %73 = dma.hbm_to_vmem [thread:$0]  %s66, 6144, %s68, [#allocation6], 384, 384, 24
    $region13: #{tpu_custom_call.1} parent=1 // pred_fallthru
      _
    // Predicated region
    $region14: #{tpu_custom_call.1} parent=1 // pred_check
      _
    $region15: #{tpu_custom_call.1} parent=1 // pred_check_branch
      %75 = sbr.rel (0) target = $region17
    $region16: #{tpu_custom_call.1} parent=1 // pred_region
      %77 = vsyncadd [#allocation9], 0
      %s78 = sshll.u32 %s3, 4
      %s79 = int_to_ptr.hbm [resolvable:$true] %s78
      %s80 = sshll.u32 [#allocation8], 4
      %s81 = int_to_ptr.vmem [resolvable:$true] %s80
      %86 = dma.hbm_to_vmem [thread:$0]  %s79, 6144, %s81, [#allocation9], 384, 384, 24
    $region17: #{tpu_custom_call.1} parent=1 // pred_fallthru
      _
    // Predicated region
    $region18: #{tpu_custom_call.1} parent=1 // pred_check
      _
    $region19: #{tpu_custom_call.1} parent=1 // pred_check_branch
      %88 = sbr.rel (0) target = $region21
    $region20: #{tpu_custom_call.1} parent=1 // pred_region
      _
    $region21: #{tpu_custom_call.1} parent=1 // pred_fallthru
      _
    // Predicated region
    $region22: #{tpu_custom_call.1} parent=1 // pred_check
      _
    $region23: #{tpu_custom_call.1} parent=1 // pred_check_branch
      %90 = sbr.rel (0) target = $region25
    $region24: #{tpu_custom_call.1} parent=1 // pred_region
      %92 = vsyncadd [#allocation9], 0
      %s94 = sshll.u32 %s5, 4
      %s95 = int_to_ptr.hbm [resolvable:$true] %s94
      %s96 = sshll.u32 [#allocation10], 4
      %s97 = int_to_ptr.vmem [resolvable:$true] %s96
      %99 = dma.hbm_to_vmem [thread:$0]  %s95, 48, %s97, [#allocation9]
    $region25: #{tpu_custom_call.1} parent=1 // pred_fallthru
      _
    // Predicated region
    $region26: #{tpu_custom_call.1} parent=1 // pred_check
      _
    $region27: #{tpu_custom_call.1} parent=1 // pred_check_branch
      %101 = sbr.rel (0) target = $region29
    $region28: #{tpu_custom_call.1} parent=1 // pred_region
      %103 = vsyncadd [#allocation12], 0
      %s104 = sshll.u32 %s6, 4
      %s105 = int_to_ptr.hbm [resolvable:$true] %s104
      %s106 = sshll.u32 [#allocation11], 4
      %s107 = int_to_ptr.vmem [resolvable:$true] %s106
      %112 = dma.hbm_to_vmem [thread:$0]  %s105, 6144, %s107, [#allocation12], 384, 384, 24
    $region29: #{tpu_custom_call.1} parent=1 // pred_fallthru
      _
    // Predicated region
    $region30: #{tpu_custom_call.1} parent=1 // pred_check
      _
    $region31: #{tpu_custom_call.1} parent=1 // pred_check_branch
      %114 = sbr.rel (0) target = $region33
    $region32: #{tpu_custom_call.1} parent=1 // pred_region
      %116 = vsyncadd [#allocation12], 0
      %s117 = sshll.u32 %s7, 4
      %s118 = int_to_ptr.hbm [resolvable:$true] %s117
      %s119 = sshll.u32 [#allocation13], 4
      %s120 = int_to_ptr.vmem [resolvable:$true] %s119
      %125 = dma.hbm_to_vmem [thread:$0]  %s118, 6144, %s120, [#allocation12], 384, 384, 24
    $region33: #{tpu_custom_call.1} parent=1 // pred_fallthru
      _
    // Predicated region
    $region34: #{tpu_custom_call.1} parent=1 // pred_check
      _
    $region35: #{tpu_custom_call.1} parent=1 // pred_check_branch
      %127 = sbr.rel (0) target = $region37
    $region36: #{tpu_custom_call.1} parent=1 // pred_region
      _
    $region37: #{tpu_custom_call.1} parent=1 // pred_fallthru
      _
    // Predicated region
    $region38: #{tpu_custom_call.1} parent=1 // pred_check
      _
    $region39: #{tpu_custom_call.1} parent=1 // pred_check_branch
      %129 = sbr.rel (0) target = $region41
    $region40: #{tpu_custom_call.1} parent=1 // pred_region
      %131 = vsyncadd [#allocation15], 0
      %s133 = sshll.u32 %s9, 4
      %s134 = int_to_ptr.hbm [resolvable:$true] %s133
      %s135 = sshll.u32 [#allocation14], 4
      %s136 = int_to_ptr.vmem [resolvable:$true] %s135
      %138 = dma.hbm_to_vmem [thread:$0]  %s134, 48, %s136, [#allocation15]
    $region41: #{tpu_custom_call.1} parent=1 // pred_fallthru
      _
    // Predicated region
    $region42: #{tpu_custom_call.1} parent=1 // pred_check
      _
    $region43: #{tpu_custom_call.1} parent=1 // pred_check_branch
      %140 = sbr.rel (0) target = $region45
    $region44: #{tpu_custom_call.1} parent=1 // pred_region
      %142 = vsyncadd [#allocation15], 0
      %s143 = sshll.u32 %s10, 4
      %s144 = int_to_ptr.hbm [resolvable:$true] %s143
      %s145 = sshll.u32 [#allocation16], 4
      %s146 = int_to_ptr.vmem [resolvable:$true] %s145
      %151 = dma.hbm_to_vmem [thread:$0]  %s144, 2048, %s146, [#allocation15], 128, 128, 8
    $region45: #{tpu_custom_call.1} parent=1 // pred_fallthru
      _
    // Predicated region
    $region46: #{tpu_custom_call.1} parent=1 // pred_check
      _
    $region47: #{tpu_custom_call.1} parent=1 // pred_check_branch
      %153 = sbr.rel (0) target = $region49
    $region48: #{tpu_custom_call.1} parent=1 // pred_region
      %155 = vsyncadd [#allocation18], 0
      %s156 = sshll.u32 %s11, 4
      %s157 = int_to_ptr.hbm [resolvable:$true] %s156
      %s158 = sshll.u32 [#allocation17], 4
      %s159 = int_to_ptr.vmem [resolvable:$true] %s158
      %164 = dma.hbm_to_vmem [thread:$0]  %s157, 2048, %s159, [#allocation18], 128, 128, 8
    $region49: #{tpu_custom_call.1} parent=1 // pred_fallthru
      _
    // Predicated region
    $region50: #{tpu_custom_call.1} parent=1 // pred_check
      _
    $region51: #{tpu_custom_call.1} parent=1 // pred_check_branch
      %166 = sbr.rel (0) target = $region53
    $region52: #{tpu_custom_call.1} parent=1 // pred_region
      _
    $region53: #{tpu_custom_call.1} parent=1 // pred_fallthru
      _
    // Predicated region
    $region54: #{tpu_custom_call.1} parent=1 // pred_check
      _
    $region55: #{tpu_custom_call.1} parent=1 // pred_check_branch
      %168 = sbr.rel (0) target = $region57
    $region56: #{tpu_custom_call.1} parent=1 // pred_region
      %170 = vsyncadd [#allocation18], 0
      %s171 = sshll.u32 %s13, 4
      %s172 = int_to_ptr.hbm [resolvable:$true] %s171
      %s173 = sshll.u32 [#allocation19], 4
      %s174 = int_to_ptr.vmem [resolvable:$true] %s173
      %179 = dma.hbm_to_vmem [thread:$0]  %s172, 2048, %s174, [#allocation18], 128, 128, 8
    $region57: #{tpu_custom_call.1} parent=1 // pred_fallthru
      _
    // Predicated region
    $region58: #{tpu_custom_call.1} parent=1 // pred_check
      _
    $region59: #{tpu_custom_call.1} parent=1 // pred_check_branch
      %181 = sbr.rel (0) target = $region61
    $region60: #{tpu_custom_call.1} parent=1 // pred_region
      %183 = vsyncadd [#allocation21], 0
      %s184 = sshll.u32 %s14, 4
      %s185 = int_to_ptr.hbm [resolvable:$true] %s184
      %s186 = sshll.u32 [#allocation20], 4
      %s187 = int_to_ptr.vmem [resolvable:$true] %s186
      %192 = dma.hbm_to_vmem [thread:$0]  %s185, 2048, %s187, [#allocation21], 128, 128, 8
    $region61: #{tpu_custom_call.1} parent=1 // pred_fallthru
      _
    // Predicated region
    $region62: #{tpu_custom_call.1} parent=1 // pred_check
      _
    $region63: #{tpu_custom_call.1} parent=1 // pred_check_branch
      %194 = sbr.rel (0) target = $region65
    $region64: #{tpu_custom_call.1} parent=1 // pred_region
      _
    $region65: #{tpu_custom_call.1} parent=1 // pred_fallthru
      _
    // Predicated region
    $region66: #{tpu_custom_call.1} parent=1 // pred_check
      _
    $region67: #{tpu_custom_call.1} parent=1 // pred_check_branch
      %196 = sbr.rel (0) target = $region69
    $region68: #{tpu_custom_call.1} parent=1 // pred_region
      _
    $region69: #{tpu_custom_call.1} parent=1 // pred_fallthru
      _
    // Predicated region
    $region70: #{tpu_custom_call.1} parent=1 // pred_check
      _
    $region71: #{tpu_custom_call.1} parent=1 // pred_check_branch
      %198 = sbr.rel (0) target = $region73
    $region72: #{tpu_custom_call.1} parent=1 // pred_region
      _
    $region73: #{tpu_custom_call.1} parent=1 // pred_fallthru
      _
    // Predicated region
    $region74: #{tpu_custom_call.1} parent=1 // pred_check
      _
    $region75: #{tpu_custom_call.1} parent=1 // pred_check_branch
      %200 = sbr.rel (0) target = $region77
    $region76: #{tpu_custom_call.1} parent=1 // pred_region
      %202 = vsyncadd [#allocation21], 0
      %s203 = sshll.u32 %s18, 4
      %s204 = int_to_ptr.hbm [resolvable:$true] %s203
      %s205 = sshll.u32 [#allocation22], 4
      %s206 = int_to_ptr.vmem [resolvable:$true] %s205
      %211 = dma.hbm_to_vmem [thread:$0]  %s204, 2048, %s206, [#allocation21], 128, 128, 8
    $region77: #{tpu_custom_call.1} parent=1 // pred_fallthru
      _
    // Predicated region
    $region78: #{tpu_custom_call.1} parent=1 // pred_check
      _
    $region79: #{tpu_custom_call.1} parent=1 // pred_check_branch
      %213 = sbr.rel (0) target = $region81
    $region80: #{tpu_custom_call.1} parent=1 // pred_region
      _
    $region81: #{tpu_custom_call.1} parent=1 // pred_fallthru
      _
    // Predicated region
    $region82: #{tpu_custom_call.1} parent=1 // pred_check
      _
    $region83: #{tpu_custom_call.1} parent=1 // pred_check_branch
      %215 = sbr.rel (0) target = $region85
    $region84: #{tpu_custom_call.1} parent=1 // pred_region
      %217 = vsyncadd [#allocation24], 0
      %s218 = sshll.u32 %s20, 4
      %s219 = int_to_ptr.hbm [resolvable:$true] %s218
      %s220 = sshll.u32 [#allocation23], 4
      %s221 = int_to_ptr.vmem [resolvable:$true] %s220
      %226 = dma.hbm_to_vmem [thread:$0]  %s219, 2048, %s221, [#allocation24], 128, 128, 8
    $region85: #{tpu_custom_call.1} parent=1 // pred_fallthru
      _
    // Predicated region
    $region86: #{tpu_custom_call.1} parent=1 // pred_check
      _
    $region87: #{tpu_custom_call.1} parent=1 // pred_check_branch
      %228 = sbr.rel (0) target = $region89
    $region88: #{tpu_custom_call.1} parent=1 // pred_region
      %230 = vsyncadd [#allocation24], 0
      %s231 = sshll.u32 %s21, 4
      %s232 = int_to_ptr.hbm [resolvable:$true] %s231
      %s233 = sshll.u32 [#allocation25], 4
      %s234 = int_to_ptr.vmem [resolvable:$true] %s233
      %239 = dma.hbm_to_vmem [thread:$0]  %s232, 2048, %s234, [#allocation24], 128, 128, 8
    $region89: #{tpu_custom_call.1} parent=1 // pred_fallthru
      _
    // Predicated region
    $region90: #{tpu_custom_call.1} parent=1 // pred_check
      _
    $region91: #{tpu_custom_call.1} parent=1 // pred_check_branch
      %241 = sbr.rel (0) target = $region93
    $region92: #{tpu_custom_call.1} parent=1 // pred_region
      %243 = dma.done [#allocation3], 128
    $region93: #{tpu_custom_call.1} parent=1 // pred_fallthru
      _
    // Predicated region
    $region94: #{tpu_custom_call.1} parent=1 // pred_check
      _
    $region95: #{tpu_custom_call.1} parent=1 // pred_check_branch
      %245 = sbr.rel (0) target = $region97
    $region96: #{tpu_custom_call.1} parent=1 // pred_region
      %247 = dma.done [#allocation6], 128
    $region97: #{tpu_custom_call.1} parent=1 // pred_fallthru
      _
    // Predicated region
    $region98: #{tpu_custom_call.1} parent=1 // pred_check
      _
    $region99: #{tpu_custom_call.1} parent=1 // pred_check_branch
      %249 = sbr.rel (0) target = $region101
    $region100: #{tpu_custom_call.1} parent=1 // pred_region
      %251 = dma.done [#allocation6], 6144
    $region101: #{tpu_custom_call.1} parent=1 // pred_fallthru
      _
    // Predicated region
    $region102: #{tpu_custom_call.1} parent=1 // pred_check
      _
    $region103: #{tpu_custom_call.1} parent=1 // pred_check_branch
      %253 = sbr.rel (0) target = $region105
    $region104: #{tpu_custom_call.1} parent=1 // pred_region
      %255 = dma.done [#allocation9], 6144
    $region105: #{tpu_custom_call.1} parent=1 // pred_fallthru
      _
    // Predicated region
    $region106: #{tpu_custom_call.1} parent=1 // pred_check
      _
    $region107: #{tpu_custom_call.1} parent=1 // pred_check_branch
      %257 = sbr.rel (0) target = $region109
    $region108: #{tpu_custom_call.1} parent=1 // pred_region
      %259 = dma.done [#allocation9], 48
    $region109: #{tpu_custom_call.1} parent=1 // pred_fallthru
      _
    // Predicated region
    $region110: #{tpu_custom_call.1} parent=1 // pred_check
      _
    $region111: #{tpu_custom_call.1} parent=1 // pred_check_branch
      %261 = sbr.rel (0) target = $region113
    $region112: #{tpu_custom_call.1} parent=1 // pred_region
      %263 = dma.done [#allocation12], 6144
    $region113: #{tpu_custom_call.1} parent=1 // pred_fallthru
      _
    // Predicated region
    $region114: #{tpu_custom_call.1} parent=1 // pred_check
      _
    $region115: #{tpu_custom_call.1} parent=1 // pred_check_branch
      %265 = sbr.rel (0) target = $region117
    $region116: #{tpu_custom_call.1} parent=1 // pred_region
      %267 = dma.done [#allocation12], 6144
    $region117: #{tpu_custom_call.1} parent=1 // pred_fallthru
      _
    // Predicated region
    $region118: #{tpu_custom_call.1} parent=1 // pred_check
      _
    $region119: #{tpu_custom_call.1} parent=1 // pred_check_branch
      %269 = sbr.rel (0) target = $region121
    $region120: #{tpu_custom_call.1} parent=1 // pred_region
      %271 = dma.done [#allocation15], 48
    $region121: #{tpu_custom_call.1} parent=1 // pred_fallthru
      _
    // Predicated region
    $region122: #{tpu_custom_call.1} parent=1 // pred_check
      _
    $region123: #{tpu_custom_call.1} parent=1 // pred_check_branch
      %273 = sbr.rel (0) target = $region125
    $region124: #{tpu_custom_call.1} parent=1 // pred_region
      %275 = dma.done [#allocation15], 2048
    $region125: #{tpu_custom_call.1} parent=1 // pred_fallthru
      _
    // Predicated region
    $region126: #{tpu_custom_call.1} parent=1 // pred_check
      _
    $region127: #{tpu_custom_call.1} parent=1 // pred_check_branch
      %277 = sbr.rel (0) target = $region129
    $region128: #{tpu_custom_call.1} parent=1 // pred_region
      %279 = dma.done [#allocation18], 2048
    $region129: #{tpu_custom_call.1} parent=1 // pred_fallthru
      _
    // Predicated region
    $region130: #{tpu_custom_call.1} parent=1 // pred_check
      _
    $region131: #{tpu_custom_call.1} parent=1 // pred_check_branch
      %281 = sbr.rel (0) target = $region133
    $region132: #{tpu_custom_call.1} parent=1 // pred_region
      %283 = dma.done [#allocation18], 2048
    $region133: #{tpu_custom_call.1} parent=1 // pred_fallthru
      _
    // Predicated region
    $region134: #{tpu_custom_call.1} parent=1 // pred_check
      _
    $region135: #{tpu_custom_call.1} parent=1 // pred_check_branch
      %285 = sbr.rel (0) target = $region137
    $region136: #{tpu_custom_call.1} parent=1 // pred_region
      %287 = dma.done [#allocation21], 2048
    $region137: #{tpu_custom_call.1} parent=1 // pred_fallthru
      _
    // Predicated region
    $region138: #{tpu_custom_call.1} parent=1 // pred_check
      _
    $region139: #{tpu_custom_call.1} parent=1 // pred_check_branch
      %289 = sbr.rel (0) target = $region141
    $region140: #{tpu_custom_call.1} parent=1 // pred_region
      %291 = dma.done [#allocation21], 2048
    $region141: #{tpu_custom_call.1} parent=1 // pred_fallthru
      _
    // Predicated region
    $region142: #{tpu_custom_call.1} parent=1 // pred_check
      _
    $region143: #{tpu_custom_call.1} parent=1 // pred_check_branch
      %293 = sbr.rel (0) target = $region145
    $region144: #{tpu_custom_call.1} parent=1 // pred_region
      %295 = dma.done [#allocation24], 2048
    $region145: #{tpu_custom_call.1} parent=1 // pred_fallthru
      _
    // Predicated region
    $region146: #{tpu_custom_call.1} parent=1 // pred_check
      _
    $region147: #{tpu_custom_call.1} parent=1 // pred_check_branch
      %297 = sbr.rel (0) target = $region149
    $region148: #{tpu_custom_call.1} parent=1 // pred_region
      %299 = dma.done [#allocation24], 2048
    $region149: #{tpu_custom_call.1} parent=1 // pred_fallthru
      _
    %v300 = vld [vmem:[#allocation2] sm:$0xff]
    %v301 = vld [vmem:[#allocation7] sm:$0xff]
    %v302 = vld [vmem:[#allocation7 + $0x8] sm:$0xff]
    %v303 = vld [vmem:[#allocation7 + $0x10] sm:$0xff]
    %v304 = vld [vmem:[#allocation7 + $0x18] sm:$0xff]
    %v305 = vld [vmem:[#allocation7 + $0x20] sm:$0xff]
    %v306 = vld [vmem:[#allocation7 + $0x28] sm:$0xff]
    %v307 = vld [vmem:[#allocation7 + $0x30] sm:$0xff]
    %v308 = vld [vmem:[#allocation7 + $0x38] sm:$0xff]
    %v309 = vld [vmem:[#allocation7 + $0x40] sm:$0xff]
    %v310 = vld [vmem:[#allocation7 + $0x48] sm:$0xff]
    %v311 = vld [vmem:[#allocation7 + $0x50] sm:$0xff]
    %v312 = vld [vmem:[#allocation7 + $0x58] sm:$0xff]
    %v313 = vld [vmem:[#allocation7 + $0x60] sm:$0xff]
    %v314 = vld [vmem:[#allocation7 + $0x68] sm:$0xff]
    %v315 = vld [vmem:[#allocation7 + $0x70] sm:$0xff]
    %v316 = vld [vmem:[#allocation7 + $0x78] sm:$0xff]
    %v317 = vld [vmem:[#allocation7 + $0x80] sm:$0xff]
    %v318 = vld [vmem:[#allocation7 + $0x88] sm:$0xff]
    %v319 = vld [vmem:[#allocation7 + $0x90] sm:$0xff]
    %v320 = vld [vmem:[#allocation7 + $0x98] sm:$0xff]
    %v321 = vld [vmem:[#allocation7 + $0xa0] sm:$0xff]
    %v322 = vld [vmem:[#allocation7 + $0xa8] sm:$0xff]
    %v323 = vld [vmem:[#allocation7 + $0xb0] sm:$0xff]
    %v324 = vld [vmem:[#allocation7 + $0xb8] sm:$0xff]
    %v325 = vld [vmem:[#allocation7 + $0xc0] sm:$0xff]
    %v326 = vld [vmem:[#allocation7 + $0xc8] sm:$0xff]
    %v327 = vld [vmem:[#allocation7 + $0xd0] sm:$0xff]
    %v328 = vld [vmem:[#allocation7 + $0xd8] sm:$0xff]
    %v329 = vld [vmem:[#allocation7 + $0xe0] sm:$0xff]
    %v330 = vld [vmem:[#allocation7 + $0xe8] sm:$0xff]
    %v331 = vld [vmem:[#allocation7 + $0xf0] sm:$0xff]
    %v332 = vld [vmem:[#allocation7 + $0xf8] sm:$0xff]
    %v333 = vld [vmem:[#allocation7 + $0x100] sm:$0xff]
    %v334 = vld [vmem:[#allocation7 + $0x108] sm:$0xff]
    %v335 = vld [vmem:[#allocation7 + $0x110] sm:$0xff]
    %v336 = vld [vmem:[#allocation7 + $0x118] sm:$0xff]
    %v337 = vld [vmem:[#allocation7 + $0x120] sm:$0xff]
    %v338 = vld [vmem:[#allocation7 + $0x128] sm:$0xff]
    %v339 = vld [vmem:[#allocation7 + $0x130] sm:$0xff]
    %v340 = vld [vmem:[#allocation7 + $0x138] sm:$0xff]
    %v341 = vld [vmem:[#allocation7 + $0x140] sm:$0xff]
    %v342 = vld [vmem:[#allocation7 + $0x148] sm:$0xff]
    %v343 = vld [vmem:[#allocation7 + $0x150] sm:$0xff]
    %v344 = vld [vmem:[#allocation7 + $0x158] sm:$0xff]
    %v345 = vld [vmem:[#allocation7 + $0x160] sm:$0xff]
    %v346 = vld [vmem:[#allocation7 + $0x168] sm:$0xff]
    %v347 = vld [vmem:[#allocation7 + $0x170] sm:$0xff]
    %v348 = vld [vmem:[#allocation7 + $0x178] sm:$0xff]
    %v349 = vld [vmem:[%s4] sm:$0x7]
    %v351 = vperm.slane %v349, 0
    %v352 = vperm.slane %v349, 1
    %v353 = vperm.slane %v349, 2
    %357 = vmatpush.msra.mxu0 %v346
    %358 = vmatpush.msra.mxu0 %v343
    %359 = vmatpush.msra.mxu0 %v340
    %360 = vmatpush.msra.mxu0 %v337
    %361 = vmatpush.msra.mxu0 %v334
    %362 = vmatpush.msra.mxu0 %v331
    %363 = vmatpush.msra.mxu0 %v328
    %364 = vmatpush.msra.mxu0 %v325
    %365 = vmatpush.msra.mxu0 %v322
    %366 = vmatpush.msra.mxu0 %v319
    %367 = vmatpush.msra.mxu0 %v316
    %368 = vmatpush.msra.mxu0 %v313
    %369 = vmatpush.msra.mxu0 %v310
    %370 = vmatpush.msra.mxu0 %v307
    %371 = vmatpush.msra.mxu0 %v304
    %372 = vmatpush.msra.mxu0 %v301
    %373 = vmatmul.f32.gmra.mxu0 %v300
    %v374 = vpop.f32.mrf.mxu0
    %v375 = vadd.f32 %v351, %v374
    %376 = vdwg.mxu0
    %377 = vmatpush.msra.mxu0 %v347
    %378 = vmatpush.msra.mxu0 %v344
    %379 = vmatpush.msra.mxu0 %v341
    %380 = vmatpush.msra.mxu0 %v338
    %381 = vmatpush.msra.mxu0 %v335
    %382 = vmatpush.msra.mxu0 %v332
    %383 = vmatpush.msra.mxu0 %v329
    %384 = vmatpush.msra.mxu0 %v326
    %385 = vmatpush.msra.mxu0 %v323
    %386 = vmatpush.msra.mxu0 %v320
    %387 = vmatpush.msra.mxu0 %v317
    %388 = vmatpush.msra.mxu0 %v314
    %389 = vmatpush.msra.mxu0 %v311
    %390 = vmatpush.msra.mxu0 %v308
    %391 = vmatpush.msra.mxu0 %v305
    %392 = vmatpush.msra.mxu0 %v302
    %393 = vmatmul.f32.gmra.mxu0 %v300
    %v394 = vpop.f32.mrf.mxu0
    %v395 = vadd.f32 %v352, %v394
    %396 = vdwg.mxu0
    %397 = vmatpush.msra.mxu0 %v348
    %398 = vmatpush.msra.mxu0 %v345
    %399 = vmatpush.msra.mxu0 %v342
    %400 = vmatpush.msra.mxu0 %v339
    %401 = vmatpush.msra.mxu0 %v336
    %402 = vmatpush.msra.mxu0 %v333
    %403 = vmatpush.msra.mxu0 %v330
    %404 = vmatpush.msra.mxu0 %v327
    %405 = vmatpush.msra.mxu0 %v324
    %406 = vmatpush.msra.mxu0 %v321
    %407 = vmatpush.msra.mxu0 %v318
    %408 = vmatpush.msra.mxu0 %v315
    %409 = vmatpush.msra.mxu0 %v312
    %410 = vmatpush.msra.mxu0 %v309
    %411 = vmatpush.msra.mxu0 %v306
    %412 = vmatpush.msra.mxu0 %v303
    %413 = vmatmul.f32.gmra.mxu0 %v300
    %v414 = vpop.f32.mrf.mxu0
    %v415 = vadd.f32 %v353, %v414
    %416 = vdwg.mxu0
    %v417 = vld [vmem:[#allocation5] sm:$0xff]
    %v418 = vld [vmem:[#allocation11] sm:$0xff]
    %v419 = vld [vmem:[#allocation11 + $0x8] sm:$0xff]
    %v420 = vld [vmem:[#allocation11 + $0x10] sm:$0xff]
    %v421 = vld [vmem:[#allocation11 + $0x18] sm:$0xff]
    %v422 = vld [vmem:[#allocation11 + $0x20] sm:$0xff]
    %v423 = vld [vmem:[#allocation11 + $0x28] sm:$0xff]
    %v424 = vld [vmem:[#allocation11 + $0x30] sm:$0xff]
    %v425 = vld [vmem:[#allocation11 + $0x38] sm:$0xff]
    %v426 = vld [vmem:[#allocation11 + $0x40] sm:$0xff]
    %v427 = vld [vmem:[#allocation11 + $0x48] sm:$0xff]
    %v428 = vld [vmem:[#allocation11 + $0x50] sm:$0xff]
    %v429 = vld [vmem:[#allocation11 + $0x58] sm:$0xff]
    %v430 = vld [vmem:[#allocation11 + $0x60] sm:$0xff]
    %v431 = vld [vmem:[#allocation11 + $0x68] sm:$0xff]
    %v432 = vld [vmem:[#allocation11 + $0x70] sm:$0xff]
    %v433 = vld [vmem:[#allocation11 + $0x78] sm:$0xff]
    %v434 = vld [vmem:[#allocation11 + $0x80] sm:$0xff]
    %v435 = vld [vmem:[#allocation11 + $0x88] sm:$0xff]
    %v436 = vld [vmem:[#allocation11 + $0x90] sm:$0xff]
    %v437 = vld [vmem:[#allocation11 + $0x98] sm:$0xff]
    %v438 = vld [vmem:[#allocation11 + $0xa0] sm:$0xff]
    %v439 = vld [vmem:[#allocation11 + $0xa8] sm:$0xff]
    %v440 = vld [vmem:[#allocation11 + $0xb0] sm:$0xff]
    %v441 = vld [vmem:[#allocation11 + $0xb8] sm:$0xff]
    %v442 = vld [vmem:[#allocation11 + $0xc0] sm:$0xff]
    %v443 = vld [vmem:[#allocation11 + $0xc8] sm:$0xff]
    %v444 = vld [vmem:[#allocation11 + $0xd0] sm:$0xff]
    %v445 = vld [vmem:[#allocation11 + $0xd8] sm:$0xff]
    %v446 = vld [vmem:[#allocation11 + $0xe0] sm:$0xff]
    %v447 = vld [vmem:[#allocation11 + $0xe8] sm:$0xff]
    %v448 = vld [vmem:[#allocation11 + $0xf0] sm:$0xff]
    %v449 = vld [vmem:[#allocation11 + $0xf8] sm:$0xff]
    %v450 = vld [vmem:[#allocation11 + $0x100] sm:$0xff]
    %v451 = vld [vmem:[#allocation11 + $0x108] sm:$0xff]
    %v452 = vld [vmem:[#allocation11 + $0x110] sm:$0xff]
    %v453 = vld [vmem:[#allocation11 + $0x118] sm:$0xff]
    %v454 = vld [vmem:[#allocation11 + $0x120] sm:$0xff]
    %v455 = vld [vmem:[#allocation11 + $0x128] sm:$0xff]
    %v456 = vld [vmem:[#allocation11 + $0x130] sm:$0xff]
    %v457 = vld [vmem:[#allocation11 + $0x138] sm:$0xff]
    %v458 = vld [vmem:[#allocation11 + $0x140] sm:$0xff]
    %v459 = vld [vmem:[#allocation11 + $0x148] sm:$0xff]
    %v460 = vld [vmem:[#allocation11 + $0x150] sm:$0xff]
    %v461 = vld [vmem:[#allocation11 + $0x158] sm:$0xff]
    %v462 = vld [vmem:[#allocation11 + $0x160] sm:$0xff]
    %v463 = vld [vmem:[#allocation11 + $0x168] sm:$0xff]
    %v464 = vld [vmem:[#allocation11 + $0x170] sm:$0xff]
    %v465 = vld [vmem:[#allocation11 + $0x178] sm:$0xff]
    %v466 = vld [vmem:[%s8] sm:$0x7]
    %v468 = vperm.slane %v466, 0
    %v469 = vperm.slane %v466, 1
    %v470 = vperm.slane %v466, 2
    %474 = vmatpush.msra.mxu0 %v463
    %475 = vmatpush.msra.mxu0 %v460
    %476 = vmatpush.msra.mxu0 %v457
    %477 = vmatpush.msra.mxu0 %v454
    %478 = vmatpush.msra.mxu0 %v451
    %479 = vmatpush.msra.mxu0 %v448
    %480 = vmatpush.msra.mxu0 %v445
    %481 = vmatpush.msra.mxu0 %v442
    %482 = vmatpush.msra.mxu0 %v439
    %483 = vmatpush.msra.mxu0 %v436
    %484 = vmatpush.msra.mxu0 %v433
    %485 = vmatpush.msra.mxu0 %v430
    %486 = vmatpush.msra.mxu0 %v427
    %487 = vmatpush.msra.mxu0 %v424
    %488 = vmatpush.msra.mxu0 %v421
    %489 = vmatpush.msra.mxu0 %v418
    %490 = vmatmul.f32.gmra.mxu0 %v417
    %v491 = vpop.f32.mrf.mxu0
    %v492 = vadd.f32 %v468, %v491
    %493 = vdwg.mxu0
    %494 = vmatpush.msra.mxu0 %v464
    %495 = vmatpush.msra.mxu0 %v461
    %496 = vmatpush.msra.mxu0 %v458
    %497 = vmatpush.msra.mxu0 %v455
    %498 = vmatpush.msra.mxu0 %v452
    %499 = vmatpush.msra.mxu0 %v449
    %500 = vmatpush.msra.mxu0 %v446
    %501 = vmatpush.msra.mxu0 %v443
    %502 = vmatpush.msra.mxu0 %v440
    %503 = vmatpush.msra.mxu0 %v437
    %504 = vmatpush.msra.mxu0 %v434
    %505 = vmatpush.msra.mxu0 %v431
    %506 = vmatpush.msra.mxu0 %v428
    %507 = vmatpush.msra.mxu0 %v425
    %508 = vmatpush.msra.mxu0 %v422
    %509 = vmatpush.msra.mxu0 %v419
    %510 = vmatmul.f32.gmra.mxu0 %v417
    %v511 = vpop.f32.mrf.mxu0
    %v512 = vadd.f32 %v469, %v511
    %513 = vdwg.mxu0
    %514 = vmatpush.msra.mxu0 %v465
    %515 = vmatpush.msra.mxu0 %v462
    %516 = vmatpush.msra.mxu0 %v459
    %517 = vmatpush.msra.mxu0 %v456
    %518 = vmatpush.msra.mxu0 %v453
    %519 = vmatpush.msra.mxu0 %v450
    %520 = vmatpush.msra.mxu0 %v447
    %521 = vmatpush.msra.mxu0 %v444
    %522 = vmatpush.msra.mxu0 %v441
    %523 = vmatpush.msra.mxu0 %v438
    %524 = vmatpush.msra.mxu0 %v435
    %525 = vmatpush.msra.mxu0 %v432
    %526 = vmatpush.msra.mxu0 %v429
    %527 = vmatpush.msra.mxu0 %v426
    %528 = vmatpush.msra.mxu0 %v423
    %529 = vmatpush.msra.mxu0 %v420
    %530 = vmatmul.f32.gmra.mxu0 %v417
    %v531 = vpop.f32.mrf.mxu0
    %v532 = vadd.f32 %v470, %v531
    %533 = vdwg.mxu0
    %v534 = vld [vmem:[#allocation8] sm:$0xff]
    %v535 = vld [vmem:[#allocation8 + $0x8] sm:$0xff]
    %v536 = vld [vmem:[#allocation8 + $0x10] sm:$0xff]
    %v537 = vld [vmem:[#allocation8 + $0x18] sm:$0xff]
    %v538 = vld [vmem:[#allocation8 + $0x20] sm:$0xff]
    %v539 = vld [vmem:[#allocation8 + $0x28] sm:$0xff]
    %v540 = vld [vmem:[#allocation8 + $0x30] sm:$0xff]
    %v541 = vld [vmem:[#allocation8 + $0x38] sm:$0xff]
    %v542 = vld [vmem:[#allocation8 + $0x40] sm:$0xff]
    %v543 = vld [vmem:[#allocation8 + $0x48] sm:$0xff]
    %v544 = vld [vmem:[#allocation8 + $0x50] sm:$0xff]
    %v545 = vld [vmem:[#allocation8 + $0x58] sm:$0xff]
    %v546 = vld [vmem:[#allocation8 + $0x60] sm:$0xff]
    %v547 = vld [vmem:[#allocation8 + $0x68] sm:$0xff]
    %v548 = vld [vmem:[#allocation8 + $0x70] sm:$0xff]
    %v549 = vld [vmem:[#allocation8 + $0x78] sm:$0xff]
    %v550 = vld [vmem:[#allocation8 + $0x80] sm:$0xff]
    %v551 = vld [vmem:[#allocation8 + $0x88] sm:$0xff]
    %v552 = vld [vmem:[#allocation8 + $0x90] sm:$0xff]
    %v553 = vld [vmem:[#allocation8 + $0x98] sm:$0xff]
    %v554 = vld [vmem:[#allocation8 + $0xa0] sm:$0xff]
    %v555 = vld [vmem:[#allocation8 + $0xa8] sm:$0xff]
    %v556 = vld [vmem:[#allocation8 + $0xb0] sm:$0xff]
    %v557 = vld [vmem:[#allocation8 + $0xb8] sm:$0xff]
    %v558 = vld [vmem:[#allocation8 + $0xc0] sm:$0xff]
    %v559 = vld [vmem:[#allocation8 + $0xc8] sm:$0xff]
    %v560 = vld [vmem:[#allocation8 + $0xd0] sm:$0xff]
    %v561 = vld [vmem:[#allocation8 + $0xd8] sm:$0xff]
    %v562 = vld [vmem:[#allocation8 + $0xe0] sm:$0xff]
    %v563 = vld [vmem:[#allocation8 + $0xe8] sm:$0xff]
    %v564 = vld [vmem:[#allocation8 + $0xf0] sm:$0xff]
    %v565 = vld [vmem:[#allocation8 + $0xf8] sm:$0xff]
    %v566 = vld [vmem:[#allocation8 + $0x100] sm:$0xff]
    %v567 = vld [vmem:[#allocation8 + $0x108] sm:$0xff]
    %v568 = vld [vmem:[#allocation8 + $0x110] sm:$0xff]
    %v569 = vld [vmem:[#allocation8 + $0x118] sm:$0xff]
    %v570 = vld [vmem:[#allocation8 + $0x120] sm:$0xff]
    %v571 = vld [vmem:[#allocation8 + $0x128] sm:$0xff]
    %v572 = vld [vmem:[#allocation8 + $0x130] sm:$0xff]
    %v573 = vld [vmem:[#allocation8 + $0x138] sm:$0xff]
    %v574 = vld [vmem:[#allocation8 + $0x140] sm:$0xff]
    %v575 = vld [vmem:[#allocation8 + $0x148] sm:$0xff]
    %v576 = vld [vmem:[#allocation8 + $0x150] sm:$0xff]
    %v577 = vld [vmem:[#allocation8 + $0x158] sm:$0xff]
    %v578 = vld [vmem:[#allocation8 + $0x160] sm:$0xff]
    %v579 = vld [vmem:[#allocation8 + $0x168] sm:$0xff]
    %v580 = vld [vmem:[#allocation8 + $0x170] sm:$0xff]
    %v581 = vld [vmem:[#allocation8 + $0x178] sm:$0xff]
    %v582 = vld [vmem:[#allocation10] sm:$0x7]
    %v583 = vld [vmem:[#allocation13] sm:$0xff]
    %v584 = vld [vmem:[#allocation13 + $0x8] sm:$0xff]
    %v585 = vld [vmem:[#allocation13 + $0x10] sm:$0xff]
    %v586 = vld [vmem:[#allocation13 + $0x18] sm:$0xff]
    %v587 = vld [vmem:[#allocation13 + $0x20] sm:$0xff]
    %v588 = vld [vmem:[#allocation13 + $0x28] sm:$0xff]
    %v589 = vld [vmem:[#allocation13 + $0x30] sm:$0xff]
    %v590 = vld [vmem:[#allocation13 + $0x38] sm:$0xff]
    %v591 = vld [vmem:[#allocation13 + $0x40] sm:$0xff]
    %v592 = vld [vmem:[#allocation13 + $0x48] sm:$0xff]
    %v593 = vld [vmem:[#allocation13 + $0x50] sm:$0xff]
    %v594 = vld [vmem:[#allocation13 + $0x58] sm:$0xff]
    %v595 = vld [vmem:[#allocation13 + $0x60] sm:$0xff]
    %v596 = vld [vmem:[#allocation13 + $0x68] sm:$0xff]
    %v597 = vld [vmem:[#allocation13 + $0x70] sm:$0xff]
    %v598 = vld [vmem:[#allocation13 + $0x78] sm:$0xff]
    %v599 = vld [vmem:[#allocation13 + $0x80] sm:$0xff]
    %v600 = vld [vmem:[#allocation13 + $0x88] sm:$0xff]
    %v601 = vld [vmem:[#allocation13 + $0x90] sm:$0xff]
    %v602 = vld [vmem:[#allocation13 + $0x98] sm:$0xff]
    %v603 = vld [vmem:[#allocation13 + $0xa0] sm:$0xff]
    %v604 = vld [vmem:[#allocation13 + $0xa8] sm:$0xff]
    %v605 = vld [vmem:[#allocation13 + $0xb0] sm:$0xff]
    %v606 = vld [vmem:[#allocation13 + $0xb8] sm:$0xff]
    %v607 = vld [vmem:[#allocation13 + $0xc0] sm:$0xff]
    %v608 = vld [vmem:[#allocation13 + $0xc8] sm:$0xff]
    %v609 = vld [vmem:[#allocation13 + $0xd0] sm:$0xff]
    %v610 = vld [vmem:[#allocation13 + $0xd8] sm:$0xff]
    %v611 = vld [vmem:[#allocation13 + $0xe0] sm:$0xff]
    %v612 = vld [vmem:[#allocation13 + $0xe8] sm:$0xff]
    %v613 = vld [vmem:[#allocation13 + $0xf0] sm:$0xff]
    %v614 = vld [vmem:[#allocation13 + $0xf8] sm:$0xff]
    %v615 = vld [vmem:[#allocation13 + $0x100] sm:$0xff]
    %v616 = vld [vmem:[#allocation13 + $0x108] sm:$0xff]
    %v617 = vld [vmem:[#allocation13 + $0x110] sm:$0xff]
    %v618 = vld [vmem:[#allocation13 + $0x118] sm:$0xff]
    %v619 = vld [vmem:[#allocation13 + $0x120] sm:$0xff]
    %v620 = vld [vmem:[#allocation13 + $0x128] sm:$0xff]
    %v621 = vld [vmem:[#allocation13 + $0x130] sm:$0xff]
    %v622 = vld [vmem:[#allocation13 + $0x138] sm:$0xff]
    %v623 = vld [vmem:[#allocation13 + $0x140] sm:$0xff]
    %v624 = vld [vmem:[#allocation13 + $0x148] sm:$0xff]
    %v625 = vld [vmem:[#allocation13 + $0x150] sm:$0xff]
    %v626 = vld [vmem:[#allocation13 + $0x158] sm:$0xff]
    %v627 = vld [vmem:[#allocation13 + $0x160] sm:$0xff]
    %v628 = vld [vmem:[#allocation13 + $0x168] sm:$0xff]
    %v629 = vld [vmem:[#allocation13 + $0x170] sm:$0xff]
    %v630 = vld [vmem:[#allocation13 + $0x178] sm:$0xff]
    %v631 = vld [vmem:[#allocation14] sm:$0x7]
    %v633 = vperm.slane %v582, 0
    %v634 = vperm.slane %v582, 1
    %v635 = vperm.slane %v582, 2
    %639 = vmatpush.msra.mxu0 %v579
    %640 = vmatpush.msra.mxu0 %v576
    %641 = vmatpush.msra.mxu0 %v573
    %642 = vmatpush.msra.mxu0 %v570
    %643 = vmatpush.msra.mxu0 %v567
    %644 = vmatpush.msra.mxu0 %v564
    %645 = vmatpush.msra.mxu0 %v561
    %646 = vmatpush.msra.mxu0 %v558
    %647 = vmatpush.msra.mxu0 %v555
    %648 = vmatpush.msra.mxu0 %v552
    %649 = vmatpush.msra.mxu0 %v549
    %650 = vmatpush.msra.mxu0 %v546
    %651 = vmatpush.msra.mxu0 %v543
    %652 = vmatpush.msra.mxu0 %v540
    %653 = vmatpush.msra.mxu0 %v537
    %654 = vmatpush.msra.mxu0 %v534
    %655 = vmatmul.f32.gmra.mxu0 0.0
    %v656 = vpop.f32.mrf.mxu0
    %v657 = vadd.f32 %v633, %v656
    %658 = vdwg.mxu0
    %659 = vmatpush.msra.mxu0 %v580
    %660 = vmatpush.msra.mxu0 %v577
    %661 = vmatpush.msra.mxu0 %v574
    %662 = vmatpush.msra.mxu0 %v571
    %663 = vmatpush.msra.mxu0 %v568
    %664 = vmatpush.msra.mxu0 %v565
    %665 = vmatpush.msra.mxu0 %v562
    %666 = vmatpush.msra.mxu0 %v559
    %667 = vmatpush.msra.mxu0 %v556
    %668 = vmatpush.msra.mxu0 %v553
    %669 = vmatpush.msra.mxu0 %v550
    %670 = vmatpush.msra.mxu0 %v547
    %671 = vmatpush.msra.mxu0 %v544
    %672 = vmatpush.msra.mxu0 %v541
    %673 = vmatpush.msra.mxu0 %v538
    %674 = vmatpush.msra.mxu0 %v535
    %675 = vmatmul.f32.gmra.mxu0 0.0
    %v676 = vpop.f32.mrf.mxu0
    %v677 = vadd.f32 %v634, %v676
    %678 = vdwg.mxu0
    %679 = vmatpush.msra.mxu0 %v581
    %680 = vmatpush.msra.mxu0 %v578
    %681 = vmatpush.msra.mxu0 %v575
    %682 = vmatpush.msra.mxu0 %v572
    %683 = vmatpush.msra.mxu0 %v569
    %684 = vmatpush.msra.mxu0 %v566
    %685 = vmatpush.msra.mxu0 %v563
    %686 = vmatpush.msra.mxu0 %v560
    %687 = vmatpush.msra.mxu0 %v557
    %688 = vmatpush.msra.mxu0 %v554
    %689 = vmatpush.msra.mxu0 %v551
    %690 = vmatpush.msra.mxu0 %v548
    %691 = vmatpush.msra.mxu0 %v545
    %692 = vmatpush.msra.mxu0 %v542
    %693 = vmatpush.msra.mxu0 %v539
    %694 = vmatpush.msra.mxu0 %v536
    %695 = vmatmul.f32.gmra.mxu0 0.0
    %v696 = vpop.f32.mrf.mxu0
    %v697 = vadd.f32 %v635, %v696
    %698 = vdwg.mxu0
    %v699 = vadd.f32 %v375, %v657
    %v700 = vxor.u32 %v699, 2147483648
    %v701 = vmul.f32 %v700, 1.442695
    %v702 = vpow.pop %v701
    %v703 = vadd.f32 %v702, 1.0
    %v704 = vrcp.pop %v703
    %v705 = vmul.f32 %v703, %v704
    %v706 = vsub.f32 1.0, %v705
    %v707 = vmul.f32 %v704, %v706
    %v708 = vadd.f32 %v704, %v707
    %vm709 = vweird.f32 %v703
    %vm710 = vweird.f32 %v704
    %vm711 = vmor %vm709, %vm710
    %v712 = vsel %vm711, %v704, %v708
    %v713 = vand.u32 2147483647, %v703
    %vm714 = vcmp.eq.f32.partialorder %v713, 8.507059e+37
    %v715 = vand.u32 %v703, 2147483648
    %v716 = vor.u32 1.1754944e-38, %v715
    %v717 = vsel %vm714, %v716, %v712
    %v718 = vmul.f32 1.0, %v717
    %v719 = vadd.f32 %v395, %v677
    %v720 = vxor.u32 %v719, 2147483648
    %v721 = vmul.f32 %v720, 1.442695
    %v722 = vpow.pop %v721
    %v723 = vadd.f32 %v722, 1.0
    %v724 = vrcp.pop %v723
    %v725 = vmul.f32 %v723, %v724
    %v726 = vsub.f32 1.0, %v725
    %v727 = vmul.f32 %v724, %v726
    %v728 = vadd.f32 %v724, %v727
    %vm729 = vweird.f32 %v723
    %vm730 = vweird.f32 %v724
    %vm731 = vmor %vm729, %vm730
    %v732 = vsel %vm731, %v724, %v728
    %v733 = vand.u32 2147483647, %v723
    %vm734 = vcmp.eq.f32.partialorder %v733, 8.507059e+37
    %v735 = vand.u32 %v723, 2147483648
    %v736 = vor.u32 1.1754944e-38, %v735
    %v737 = vsel %vm734, %v736, %v732
    %v738 = vmul.f32 1.0, %v737
    %v739 = vmul.f32 %v718, %v697
    %v740 = vadd.f32 %v415, %v739
    %v741 = vtanh.pop %v740
    %v742 = vsub.f32 1.0, %v738
    %v743 = vmul.f32 %v742, %v741
    %v744 = vmul.f32 %v738, 0.0
    %v745 = vadd.f32 %v743, %v744
    %v747 = vperm.slane %v631, 0
    %v748 = vperm.slane %v631, 1
    %v749 = vperm.slane %v631, 2
    %753 = vmatpush.msra.mxu0 %v628
    %754 = vmatpush.msra.mxu0 %v625
    %755 = vmatpush.msra.mxu0 %v622
    %756 = vmatpush.msra.mxu0 %v619
    %757 = vmatpush.msra.mxu0 %v616
    %758 = vmatpush.msra.mxu0 %v613
    %759 = vmatpush.msra.mxu0 %v610
    %760 = vmatpush.msra.mxu0 %v607
    %761 = vmatpush.msra.mxu0 %v604
    %762 = vmatpush.msra.mxu0 %v601
    %763 = vmatpush.msra.mxu0 %v598
    %764 = vmatpush.msra.mxu0 %v595
    %765 = vmatpush.msra.mxu0 %v592
    %766 = vmatpush.msra.mxu0 %v589
    %767 = vmatpush.msra.mxu0 %v586
    %768 = vmatpush.msra.mxu0 %v583
    %769 = vmatmul.f32.gmra.mxu0 0.0
    %v770 = vpop.f32.mrf.mxu0
    %v771 = vadd.f32 %v747, %v770
    %772 = vdwg.mxu0
    %773 = vmatpush.msra.mxu0 %v629
    %774 = vmatpush.msra.mxu0 %v626
    %775 = vmatpush.msra.mxu0 %v623
    %776 = vmatpush.msra.mxu0 %v620
    %777 = vmatpush.msra.mxu0 %v617
    %778 = vmatpush.msra.mxu0 %v614
    %779 = vmatpush.msra.mxu0 %v611
    %780 = vmatpush.msra.mxu0 %v608
    %781 = vmatpush.msra.mxu0 %v605
    %782 = vmatpush.msra.mxu0 %v602
    %783 = vmatpush.msra.mxu0 %v599
    %784 = vmatpush.msra.mxu0 %v596
    %785 = vmatpush.msra.mxu0 %v593
    %786 = vmatpush.msra.mxu0 %v590
    %787 = vmatpush.msra.mxu0 %v587
    %788 = vmatpush.msra.mxu0 %v584
    %789 = vmatmul.f32.gmra.mxu0 0.0
    %v790 = vpop.f32.mrf.mxu0
    %v791 = vadd.f32 %v748, %v790
    %792 = vdwg.mxu0
    %793 = vmatpush.msra.mxu0 %v630
    %794 = vmatpush.msra.mxu0 %v627
    %795 = vmatpush.msra.mxu0 %v624
    %796 = vmatpush.msra.mxu0 %v621
    %797 = vmatpush.msra.mxu0 %v618
    %798 = vmatpush.msra.mxu0 %v615
    %799 = vmatpush.msra.mxu0 %v612
    %800 = vmatpush.msra.mxu0 %v609
    %801 = vmatpush.msra.mxu0 %v606
    %802 = vmatpush.msra.mxu0 %v603
    %803 = vmatpush.msra.mxu0 %v600
    %804 = vmatpush.msra.mxu0 %v597
    %805 = vmatpush.msra.mxu0 %v594
    %806 = vmatpush.msra.mxu0 %v591
    %807 = vmatpush.msra.mxu0 %v588
    %808 = vmatpush.msra.mxu0 %v585
    %809 = vmatmul.f32.gmra.mxu0 0.0
    %v810 = vpop.f32.mrf.mxu0
    %v811 = vadd.f32 %v749, %v810
    %812 = vdwg.mxu0
    %v813 = vadd.f32 %v492, %v771
    %v814 = vxor.u32 %v813, 2147483648
    %v815 = vmul.f32 %v814, 1.442695
    %v816 = vpow.pop %v815
    %v817 = vadd.f32 %v816, 1.0
    %v818 = vrcp.pop %v817
    %v819 = vmul.f32 %v817, %v818
    %v820 = vsub.f32 1.0, %v819
    %v821 = vmul.f32 %v818, %v820
    %v822 = vadd.f32 %v818, %v821
    %vm823 = vweird.f32 %v817
    %vm824 = vweird.f32 %v818
    %vm825 = vmor %vm823, %vm824
    %v826 = vsel %vm825, %v818, %v822
    %v827 = vand.u32 2147483647, %v817
    %vm828 = vcmp.eq.f32.partialorder %v827, 8.507059e+37
    %v829 = vand.u32 %v817, 2147483648
    %v830 = vor.u32 1.1754944e-38, %v829
    %v831 = vsel %vm828, %v830, %v826
    %v832 = vmul.f32 1.0, %v831
    %v833 = vadd.f32 %v512, %v791
    %v834 = vxor.u32 %v833, 2147483648
    %v835 = vmul.f32 %v834, 1.442695
    %v836 = vpow.pop %v835
    %v837 = vadd.f32 %v836, 1.0
    %v838 = vrcp.pop %v837
    %v839 = vmul.f32 %v837, %v838
    %v840 = vsub.f32 1.0, %v839
    %v841 = vmul.f32 %v838, %v840
    %v842 = vadd.f32 %v838, %v841
    %vm843 = vweird.f32 %v837
    %vm844 = vweird.f32 %v838
    %vm845 = vmor %vm843, %vm844
    %v846 = vsel %vm845, %v838, %v842
    %v847 = vand.u32 2147483647, %v837
    %vm848 = vcmp.eq.f32.partialorder %v847, 8.507059e+37
    %v849 = vand.u32 %v837, 2147483648
    %v850 = vor.u32 1.1754944e-38, %v849
    %v851 = vsel %vm848, %v850, %v846
    %v852 = vmul.f32 1.0, %v851
    %v853 = vmul.f32 %v832, %v811
    %v854 = vadd.f32 %v532, %v853
    %v855 = vtanh.pop %v854
    %v856 = vsub.f32 1.0, %v852
    %v857 = vmul.f32 %v856, %v855
    %v858 = vmul.f32 %v852, 0.0
    %v859 = vadd.f32 %v857, %v858
    %860 = vmatpush.msra.mxu0 %v579
    %861 = vmatpush.msra.mxu0 %v576
    %862 = vmatpush.msra.mxu0 %v573
    %863 = vmatpush.msra.mxu0 %v570
    %864 = vmatpush.msra.mxu0 %v567
    %865 = vmatpush.msra.mxu0 %v564
    %866 = vmatpush.msra.mxu0 %v561
    %867 = vmatpush.msra.mxu0 %v558
    %868 = vmatpush.msra.mxu0 %v555
    %869 = vmatpush.msra.mxu0 %v552
    %870 = vmatpush.msra.mxu0 %v549
    %871 = vmatpush.msra.mxu0 %v546
    %872 = vmatpush.msra.mxu0 %v543
    %873 = vmatpush.msra.mxu0 %v540
    %874 = vmatpush.msra.mxu0 %v537
    %875 = vmatpush.msra.mxu0 %v534
    %876 = vmatmul.f32.gmra.mxu0 %v745
    %v877 = vpop.f32.mrf.mxu0
    %v878 = vadd.f32 %v633, %v877
    %879 = vdwg.mxu0
    %880 = vmatpush.msra.mxu0 %v580
    %881 = vmatpush.msra.mxu0 %v577
    %882 = vmatpush.msra.mxu0 %v574
    %883 = vmatpush.msra.mxu0 %v571
    %884 = vmatpush.msra.mxu0 %v568
    %885 = vmatpush.msra.mxu0 %v565
    %886 = vmatpush.msra.mxu0 %v562
    %887 = vmatpush.msra.mxu0 %v559
    %888 = vmatpush.msra.mxu0 %v556
    %889 = vmatpush.msra.mxu0 %v553
    %890 = vmatpush.msra.mxu0 %v550
    %891 = vmatpush.msra.mxu0 %v547
    %892 = vmatpush.msra.mxu0 %v544
    %893 = vmatpush.msra.mxu0 %v541
    %894 = vmatpush.msra.mxu0 %v538
    %895 = vmatpush.msra.mxu0 %v535
    %896 = vmatmul.f32.gmra.mxu0 %v745
    %v897 = vpop.f32.mrf.mxu0
    %v898 = vadd.f32 %v634, %v897
    %899 = vdwg.mxu0
    %900 = vmatpush.msra.mxu0 %v581
    %901 = vmatpush.msra.mxu0 %v578
    %902 = vmatpush.msra.mxu0 %v575
    %903 = vmatpush.msra.mxu0 %v572
    %904 = vmatpush.msra.mxu0 %v569
    %905 = vmatpush.msra.mxu0 %v566
    %906 = vmatpush.msra.mxu0 %v563
    %907 = vmatpush.msra.mxu0 %v560
    %908 = vmatpush.msra.mxu0 %v557
    %909 = vmatpush.msra.mxu0 %v554
    %910 = vmatpush.msra.mxu0 %v551
    %911 = vmatpush.msra.mxu0 %v548
    %912 = vmatpush.msra.mxu0 %v545
    %913 = vmatpush.msra.mxu0 %v542
    %914 = vmatpush.msra.mxu0 %v539
    %915 = vmatpush.msra.mxu0 %v536
    %916 = vmatmul.f32.gmra.mxu0 %v745
    %v917 = vpop.f32.mrf.mxu0
    %v918 = vadd.f32 %v635, %v917
    %919 = vdwg.mxu0
    %v921 = vrot.slane %v878, 7
    %v923 = vadd.f32 %v375, %v921
    %v924 = vxor.u32 %v923, 2147483648
    %v925 = vmul.f32 %v924, 1.442695
    %v926 = vpow.pop %v925
    %v927 = vadd.f32 %v926, 1.0
    %v928 = vrcp.pop %v927
    %v929 = vmul.f32 %v927, %v928
    %v930 = vsub.f32 1.0, %v929
    %v931 = vmul.f32 %v928, %v930
    %v932 = vadd.f32 %v928, %v931
    %vm933 = vweird.f32 %v927
    %vm934 = vweird.f32 %v928
    %vm935 = vmor %vm933, %vm934
    %v936 = vsel %vm935, %v928, %v932
    %v937 = vand.u32 2147483647, %v927
    %vm938 = vcmp.eq.f32.partialorder %v937, 8.507059e+37
    %v939 = vand.u32 %v927, 2147483648
    %v940 = vor.u32 1.1754944e-38, %v939
    %v941 = vsel %vm938, %v940, %v936
    %v942 = vmul.f32 1.0, %v941
    %v944 = vrot.slane %v898, 7
    %v946 = vadd.f32 %v395, %v944
    %v947 = vxor.u32 %v946, 2147483648
    %v948 = vmul.f32 %v947, 1.442695
    %v949 = vpow.pop %v948
    %v950 = vadd.f32 %v949, 1.0
    %v951 = vrcp.pop %v950
    %v952 = vmul.f32 %v950, %v951
    %v953 = vsub.f32 1.0, %v952
    %v954 = vmul.f32 %v951, %v953
    %v955 = vadd.f32 %v951, %v954
    %vm956 = vweird.f32 %v950
    %vm957 = vweird.f32 %v951
    %vm958 = vmor %vm956, %vm957
    %v959 = vsel %vm958, %v951, %v955
    %v960 = vand.u32 2147483647, %v950
    %vm961 = vcmp.eq.f32.partialorder %v960, 8.507059e+37
    %v962 = vand.u32 %v950, 2147483648
    %v963 = vor.u32 1.1754944e-38, %v962
    %v964 = vsel %vm961, %v963, %v959
    %v965 = vmul.f32 1.0, %v964
    %v967 = vrot.slane %v918, 7
    %v969 = vmul.f32 %v942, %v967
    %v970 = vadd.f32 %v415, %v969
    %v971 = vtanh.pop %v970
    %v972 = vsub.f32 1.0, %v965
    %v973 = vmul.f32 %v972, %v971
    %v975 = vrot.slane %v745, 7
    %v977 = vmul.f32 %v965, %v975
    %v978 = vadd.f32 %v973, %v977
    %979 = vmatpush.msra.mxu0 %v628
    %980 = vmatpush.msra.mxu0 %v625
    %981 = vmatpush.msra.mxu0 %v622
    %982 = vmatpush.msra.mxu0 %v619
    %983 = vmatpush.msra.mxu0 %v616
    %984 = vmatpush.msra.mxu0 %v613
    %985 = vmatpush.msra.mxu0 %v610
    %986 = vmatpush.msra.mxu0 %v607
    %987 = vmatpush.msra.mxu0 %v604
    %988 = vmatpush.msra.mxu0 %v601
    %989 = vmatpush.msra.mxu0 %v598
    %990 = vmatpush.msra.mxu0 %v595
    %991 = vmatpush.msra.mxu0 %v592
    %992 = vmatpush.msra.mxu0 %v589
    %993 = vmatpush.msra.mxu0 %v586
    %994 = vmatpush.msra.mxu0 %v583
    %995 = vmatmul.f32.gmra.mxu0 %v859
    %v996 = vpop.f32.mrf.mxu0
    %v997 = vadd.f32 %v747, %v996
    %998 = vdwg.mxu0
    %999 = vmatpush.msra.mxu0 %v629
    %1000 = vmatpush.msra.mxu0 %v626
    %1001 = vmatpush.msra.mxu0 %v623
    %1002 = vmatpush.msra.mxu0 %v620
    %1003 = vmatpush.msra.mxu0 %v617
    %1004 = vmatpush.msra.mxu0 %v614
    %1005 = vmatpush.msra.mxu0 %v611
    %1006 = vmatpush.msra.mxu0 %v608
    %1007 = vmatpush.msra.mxu0 %v605
    %1008 = vmatpush.msra.mxu0 %v602
    %1009 = vmatpush.msra.mxu0 %v599
    %1010 = vmatpush.msra.mxu0 %v596
    %1011 = vmatpush.msra.mxu0 %v593
    %1012 = vmatpush.msra.mxu0 %v590
    %1013 = vmatpush.msra.mxu0 %v587
    %1014 = vmatpush.msra.mxu0 %v584
    %1015 = vmatmul.f32.gmra.mxu0 %v859
    %v1016 = vpop.f32.mrf.mxu0
    %v1017 = vadd.f32 %v748, %v1016
    %1018 = vdwg.mxu0
    %1019 = vmatpush.msra.mxu0 %v630
    %1020 = vmatpush.msra.mxu0 %v627
    %1021 = vmatpush.msra.mxu0 %v624
    %1022 = vmatpush.msra.mxu0 %v621
    %1023 = vmatpush.msra.mxu0 %v618
    %1024 = vmatpush.msra.mxu0 %v615
    %1025 = vmatpush.msra.mxu0 %v612
    %1026 = vmatpush.msra.mxu0 %v609
    %1027 = vmatpush.msra.mxu0 %v606
    %1028 = vmatpush.msra.mxu0 %v603
    %1029 = vmatpush.msra.mxu0 %v600
    %1030 = vmatpush.msra.mxu0 %v597
    %1031 = vmatpush.msra.mxu0 %v594
    %1032 = vmatpush.msra.mxu0 %v591
    %1033 = vmatpush.msra.mxu0 %v588
    %1034 = vmatpush.msra.mxu0 %v585
    %1035 = vmatmul.f32.gmra.mxu0 %v859
    %v1036 = vpop.f32.mrf.mxu0
    %v1037 = vadd.f32 %v749, %v1036
    %1038 = vdwg.mxu0
    %v1040 = vrot.slane %v997, 7
    %v1042 = vadd.f32 %v492, %v1040
    %v1043 = vxor.u32 %v1042, 2147483648
    %v1044 = vmul.f32 %v1043, 1.442695
    %v1045 = vpow.pop %v1044
    %v1046 = vadd.f32 %v1045, 1.0
    %v1047 = vrcp.pop %v1046
    %v1048 = vmul.f32 %v1046, %v1047
    %v1049 = vsub.f32 1.0, %v1048
    %v1050 = vmul.f32 %v1047, %v1049
    %v1051 = vadd.f32 %v1047, %v1050
    %vm1052 = vweird.f32 %v1046
    %vm1053 = vweird.f32 %v1047
    %vm1054 = vmor %vm1052, %vm1053
    %v1055 = vsel %vm1054, %v1047, %v1051
    %v1056 = vand.u32 2147483647, %v1046
    %vm1057 = vcmp.eq.f32.partialorder %v1056, 8.507059e+37
    %v1058 = vand.u32 %v1046, 2147483648
    %v1059 = vor.u32 1.1754944e-38, %v1058
    %v1060 = vsel %vm1057, %v1059, %v1055
    %v1061 = vmul.f32 1.0, %v1060
    %v1063 = vrot.slane %v1017, 7
    %v1065 = vadd.f32 %v512, %v1063
    %v1066 = vxor.u32 %v1065, 2147483648
    %v1067 = vmul.f32 %v1066, 1.442695
    %v1068 = vpow.pop %v1067
    %v1069 = vadd.f32 %v1068, 1.0
    %v1070 = vrcp.pop %v1069
    %v1071 = vmul.f32 %v1069, %v1070
    %v1072 = vsub.f32 1.0, %v1071
    %v1073 = vmul.f32 %v1070, %v1072
    %v1074 = vadd.f32 %v1070, %v1073
    %vm1075 = vweird.f32 %v1069
    %vm1076 = vweird.f32 %v1070
    %vm1077 = vmor %vm1075, %vm1076
    %v1078 = vsel %vm1077, %v1070, %v1074
    %v1079 = vand.u32 2147483647, %v1069
    %vm1080 = vcmp.eq.f32.partialorder %v1079, 8.507059e+37
    %v1081 = vand.u32 %v1069, 2147483648
    %v1082 = vor.u32 1.1754944e-38, %v1081
    %v1083 = vsel %vm1080, %v1082, %v1078
    %v1084 = vmul.f32 1.0, %v1083
    %v1086 = vrot.slane %v1037, 7
    %v1088 = vmul.f32 %v1061, %v1086
    %v1089 = vadd.f32 %v532, %v1088
    %v1090 = vtanh.pop %v1089
    %v1091 = vsub.f32 1.0, %v1084
    %v1092 = vmul.f32 %v1091, %v1090
    %v1094 = vrot.slane %v859, 7
    %v1096 = vmul.f32 %v1084, %v1094
    %v1097 = vadd.f32 %v1092, %v1096
    %v1099 = vrot.slane %v978, 1
    %1101 = vmatpush.msra.mxu0 %v579
    %1102 = vmatpush.msra.mxu0 %v576
    %1103 = vmatpush.msra.mxu0 %v573
    %1104 = vmatpush.msra.mxu0 %v570
    %1105 = vmatpush.msra.mxu0 %v567
    %1106 = vmatpush.msra.mxu0 %v564
    %1107 = vmatpush.msra.mxu0 %v561
    %1108 = vmatpush.msra.mxu0 %v558
    %1109 = vmatpush.msra.mxu0 %v555
    %1110 = vmatpush.msra.mxu0 %v552
    %1111 = vmatpush.msra.mxu0 %v549
    %1112 = vmatpush.msra.mxu0 %v546
    %1113 = vmatpush.msra.mxu0 %v543
    %1114 = vmatpush.msra.mxu0 %v540
    %1115 = vmatpush.msra.mxu0 %v537
    %1116 = vmatpush.msra.mxu0 %v534
    %1117 = vmatmul.f32.gmra.mxu0 %v1099
    %v1118 = vpop.f32.mrf.mxu0
    %v1119 = vadd.f32 %v633, %v1118
    %1120 = vdwg.mxu0
    %1121 = vmatpush.msra.mxu0 %v580
    %1122 = vmatpush.msra.mxu0 %v577
    %1123 = vmatpush.msra.mxu0 %v574
    %1124 = vmatpush.msra.mxu0 %v571
    %1125 = vmatpush.msra.mxu0 %v568
    %1126 = vmatpush.msra.mxu0 %v565
    %1127 = vmatpush.msra.mxu0 %v562
    %1128 = vmatpush.msra.mxu0 %v559
    %1129 = vmatpush.msra.mxu0 %v556
    %1130 = vmatpush.msra.mxu0 %v553
    %1131 = vmatpush.msra.mxu0 %v550
    %1132 = vmatpush.msra.mxu0 %v547
    %1133 = vmatpush.msra.mxu0 %v544
    %1134 = vmatpush.msra.mxu0 %v541
    %1135 = vmatpush.msra.mxu0 %v538
    %1136 = vmatpush.msra.mxu0 %v535
    %1137 = vmatmul.f32.gmra.mxu0 %v1099
    %v1138 = vpop.f32.mrf.mxu0
    %v1139 = vadd.f32 %v634, %v1138
    %1140 = vdwg.mxu0
    %1141 = vmatpush.msra.mxu0 %v581
    %1142 = vmatpush.msra.mxu0 %v578
    %1143 = vmatpush.msra.mxu0 %v575
    %1144 = vmatpush.msra.mxu0 %v572
    %1145 = vmatpush.msra.mxu0 %v569
    %1146 = vmatpush.msra.mxu0 %v566
    %1147 = vmatpush.msra.mxu0 %v563
    %1148 = vmatpush.msra.mxu0 %v560
    %1149 = vmatpush.msra.mxu0 %v557
    %1150 = vmatpush.msra.mxu0 %v554
    %1151 = vmatpush.msra.mxu0 %v551
    %1152 = vmatpush.msra.mxu0 %v548
    %1153 = vmatpush.msra.mxu0 %v545
    %1154 = vmatpush.msra.mxu0 %v542
    %1155 = vmatpush.msra.mxu0 %v539
    %1156 = vmatpush.msra.mxu0 %v536
    %1157 = vmatmul.f32.gmra.mxu0 %v1099
    %v1158 = vpop.f32.mrf.mxu0
    %v1159 = vadd.f32 %v635, %v1158
    %1160 = vdwg.mxu0
    %v1162 = vrot.slane %v1119, 6
    %v1164 = vadd.f32 %v375, %v1162
    %v1165 = vxor.u32 %v1164, 2147483648
    %v1166 = vmul.f32 %v1165, 1.442695
    %v1167 = vpow.pop %v1166
    %v1168 = vadd.f32 %v1167, 1.0
    %v1169 = vrcp.pop %v1168
    %v1170 = vmul.f32 %v1168, %v1169
    %v1171 = vsub.f32 1.0, %v1170
    %v1172 = vmul.f32 %v1169, %v1171
    %v1173 = vadd.f32 %v1169, %v1172
    %vm1174 = vweird.f32 %v1168
    %vm1175 = vweird.f32 %v1169
    %vm1176 = vmor %vm1174, %vm1175
    %v1177 = vsel %vm1176, %v1169, %v1173
    %v1178 = vand.u32 2147483647, %v1168
    %vm1179 = vcmp.eq.f32.partialorder %v1178, 8.507059e+37
    %v1180 = vand.u32 %v1168, 2147483648
    %v1181 = vor.u32 1.1754944e-38, %v1180
    %v1182 = vsel %vm1179, %v1181, %v1177
    %v1183 = vmul.f32 1.0, %v1182
    %v1185 = vrot.slane %v1139, 6
    %v1187 = vadd.f32 %v395, %v1185
    %v1188 = vxor.u32 %v1187, 2147483648
    %v1189 = vmul.f32 %v1188, 1.442695
    %v1190 = vpow.pop %v1189
    %v1191 = vadd.f32 %v1190, 1.0
    %v1192 = vrcp.pop %v1191
    %v1193 = vmul.f32 %v1191, %v1192
    %v1194 = vsub.f32 1.0, %v1193
    %v1195 = vmul.f32 %v1192, %v1194
    %v1196 = vadd.f32 %v1192, %v1195
    %vm1197 = vweird.f32 %v1191
    %vm1198 = vweird.f32 %v1192
    %vm1199 = vmor %vm1197, %vm1198
    %v1200 = vsel %vm1199, %v1192, %v1196
    %v1201 = vand.u32 2147483647, %v1191
    %vm1202 = vcmp.eq.f32.partialorder %v1201, 8.507059e+37
    %v1203 = vand.u32 %v1191, 2147483648
    %v1204 = vor.u32 1.1754944e-38, %v1203
    %v1205 = vsel %vm1202, %v1204, %v1200
    %v1206 = vmul.f32 1.0, %v1205
    %v1208 = vrot.slane %v1159, 6
    %v1210 = vmul.f32 %v1183, %v1208
    %v1211 = vadd.f32 %v415, %v1210
    %v1212 = vtanh.pop %v1211
    %v1213 = vsub.f32 1.0, %v1206
    %v1214 = vmul.f32 %v1213, %v1212
    %v1215 = vrot.slane %v978, 7
    %v1217 = vmul.f32 %v1206, %v1215
    %v1218 = vadd.f32 %v1214, %v1217
    %v1220 = vrot.slane %v1097, 1
    %1222 = vmatpush.msra.mxu0 %v628
    %1223 = vmatpush.msra.mxu0 %v625
    %1224 = vmatpush.msra.mxu0 %v622
    %1225 = vmatpush.msra.mxu0 %v619
    %1226 = vmatpush.msra.mxu0 %v616
    %1227 = vmatpush.msra.mxu0 %v613
    %1228 = vmatpush.msra.mxu0 %v610
    %1229 = vmatpush.msra.mxu0 %v607
    %1230 = vmatpush.msra.mxu0 %v604
    %1231 = vmatpush.msra.mxu0 %v601
    %1232 = vmatpush.msra.mxu0 %v598
    %1233 = vmatpush.msra.mxu0 %v595
    %1234 = vmatpush.msra.mxu0 %v592
    %1235 = vmatpush.msra.mxu0 %v589
    %1236 = vmatpush.msra.mxu0 %v586
    %1237 = vmatpush.msra.mxu0 %v583
    %1238 = vmatmul.f32.gmra.mxu0 %v1220
    %v1239 = vpop.f32.mrf.mxu0
    %v1240 = vadd.f32 %v747, %v1239
    %1241 = vdwg.mxu0
    %1242 = vmatpush.msra.mxu0 %v629
    %1243 = vmatpush.msra.mxu0 %v626
    %1244 = vmatpush.msra.mxu0 %v623
    %1245 = vmatpush.msra.mxu0 %v620
    %1246 = vmatpush.msra.mxu0 %v617
    %1247 = vmatpush.msra.mxu0 %v614
    %1248 = vmatpush.msra.mxu0 %v611
    %1249 = vmatpush.msra.mxu0 %v608
    %1250 = vmatpush.msra.mxu0 %v605
    %1251 = vmatpush.msra.mxu0 %v602
    %1252 = vmatpush.msra.mxu0 %v599
    %1253 = vmatpush.msra.mxu0 %v596
    %1254 = vmatpush.msra.mxu0 %v593
    %1255 = vmatpush.msra.mxu0 %v590
    %1256 = vmatpush.msra.mxu0 %v587
    %1257 = vmatpush.msra.mxu0 %v584
    %1258 = vmatmul.f32.gmra.mxu0 %v1220
    %v1259 = vpop.f32.mrf.mxu0
    %v1260 = vadd.f32 %v748, %v1259
    %1261 = vdwg.mxu0
    %1262 = vmatpush.msra.mxu0 %v630
    %1263 = vmatpush.msra.mxu0 %v627
    %1264 = vmatpush.msra.mxu0 %v624
    %1265 = vmatpush.msra.mxu0 %v621
    %1266 = vmatpush.msra.mxu0 %v618
    %1267 = vmatpush.msra.mxu0 %v615
    %1268 = vmatpush.msra.mxu0 %v612
    %1269 = vmatpush.msra.mxu0 %v609
    %1270 = vmatpush.msra.mxu0 %v606
    %1271 = vmatpush.msra.mxu0 %v603
    %1272 = vmatpush.msra.mxu0 %v600
    %1273 = vmatpush.msra.mxu0 %v597
    %1274 = vmatpush.msra.mxu0 %v594
    %1275 = vmatpush.msra.mxu0 %v591
    %1276 = vmatpush.msra.mxu0 %v588
    %1277 = vmatpush.msra.mxu0 %v585
    %1278 = vmatmul.f32.gmra.mxu0 %v1220
    %v1279 = vpop.f32.mrf.mxu0
    %v1280 = vadd.f32 %v749, %v1279
    %1281 = vdwg.mxu0
    %v1283 = vrot.slane %v1240, 6
    %v1285 = vadd.f32 %v492, %v1283
    %v1286 = vxor.u32 %v1285, 2147483648
    %v1287 = vmul.f32 %v1286, 1.442695
    %v1288 = vpow.pop %v1287
    %v1289 = vadd.f32 %v1288, 1.0
    %v1290 = vrcp.pop %v1289
    %v1291 = vmul.f32 %v1289, %v1290
    %v1292 = vsub.f32 1.0, %v1291
    %v1293 = vmul.f32 %v1290, %v1292
    %v1294 = vadd.f32 %v1290, %v1293
    %vm1295 = vweird.f32 %v1289
    %vm1296 = vweird.f32 %v1290
    %vm1297 = vmor %vm1295, %vm1296
    %v1298 = vsel %vm1297, %v1290, %v1294
    %v1299 = vand.u32 2147483647, %v1289
    %vm1300 = vcmp.eq.f32.partialorder %v1299, 8.507059e+37
    %v1301 = vand.u32 %v1289, 2147483648
    %v1302 = vor.u32 1.1754944e-38, %v1301
    %v1303 = vsel %vm1300, %v1302, %v1298
    %v1304 = vmul.f32 1.0, %v1303
    %v1306 = vrot.slane %v1260, 6
    %v1308 = vadd.f32 %v512, %v1306
    %v1309 = vxor.u32 %v1308, 2147483648
    %v1310 = vmul.f32 %v1309, 1.442695
    %v1311 = vpow.pop %v1310
    %v1312 = vadd.f32 %v1311, 1.0
    %v1313 = vrcp.pop %v1312
    %v1314 = vmul.f32 %v1312, %v1313
    %v1315 = vsub.f32 1.0, %v1314
    %v1316 = vmul.f32 %v1313, %v1315
    %v1317 = vadd.f32 %v1313, %v1316
    %vm1318 = vweird.f32 %v1312
    %vm1319 = vweird.f32 %v1313
    %vm1320 = vmor %vm1318, %vm1319
    %v1321 = vsel %vm1320, %v1313, %v1317
    %v1322 = vand.u32 2147483647, %v1312
    %vm1323 = vcmp.eq.f32.partialorder %v1322, 8.507059e+37
    %v1324 = vand.u32 %v1312, 2147483648
    %v1325 = vor.u32 1.1754944e-38, %v1324
    %v1326 = vsel %vm1323, %v1325, %v1321
    %v1327 = vmul.f32 1.0, %v1326
    %v1329 = vrot.slane %v1280, 6
    %v1331 = vmul.f32 %v1304, %v1329
    %v1332 = vadd.f32 %v532, %v1331
    %v1333 = vtanh.pop %v1332
    %v1334 = vsub.f32 1.0, %v1327
    %v1335 = vmul.f32 %v1334, %v1333
    %v1336 = vrot.slane %v1097, 7
    %v1338 = vmul.f32 %v1327, %v1336
    %v1339 = vadd.f32 %v1335, %v1338
    %v1341 = vrot.slane %v1218, 2
    %1343 = vmatpush.msra.mxu0 %v579
    %1344 = vmatpush.msra.mxu0 %v576
    %1345 = vmatpush.msra.mxu0 %v573
    %1346 = vmatpush.msra.mxu0 %v570
    %1347 = vmatpush.msra.mxu0 %v567
    %1348 = vmatpush.msra.mxu0 %v564
    %1349 = vmatpush.msra.mxu0 %v561
    %1350 = vmatpush.msra.mxu0 %v558
    %1351 = vmatpush.msra.mxu0 %v555
    %1352 = vmatpush.msra.mxu0 %v552
    %1353 = vmatpush.msra.mxu0 %v549
    %1354 = vmatpush.msra.mxu0 %v546
    %1355 = vmatpush.msra.mxu0 %v543
    %1356 = vmatpush.msra.mxu0 %v540
    %1357 = vmatpush.msra.mxu0 %v537
    %1358 = vmatpush.msra.mxu0 %v534
    %1359 = vmatmul.f32.gmra.mxu0 %v1341
    %v1360 = vpop.f32.mrf.mxu0
    %v1361 = vadd.f32 %v633, %v1360
    %1362 = vdwg.mxu0
    %1363 = vmatpush.msra.mxu0 %v580
    %1364 = vmatpush.msra.mxu0 %v577
    %1365 = vmatpush.msra.mxu0 %v574
    %1366 = vmatpush.msra.mxu0 %v571
    %1367 = vmatpush.msra.mxu0 %v568
    %1368 = vmatpush.msra.mxu0 %v565
    %1369 = vmatpush.msra.mxu0 %v562
    %1370 = vmatpush.msra.mxu0 %v559
    %1371 = vmatpush.msra.mxu0 %v556
    %1372 = vmatpush.msra.mxu0 %v553
    %1373 = vmatpush.msra.mxu0 %v550
    %1374 = vmatpush.msra.mxu0 %v547
    %1375 = vmatpush.msra.mxu0 %v544
    %1376 = vmatpush.msra.mxu0 %v541
    %1377 = vmatpush.msra.mxu0 %v538
    %1378 = vmatpush.msra.mxu0 %v535
    %1379 = vmatmul.f32.gmra.mxu0 %v1341
    %v1380 = vpop.f32.mrf.mxu0
    %v1381 = vadd.f32 %v634, %v1380
    %1382 = vdwg.mxu0
    %1383 = vmatpush.msra.mxu0 %v581
    %1384 = vmatpush.msra.mxu0 %v578
    %1385 = vmatpush.msra.mxu0 %v575
    %1386 = vmatpush.msra.mxu0 %v572
    %1387 = vmatpush.msra.mxu0 %v569
    %1388 = vmatpush.msra.mxu0 %v566
    %1389 = vmatpush.msra.mxu0 %v563
    %1390 = vmatpush.msra.mxu0 %v560
    %1391 = vmatpush.msra.mxu0 %v557
    %1392 = vmatpush.msra.mxu0 %v554
    %1393 = vmatpush.msra.mxu0 %v551
    %1394 = vmatpush.msra.mxu0 %v548
    %1395 = vmatpush.msra.mxu0 %v545
    %1396 = vmatpush.msra.mxu0 %v542
    %1397 = vmatpush.msra.mxu0 %v539
    %1398 = vmatpush.msra.mxu0 %v536
    %1399 = vmatmul.f32.gmra.mxu0 %v1341
    %v1400 = vpop.f32.mrf.mxu0
    %v1401 = vadd.f32 %v635, %v1400
    %1402 = vdwg.mxu0
    %v1404 = vrot.slane %v1361, 5
    %v1406 = vadd.f32 %v375, %v1404
    %v1407 = vxor.u32 %v1406, 2147483648
    %v1408 = vmul.f32 %v1407, 1.442695
    %v1409 = vpow.pop %v1408
    %v1410 = vadd.f32 %v1409, 1.0
    %v1411 = vrcp.pop %v1410
    %v1412 = vmul.f32 %v1410, %v1411
    %v1413 = vsub.f32 1.0, %v1412
    %v1414 = vmul.f32 %v1411, %v1413
    %v1415 = vadd.f32 %v1411, %v1414
    %vm1416 = vweird.f32 %v1410
    %vm1417 = vweird.f32 %v1411
    %vm1418 = vmor %vm1416, %vm1417
    %v1419 = vsel %vm1418, %v1411, %v1415
    %v1420 = vand.u32 2147483647, %v1410
    %vm1421 = vcmp.eq.f32.partialorder %v1420, 8.507059e+37
    %v1422 = vand.u32 %v1410, 2147483648
    %v1423 = vor.u32 1.1754944e-38, %v1422
    %v1424 = vsel %vm1421, %v1423, %v1419
    %v1425 = vmul.f32 1.0, %v1424
    %v1427 = vrot.slane %v1381, 5
    %v1429 = vadd.f32 %v395, %v1427
    %v1430 = vxor.u32 %v1429, 2147483648
    %v1431 = vmul.f32 %v1430, 1.442695
    %v1432 = vpow.pop %v1431
    %v1433 = vadd.f32 %v1432, 1.0
    %v1434 = vrcp.pop %v1433
    %v1435 = vmul.f32 %v1433, %v1434
    %v1436 = vsub.f32 1.0, %v1435
    %v1437 = vmul.f32 %v1434, %v1436
    %v1438 = vadd.f32 %v1434, %v1437
    %vm1439 = vweird.f32 %v1433
    %vm1440 = vweird.f32 %v1434
    %vm1441 = vmor %vm1439, %vm1440
    %v1442 = vsel %vm1441, %v1434, %v1438
    %v1443 = vand.u32 2147483647, %v1433
    %vm1444 = vcmp.eq.f32.partialorder %v1443, 8.507059e+37
    %v1445 = vand.u32 %v1433, 2147483648
    %v1446 = vor.u32 1.1754944e-38, %v1445
    %v1447 = vsel %vm1444, %v1446, %v1442
    %v1448 = vmul.f32 1.0, %v1447
    %v1450 = vrot.slane %v1401, 5
    %v1452 = vmul.f32 %v1425, %v1450
    %v1453 = vadd.f32 %v415, %v1452
    %v1454 = vtanh.pop %v1453
    %v1455 = vsub.f32 1.0, %v1448
    %v1456 = vmul.f32 %v1455, %v1454
    %v1457 = vrot.slane %v1218, 7
    %v1459 = vmul.f32 %v1448, %v1457
    %v1460 = vadd.f32 %v1456, %v1459
    %v1462 = vrot.slane %v1339, 2
    %1464 = vmatpush.msra.mxu0 %v628
    %1465 = vmatpush.msra.mxu0 %v625
    %1466 = vmatpush.msra.mxu0 %v622
    %1467 = vmatpush.msra.mxu0 %v619
    %1468 = vmatpush.msra.mxu0 %v616
    %1469 = vmatpush.msra.mxu0 %v613
    %1470 = vmatpush.msra.mxu0 %v610
    %1471 = vmatpush.msra.mxu0 %v607
    %1472 = vmatpush.msra.mxu0 %v604
    %1473 = vmatpush.msra.mxu0 %v601
    %1474 = vmatpush.msra.mxu0 %v598
    %1475 = vmatpush.msra.mxu0 %v595
    %1476 = vmatpush.msra.mxu0 %v592
    %1477 = vmatpush.msra.mxu0 %v589
    %1478 = vmatpush.msra.mxu0 %v586
    %1479 = vmatpush.msra.mxu0 %v583
    %1480 = vmatmul.f32.gmra.mxu0 %v1462
    %v1481 = vpop.f32.mrf.mxu0
    %v1482 = vadd.f32 %v747, %v1481
    %1483 = vdwg.mxu0
    %1484 = vmatpush.msra.mxu0 %v629
    %1485 = vmatpush.msra.mxu0 %v626
    %1486 = vmatpush.msra.mxu0 %v623
    %1487 = vmatpush.msra.mxu0 %v620
    %1488 = vmatpush.msra.mxu0 %v617
    %1489 = vmatpush.msra.mxu0 %v614
    %1490 = vmatpush.msra.mxu0 %v611
    %1491 = vmatpush.msra.mxu0 %v608
    %1492 = vmatpush.msra.mxu0 %v605
    %1493 = vmatpush.msra.mxu0 %v602
    %1494 = vmatpush.msra.mxu0 %v599
    %1495 = vmatpush.msra.mxu0 %v596
    %1496 = vmatpush.msra.mxu0 %v593
    %1497 = vmatpush.msra.mxu0 %v590
    %1498 = vmatpush.msra.mxu0 %v587
    %1499 = vmatpush.msra.mxu0 %v584
    %1500 = vmatmul.f32.gmra.mxu0 %v1462
    %v1501 = vpop.f32.mrf.mxu0
    %v1502 = vadd.f32 %v748, %v1501
    %1503 = vdwg.mxu0
    %1504 = vmatpush.msra.mxu0 %v630
    %1505 = vmatpush.msra.mxu0 %v627
    %1506 = vmatpush.msra.mxu0 %v624
    %1507 = vmatpush.msra.mxu0 %v621
    %1508 = vmatpush.msra.mxu0 %v618
    %1509 = vmatpush.msra.mxu0 %v615
    %1510 = vmatpush.msra.mxu0 %v612
    %1511 = vmatpush.msra.mxu0 %v609
    %1512 = vmatpush.msra.mxu0 %v606
    %1513 = vmatpush.msra.mxu0 %v603
    %1514 = vmatpush.msra.mxu0 %v600
    %1515 = vmatpush.msra.mxu0 %v597
    %1516 = vmatpush.msra.mxu0 %v594
    %1517 = vmatpush.msra.mxu0 %v591
    %1518 = vmatpush.msra.mxu0 %v588
    %1519 = vmatpush.msra.mxu0 %v585
    %1520 = vmatmul.f32.gmra.mxu0 %v1462
    %v1521 = vpop.f32.mrf.mxu0
    %v1522 = vadd.f32 %v749, %v1521
    %1523 = vdwg.mxu0
    %v1525 = vrot.slane %v1482, 5
    %v1527 = vadd.f32 %v492, %v1525
    %v1528 = vxor.u32 %v1527, 2147483648
    %v1529 = vmul.f32 %v1528, 1.442695
    %v1530 = vpow.pop %v1529
    %v1531 = vadd.f32 %v1530, 1.0
    %v1532 = vrcp.pop %v1531
    %v1533 = vmul.f32 %v1531, %v1532
    %v1534 = vsub.f32 1.0, %v1533
    %v1535 = vmul.f32 %v1532, %v1534
    %v1536 = vadd.f32 %v1532, %v1535
    %vm1537 = vweird.f32 %v1531
    %vm1538 = vweird.f32 %v1532
    %vm1539 = vmor %vm1537, %vm1538
    %v1540 = vsel %vm1539, %v1532, %v1536
    %v1541 = vand.u32 2147483647, %v1531
    %vm1542 = vcmp.eq.f32.partialorder %v1541, 8.507059e+37
    %v1543 = vand.u32 %v1531, 2147483648
    %v1544 = vor.u32 1.1754944e-38, %v1543
    %v1545 = vsel %vm1542, %v1544, %v1540
    %v1546 = vmul.f32 1.0, %v1545
    %v1548 = vrot.slane %v1502, 5
    %v1550 = vadd.f32 %v512, %v1548
    %v1551 = vxor.u32 %v1550, 2147483648
    %v1552 = vmul.f32 %v1551, 1.442695
    %v1553 = vpow.pop %v1552
    %v1554 = vadd.f32 %v1553, 1.0
    %v1555 = vrcp.pop %v1554
    %v1556 = vmul.f32 %v1554, %v1555
    %v1557 = vsub.f32 1.0, %v1556
    %v1558 = vmul.f32 %v1555, %v1557
    %v1559 = vadd.f32 %v1555, %v1558
    %vm1560 = vweird.f32 %v1554
    %vm1561 = vweird.f32 %v1555
    %vm1562 = vmor %vm1560, %vm1561
    %v1563 = vsel %vm1562, %v1555, %v1559
    %v1564 = vand.u32 2147483647, %v1554
    %vm1565 = vcmp.eq.f32.partialorder %v1564, 8.507059e+37
    %v1566 = vand.u32 %v1554, 2147483648
    %v1567 = vor.u32 1.1754944e-38, %v1566
    %v1568 = vsel %vm1565, %v1567, %v1563
    %v1569 = vmul.f32 1.0, %v1568
    %v1571 = vrot.slane %v1522, 5
    %v1573 = vmul.f32 %v1546, %v1571
    %v1574 = vadd.f32 %v532, %v1573
    %v1575 = vtanh.pop %v1574
    %v1576 = vsub.f32 1.0, %v1569
    %v1577 = vmul.f32 %v1576, %v1575
    %v1578 = vrot.slane %v1339, 7
    %v1580 = vmul.f32 %v1569, %v1578
    %v1581 = vadd.f32 %v1577, %v1580
    %v1583 = vrot.slane %v1460, 3
    %1585 = vmatpush.msra.mxu0 %v579
    %1586 = vmatpush.msra.mxu0 %v576
    %1587 = vmatpush.msra.mxu0 %v573
    %1588 = vmatpush.msra.mxu0 %v570
    %1589 = vmatpush.msra.mxu0 %v567
    %1590 = vmatpush.msra.mxu0 %v564
    %1591 = vmatpush.msra.mxu0 %v561
    %1592 = vmatpush.msra.mxu0 %v558
    %1593 = vmatpush.msra.mxu0 %v555
    %1594 = vmatpush.msra.mxu0 %v552
    %1595 = vmatpush.msra.mxu0 %v549
    %1596 = vmatpush.msra.mxu0 %v546
    %1597 = vmatpush.msra.mxu0 %v543
    %1598 = vmatpush.msra.mxu0 %v540
    %1599 = vmatpush.msra.mxu0 %v537
    %1600 = vmatpush.msra.mxu0 %v534
    %1601 = vmatmul.f32.gmra.mxu0 %v1583
    %v1602 = vpop.f32.mrf.mxu0
    %v1603 = vadd.f32 %v633, %v1602
    %1604 = vdwg.mxu0
    %1605 = vmatpush.msra.mxu0 %v580
    %1606 = vmatpush.msra.mxu0 %v577
    %1607 = vmatpush.msra.mxu0 %v574
    %1608 = vmatpush.msra.mxu0 %v571
    %1609 = vmatpush.msra.mxu0 %v568
    %1610 = vmatpush.msra.mxu0 %v565
    %1611 = vmatpush.msra.mxu0 %v562
    %1612 = vmatpush.msra.mxu0 %v559
    %1613 = vmatpush.msra.mxu0 %v556
    %1614 = vmatpush.msra.mxu0 %v553
    %1615 = vmatpush.msra.mxu0 %v550
    %1616 = vmatpush.msra.mxu0 %v547
    %1617 = vmatpush.msra.mxu0 %v544
    %1618 = vmatpush.msra.mxu0 %v541
    %1619 = vmatpush.msra.mxu0 %v538
    %1620 = vmatpush.msra.mxu0 %v535
    %1621 = vmatmul.f32.gmra.mxu0 %v1583
    %v1622 = vpop.f32.mrf.mxu0
    %v1623 = vadd.f32 %v634, %v1622
    %1624 = vdwg.mxu0
    %1625 = vmatpush.msra.mxu0 %v581
    %1626 = vmatpush.msra.mxu0 %v578
    %1627 = vmatpush.msra.mxu0 %v575
    %1628 = vmatpush.msra.mxu0 %v572
    %1629 = vmatpush.msra.mxu0 %v569
    %1630 = vmatpush.msra.mxu0 %v566
    %1631 = vmatpush.msra.mxu0 %v563
    %1632 = vmatpush.msra.mxu0 %v560
    %1633 = vmatpush.msra.mxu0 %v557
    %1634 = vmatpush.msra.mxu0 %v554
    %1635 = vmatpush.msra.mxu0 %v551
    %1636 = vmatpush.msra.mxu0 %v548
    %1637 = vmatpush.msra.mxu0 %v545
    %1638 = vmatpush.msra.mxu0 %v542
    %1639 = vmatpush.msra.mxu0 %v539
    %1640 = vmatpush.msra.mxu0 %v536
    %1641 = vmatmul.f32.gmra.mxu0 %v1583
    %v1642 = vpop.f32.mrf.mxu0
    %v1643 = vadd.f32 %v635, %v1642
    %1644 = vdwg.mxu0
    %v1646 = vrot.slane %v1603, 4
    %v1648 = vadd.f32 %v375, %v1646
    %v1649 = vxor.u32 %v1648, 2147483648
    %v1650 = vmul.f32 %v1649, 1.442695
    %v1651 = vpow.pop %v1650
    %v1652 = vadd.f32 %v1651, 1.0
    %v1653 = vrcp.pop %v1652
    %v1654 = vmul.f32 %v1652, %v1653
    %v1655 = vsub.f32 1.0, %v1654
    %v1656 = vmul.f32 %v1653, %v1655
    %v1657 = vadd.f32 %v1653, %v1656
    %vm1658 = vweird.f32 %v1652
    %vm1659 = vweird.f32 %v1653
    %vm1660 = vmor %vm1658, %vm1659
    %v1661 = vsel %vm1660, %v1653, %v1657
    %v1662 = vand.u32 2147483647, %v1652
    %vm1663 = vcmp.eq.f32.partialorder %v1662, 8.507059e+37
    %v1664 = vand.u32 %v1652, 2147483648
    %v1665 = vor.u32 1.1754944e-38, %v1664
    %v1666 = vsel %vm1663, %v1665, %v1661
    %v1667 = vmul.f32 1.0, %v1666
    %v1669 = vrot.slane %v1623, 4
    %v1671 = vadd.f32 %v395, %v1669
    %v1672 = vxor.u32 %v1671, 2147483648
    %v1673 = vmul.f32 %v1672, 1.442695
    %v1674 = vpow.pop %v1673
    %v1675 = vadd.f32 %v1674, 1.0
    %v1676 = vrcp.pop %v1675
    %v1677 = vmul.f32 %v1675, %v1676
    %v1678 = vsub.f32 1.0, %v1677
    %v1679 = vmul.f32 %v1676, %v1678
    %v1680 = vadd.f32 %v1676, %v1679
    %vm1681 = vweird.f32 %v1675
    %vm1682 = vweird.f32 %v1676
    %vm1683 = vmor %vm1681, %vm1682
    %v1684 = vsel %vm1683, %v1676, %v1680
    %v1685 = vand.u32 2147483647, %v1675
    %vm1686 = vcmp.eq.f32.partialorder %v1685, 8.507059e+37
    %v1687 = vand.u32 %v1675, 2147483648
    %v1688 = vor.u32 1.1754944e-38, %v1687
    %v1689 = vsel %vm1686, %v1688, %v1684
    %v1690 = vmul.f32 1.0, %v1689
    %v1692 = vrot.slane %v1643, 4
    %v1694 = vmul.f32 %v1667, %v1692
    %v1695 = vadd.f32 %v415, %v1694
    %v1696 = vtanh.pop %v1695
    %v1697 = vsub.f32 1.0, %v1690
    %v1698 = vmul.f32 %v1697, %v1696
    %v1699 = vrot.slane %v1460, 7
    %v1701 = vmul.f32 %v1690, %v1699
    %v1702 = vadd.f32 %v1698, %v1701
    %v1704 = vrot.slane %v1581, 3
    %1706 = vmatpush.msra.mxu0 %v628
    %1707 = vmatpush.msra.mxu0 %v625
    %1708 = vmatpush.msra.mxu0 %v622
    %1709 = vmatpush.msra.mxu0 %v619
    %1710 = vmatpush.msra.mxu0 %v616
    %1711 = vmatpush.msra.mxu0 %v613
    %1712 = vmatpush.msra.mxu0 %v610
    %1713 = vmatpush.msra.mxu0 %v607
    %1714 = vmatpush.msra.mxu0 %v604
    %1715 = vmatpush.msra.mxu0 %v601
    %1716 = vmatpush.msra.mxu0 %v598
    %1717 = vmatpush.msra.mxu0 %v595
    %1718 = vmatpush.msra.mxu0 %v592
    %1719 = vmatpush.msra.mxu0 %v589
    %1720 = vmatpush.msra.mxu0 %v586
    %1721 = vmatpush.msra.mxu0 %v583
    %1722 = vmatmul.f32.gmra.mxu0 %v1704
    %v1723 = vpop.f32.mrf.mxu0
    %v1724 = vadd.f32 %v747, %v1723
    %1725 = vdwg.mxu0
    %1726 = vmatpush.msra.mxu0 %v629
    %1727 = vmatpush.msra.mxu0 %v626
    %1728 = vmatpush.msra.mxu0 %v623
    %1729 = vmatpush.msra.mxu0 %v620
    %1730 = vmatpush.msra.mxu0 %v617
    %1731 = vmatpush.msra.mxu0 %v614
    %1732 = vmatpush.msra.mxu0 %v611
    %1733 = vmatpush.msra.mxu0 %v608
    %1734 = vmatpush.msra.mxu0 %v605
    %1735 = vmatpush.msra.mxu0 %v602
    %1736 = vmatpush.msra.mxu0 %v599
    %1737 = vmatpush.msra.mxu0 %v596
    %1738 = vmatpush.msra.mxu0 %v593
    %1739 = vmatpush.msra.mxu0 %v590
    %1740 = vmatpush.msra.mxu0 %v587
    %1741 = vmatpush.msra.mxu0 %v584
    %1742 = vmatmul.f32.gmra.mxu0 %v1704
    %v1743 = vpop.f32.mrf.mxu0
    %v1744 = vadd.f32 %v748, %v1743
    %1745 = vdwg.mxu0
    %1746 = vmatpush.msra.mxu0 %v630
    %1747 = vmatpush.msra.mxu0 %v627
    %1748 = vmatpush.msra.mxu0 %v624
    %1749 = vmatpush.msra.mxu0 %v621
    %1750 = vmatpush.msra.mxu0 %v618
    %1751 = vmatpush.msra.mxu0 %v615
    %1752 = vmatpush.msra.mxu0 %v612
    %1753 = vmatpush.msra.mxu0 %v609
    %1754 = vmatpush.msra.mxu0 %v606
    %1755 = vmatpush.msra.mxu0 %v603
    %1756 = vmatpush.msra.mxu0 %v600
    %1757 = vmatpush.msra.mxu0 %v597
    %1758 = vmatpush.msra.mxu0 %v594
    %1759 = vmatpush.msra.mxu0 %v591
    %1760 = vmatpush.msra.mxu0 %v588
    %1761 = vmatpush.msra.mxu0 %v585
    %1762 = vmatmul.f32.gmra.mxu0 %v1704
    %v1763 = vpop.f32.mrf.mxu0
    %v1764 = vadd.f32 %v749, %v1763
    %1765 = vdwg.mxu0
    %v1767 = vrot.slane %v1724, 4
    %v1769 = vadd.f32 %v492, %v1767
    %v1770 = vxor.u32 %v1769, 2147483648
    %v1771 = vmul.f32 %v1770, 1.442695
    %v1772 = vpow.pop %v1771
    %v1773 = vadd.f32 %v1772, 1.0
    %v1774 = vrcp.pop %v1773
    %v1775 = vmul.f32 %v1773, %v1774
    %v1776 = vsub.f32 1.0, %v1775
    %v1777 = vmul.f32 %v1774, %v1776
    %v1778 = vadd.f32 %v1774, %v1777
    %vm1779 = vweird.f32 %v1773
    %vm1780 = vweird.f32 %v1774
    %vm1781 = vmor %vm1779, %vm1780
    %v1782 = vsel %vm1781, %v1774, %v1778
    %v1783 = vand.u32 2147483647, %v1773
    %vm1784 = vcmp.eq.f32.partialorder %v1783, 8.507059e+37
    %v1785 = vand.u32 %v1773, 2147483648
    %v1786 = vor.u32 1.1754944e-38, %v1785
    %v1787 = vsel %vm1784, %v1786, %v1782
    %v1788 = vmul.f32 1.0, %v1787
    %v1790 = vrot.slane %v1744, 4
    %v1792 = vadd.f32 %v512, %v1790
    %v1793 = vxor.u32 %v1792, 2147483648
    %v1794 = vmul.f32 %v1793, 1.442695
    %v1795 = vpow.pop %v1794
    %v1796 = vadd.f32 %v1795, 1.0
    %v1797 = vrcp.pop %v1796
    %v1798 = vmul.f32 %v1796, %v1797
    %v1799 = vsub.f32 1.0, %v1798
    %v1800 = vmul.f32 %v1797, %v1799
    %v1801 = vadd.f32 %v1797, %v1800
    %vm1802 = vweird.f32 %v1796
    %vm1803 = vweird.f32 %v1797
    %vm1804 = vmor %vm1802, %vm1803
    %v1805 = vsel %vm1804, %v1797, %v1801
    %v1806 = vand.u32 2147483647, %v1796
    %vm1807 = vcmp.eq.f32.partialorder %v1806, 8.507059e+37
    %v1808 = vand.u32 %v1796, 2147483648
    %v1809 = vor.u32 1.1754944e-38, %v1808
    %v1810 = vsel %vm1807, %v1809, %v1805
    %v1811 = vmul.f32 1.0, %v1810
    %v1813 = vrot.slane %v1764, 4
    %v1815 = vmul.f32 %v1788, %v1813
    %v1816 = vadd.f32 %v532, %v1815
    %v1817 = vtanh.pop %v1816
    %v1818 = vsub.f32 1.0, %v1811
    %v1819 = vmul.f32 %v1818, %v1817
    %v1820 = vrot.slane %v1581, 7
    %v1822 = vmul.f32 %v1811, %v1820
    %v1823 = vadd.f32 %v1819, %v1822
    %v1825 = vrot.slane %v1702, 4
    %1827 = vmatpush.msra.mxu0 %v579
    %1828 = vmatpush.msra.mxu0 %v576
    %1829 = vmatpush.msra.mxu0 %v573
    %1830 = vmatpush.msra.mxu0 %v570
    %1831 = vmatpush.msra.mxu0 %v567
    %1832 = vmatpush.msra.mxu0 %v564
    %1833 = vmatpush.msra.mxu0 %v561
    %1834 = vmatpush.msra.mxu0 %v558
    %1835 = vmatpush.msra.mxu0 %v555
    %1836 = vmatpush.msra.mxu0 %v552
    %1837 = vmatpush.msra.mxu0 %v549
    %1838 = vmatpush.msra.mxu0 %v546
    %1839 = vmatpush.msra.mxu0 %v543
    %1840 = vmatpush.msra.mxu0 %v540
    %1841 = vmatpush.msra.mxu0 %v537
    %1842 = vmatpush.msra.mxu0 %v534
    %1843 = vmatmul.f32.gmra.mxu0 %v1825
    %v1844 = vpop.f32.mrf.mxu0
    %v1845 = vadd.f32 %v633, %v1844
    %1846 = vdwg.mxu0
    %1847 = vmatpush.msra.mxu0 %v580
    %1848 = vmatpush.msra.mxu0 %v577
    %1849 = vmatpush.msra.mxu0 %v574
    %1850 = vmatpush.msra.mxu0 %v571
    %1851 = vmatpush.msra.mxu0 %v568
    %1852 = vmatpush.msra.mxu0 %v565
    %1853 = vmatpush.msra.mxu0 %v562
    %1854 = vmatpush.msra.mxu0 %v559
    %1855 = vmatpush.msra.mxu0 %v556
    %1856 = vmatpush.msra.mxu0 %v553
    %1857 = vmatpush.msra.mxu0 %v550
    %1858 = vmatpush.msra.mxu0 %v547
    %1859 = vmatpush.msra.mxu0 %v544
    %1860 = vmatpush.msra.mxu0 %v541
    %1861 = vmatpush.msra.mxu0 %v538
    %1862 = vmatpush.msra.mxu0 %v535
    %1863 = vmatmul.f32.gmra.mxu0 %v1825
    %v1864 = vpop.f32.mrf.mxu0
    %v1865 = vadd.f32 %v634, %v1864
    %1866 = vdwg.mxu0
    %1867 = vmatpush.msra.mxu0 %v581
    %1868 = vmatpush.msra.mxu0 %v578
    %1869 = vmatpush.msra.mxu0 %v575
    %1870 = vmatpush.msra.mxu0 %v572
    %1871 = vmatpush.msra.mxu0 %v569
    %1872 = vmatpush.msra.mxu0 %v566
    %1873 = vmatpush.msra.mxu0 %v563
    %1874 = vmatpush.msra.mxu0 %v560
    %1875 = vmatpush.msra.mxu0 %v557
    %1876 = vmatpush.msra.mxu0 %v554
    %1877 = vmatpush.msra.mxu0 %v551
    %1878 = vmatpush.msra.mxu0 %v548
    %1879 = vmatpush.msra.mxu0 %v545
    %1880 = vmatpush.msra.mxu0 %v542
    %1881 = vmatpush.msra.mxu0 %v539
    %1882 = vmatpush.msra.mxu0 %v536
    %1883 = vmatmul.f32.gmra.mxu0 %v1825
    %v1884 = vpop.f32.mrf.mxu0
    %v1885 = vadd.f32 %v635, %v1884
    %1886 = vdwg.mxu0
    %v1888 = vrot.slane %v1845, 3
    %v1890 = vadd.f32 %v375, %v1888
    %v1891 = vxor.u32 %v1890, 2147483648
    %v1892 = vmul.f32 %v1891, 1.442695
    %v1893 = vpow.pop %v1892
    %v1894 = vadd.f32 %v1893, 1.0
    %v1895 = vrcp.pop %v1894
    %v1896 = vmul.f32 %v1894, %v1895
    %v1897 = vsub.f32 1.0, %v1896
    %v1898 = vmul.f32 %v1895, %v1897
    %v1899 = vadd.f32 %v1895, %v1898
    %vm1900 = vweird.f32 %v1894
    %vm1901 = vweird.f32 %v1895
    %vm1902 = vmor %vm1900, %vm1901
    %v1903 = vsel %vm1902, %v1895, %v1899
    %v1904 = vand.u32 2147483647, %v1894
    %vm1905 = vcmp.eq.f32.partialorder %v1904, 8.507059e+37
    %v1906 = vand.u32 %v1894, 2147483648
    %v1907 = vor.u32 1.1754944e-38, %v1906
    %v1908 = vsel %vm1905, %v1907, %v1903
    %v1909 = vmul.f32 1.0, %v1908
    %v1911 = vrot.slane %v1865, 3
    %v1913 = vadd.f32 %v395, %v1911
    %v1914 = vxor.u32 %v1913, 2147483648
    %v1915 = vmul.f32 %v1914, 1.442695
    %v1916 = vpow.pop %v1915
    %v1917 = vadd.f32 %v1916, 1.0
    %v1918 = vrcp.pop %v1917
    %v1919 = vmul.f32 %v1917, %v1918
    %v1920 = vsub.f32 1.0, %v1919
    %v1921 = vmul.f32 %v1918, %v1920
    %v1922 = vadd.f32 %v1918, %v1921
    %vm1923 = vweird.f32 %v1917
    %vm1924 = vweird.f32 %v1918
    %vm1925 = vmor %vm1923, %vm1924
    %v1926 = vsel %vm1925, %v1918, %v1922
    %v1927 = vand.u32 2147483647, %v1917
    %vm1928 = vcmp.eq.f32.partialorder %v1927, 8.507059e+37
    %v1929 = vand.u32 %v1917, 2147483648
    %v1930 = vor.u32 1.1754944e-38, %v1929
    %v1931 = vsel %vm1928, %v1930, %v1926
    %v1932 = vmul.f32 1.0, %v1931
    %v1934 = vrot.slane %v1885, 3
    %v1936 = vmul.f32 %v1909, %v1934
    %v1937 = vadd.f32 %v415, %v1936
    %v1938 = vtanh.pop %v1937
    %v1939 = vsub.f32 1.0, %v1932
    %v1940 = vmul.f32 %v1939, %v1938
    %v1941 = vrot.slane %v1702, 7
    %v1943 = vmul.f32 %v1932, %v1941
    %v1944 = vadd.f32 %v1940, %v1943
    %v1946 = vrot.slane %v1823, 4
    %1948 = vmatpush.msra.mxu0 %v628
    %1949 = vmatpush.msra.mxu0 %v625
    %1950 = vmatpush.msra.mxu0 %v622
    %1951 = vmatpush.msra.mxu0 %v619
    %1952 = vmatpush.msra.mxu0 %v616
    %1953 = vmatpush.msra.mxu0 %v613
    %1954 = vmatpush.msra.mxu0 %v610
    %1955 = vmatpush.msra.mxu0 %v607
    %1956 = vmatpush.msra.mxu0 %v604
    %1957 = vmatpush.msra.mxu0 %v601
    %1958 = vmatpush.msra.mxu0 %v598
    %1959 = vmatpush.msra.mxu0 %v595
    %1960 = vmatpush.msra.mxu0 %v592
    %1961 = vmatpush.msra.mxu0 %v589
    %1962 = vmatpush.msra.mxu0 %v586
    %1963 = vmatpush.msra.mxu0 %v583
    %1964 = vmatmul.f32.gmra.mxu0 %v1946
    %v1965 = vpop.f32.mrf.mxu0
    %v1966 = vadd.f32 %v747, %v1965
    %1967 = vdwg.mxu0
    %1968 = vmatpush.msra.mxu0 %v629
    %1969 = vmatpush.msra.mxu0 %v626
    %1970 = vmatpush.msra.mxu0 %v623
    %1971 = vmatpush.msra.mxu0 %v620
    %1972 = vmatpush.msra.mxu0 %v617
    %1973 = vmatpush.msra.mxu0 %v614
    %1974 = vmatpush.msra.mxu0 %v611
    %1975 = vmatpush.msra.mxu0 %v608
    %1976 = vmatpush.msra.mxu0 %v605
    %1977 = vmatpush.msra.mxu0 %v602
    %1978 = vmatpush.msra.mxu0 %v599
    %1979 = vmatpush.msra.mxu0 %v596
    %1980 = vmatpush.msra.mxu0 %v593
    %1981 = vmatpush.msra.mxu0 %v590
    %1982 = vmatpush.msra.mxu0 %v587
    %1983 = vmatpush.msra.mxu0 %v584
    %1984 = vmatmul.f32.gmra.mxu0 %v1946
    %v1985 = vpop.f32.mrf.mxu0
    %v1986 = vadd.f32 %v748, %v1985
    %1987 = vdwg.mxu0
    %1988 = vmatpush.msra.mxu0 %v630
    %1989 = vmatpush.msra.mxu0 %v627
    %1990 = vmatpush.msra.mxu0 %v624
    %1991 = vmatpush.msra.mxu0 %v621
    %1992 = vmatpush.msra.mxu0 %v618
    %1993 = vmatpush.msra.mxu0 %v615
    %1994 = vmatpush.msra.mxu0 %v612
    %1995 = vmatpush.msra.mxu0 %v609
    %1996 = vmatpush.msra.mxu0 %v606
    %1997 = vmatpush.msra.mxu0 %v603
    %1998 = vmatpush.msra.mxu0 %v600
    %1999 = vmatpush.msra.mxu0 %v597
    %2000 = vmatpush.msra.mxu0 %v594
    %2001 = vmatpush.msra.mxu0 %v591
    %2002 = vmatpush.msra.mxu0 %v588
    %2003 = vmatpush.msra.mxu0 %v585
    %2004 = vmatmul.f32.gmra.mxu0 %v1946
    %v2005 = vpop.f32.mrf.mxu0
    %v2006 = vadd.f32 %v749, %v2005
    %2007 = vdwg.mxu0
    %v2009 = vrot.slane %v1966, 3
    %v2011 = vadd.f32 %v492, %v2009
    %v2012 = vxor.u32 %v2011, 2147483648
    %v2013 = vmul.f32 %v2012, 1.442695
    %v2014 = vpow.pop %v2013
    %v2015 = vadd.f32 %v2014, 1.0
    %v2016 = vrcp.pop %v2015
    %v2017 = vmul.f32 %v2015, %v2016
    %v2018 = vsub.f32 1.0, %v2017
    %v2019 = vmul.f32 %v2016, %v2018
    %v2020 = vadd.f32 %v2016, %v2019
    %vm2021 = vweird.f32 %v2015
    %vm2022 = vweird.f32 %v2016
    %vm2023 = vmor %vm2021, %vm2022
    %v2024 = vsel %vm2023, %v2016, %v2020
    %v2025 = vand.u32 2147483647, %v2015
    %vm2026 = vcmp.eq.f32.partialorder %v2025, 8.507059e+37
    %v2027 = vand.u32 %v2015, 2147483648
    %v2028 = vor.u32 1.1754944e-38, %v2027
    %v2029 = vsel %vm2026, %v2028, %v2024
    %v2030 = vmul.f32 1.0, %v2029
    %v2032 = vrot.slane %v1986, 3
    %v2034 = vadd.f32 %v512, %v2032
    %v2035 = vxor.u32 %v2034, 2147483648
    %v2036 = vmul.f32 %v2035, 1.442695
    %v2037 = vpow.pop %v2036
    %v2038 = vadd.f32 %v2037, 1.0
    %v2039 = vrcp.pop %v2038
    %v2040 = vmul.f32 %v2038, %v2039
    %v2041 = vsub.f32 1.0, %v2040
    %v2042 = vmul.f32 %v2039, %v2041
    %v2043 = vadd.f32 %v2039, %v2042
    %vm2044 = vweird.f32 %v2038
    %vm2045 = vweird.f32 %v2039
    %vm2046 = vmor %vm2044, %vm2045
    %v2047 = vsel %vm2046, %v2039, %v2043
    %v2048 = vand.u32 2147483647, %v2038
    %vm2049 = vcmp.eq.f32.partialorder %v2048, 8.507059e+37
    %v2050 = vand.u32 %v2038, 2147483648
    %v2051 = vor.u32 1.1754944e-38, %v2050
    %v2052 = vsel %vm2049, %v2051, %v2047
    %v2053 = vmul.f32 1.0, %v2052
    %v2055 = vrot.slane %v2006, 3
    %v2057 = vmul.f32 %v2030, %v2055
    %v2058 = vadd.f32 %v532, %v2057
    %v2059 = vtanh.pop %v2058
    %v2060 = vsub.f32 1.0, %v2053
    %v2061 = vmul.f32 %v2060, %v2059
    %v2062 = vrot.slane %v1823, 7
    %v2064 = vmul.f32 %v2053, %v2062
    %v2065 = vadd.f32 %v2061, %v2064
    %v2066 = vmax.f32 %v1944, 0.0
    %v2067 = vld [vmem:[#allocation16] sm:$0xff]
    %v2068 = vld [vmem:[#allocation16 + $0x8] sm:$0xff]
    %v2069 = vld [vmem:[#allocation16 + $0x10] sm:$0xff]
    %v2070 = vld [vmem:[#allocation16 + $0x18] sm:$0xff]
    %v2071 = vld [vmem:[#allocation16 + $0x20] sm:$0xff]
    %v2072 = vld [vmem:[#allocation16 + $0x28] sm:$0xff]
    %v2073 = vld [vmem:[#allocation16 + $0x30] sm:$0xff]
    %v2074 = vld [vmem:[#allocation16 + $0x38] sm:$0xff]
    %v2075 = vld [vmem:[#allocation16 + $0x40] sm:$0xff]
    %v2076 = vld [vmem:[#allocation16 + $0x48] sm:$0xff]
    %v2077 = vld [vmem:[#allocation16 + $0x50] sm:$0xff]
    %v2078 = vld [vmem:[#allocation16 + $0x58] sm:$0xff]
    %v2079 = vld [vmem:[#allocation16 + $0x60] sm:$0xff]
    %v2080 = vld [vmem:[#allocation16 + $0x68] sm:$0xff]
    %v2081 = vld [vmem:[#allocation16 + $0x70] sm:$0xff]
    %v2082 = vld [vmem:[#allocation16 + $0x78] sm:$0xff]
    %v2083 = vmax.f32 %v2065, 0.0
    %v2084 = vld [vmem:[#allocation17] sm:$0xff]
    %v2085 = vld [vmem:[#allocation17 + $0x8] sm:$0xff]
    %v2086 = vld [vmem:[#allocation17 + $0x10] sm:$0xff]
    %v2087 = vld [vmem:[#allocation17 + $0x18] sm:$0xff]
    %v2088 = vld [vmem:[#allocation17 + $0x20] sm:$0xff]
    %v2089 = vld [vmem:[#allocation17 + $0x28] sm:$0xff]
    %v2090 = vld [vmem:[#allocation17 + $0x30] sm:$0xff]
    %v2091 = vld [vmem:[#allocation17 + $0x38] sm:$0xff]
    %v2092 = vld [vmem:[#allocation17 + $0x40] sm:$0xff]
    %v2093 = vld [vmem:[#allocation17 + $0x48] sm:$0xff]
    %v2094 = vld [vmem:[#allocation17 + $0x50] sm:$0xff]
    %v2095 = vld [vmem:[#allocation17 + $0x58] sm:$0xff]
    %v2096 = vld [vmem:[#allocation17 + $0x60] sm:$0xff]
    %v2097 = vld [vmem:[#allocation17 + $0x68] sm:$0xff]
    %v2098 = vld [vmem:[#allocation17 + $0x70] sm:$0xff]
    %v2099 = vld [vmem:[#allocation17 + $0x78] sm:$0xff]
    %v2101 = vrot.slane %v2083, 5
    %2103 = vmatpush.msra.mxu0 %v2099
    %2104 = vmatpush.msra.mxu0 %v2098
    %2105 = vmatpush.msra.mxu0 %v2097
    %2106 = vmatpush.msra.mxu0 %v2096
    %2107 = vmatpush.msra.mxu0 %v2095
    %2108 = vmatpush.msra.mxu0 %v2094
    %2109 = vmatpush.msra.mxu0 %v2093
    %2110 = vmatpush.msra.mxu0 %v2092
    %2111 = vmatpush.msra.mxu0 %v2091
    %2112 = vmatpush.msra.mxu0 %v2090
    %2113 = vmatpush.msra.mxu0 %v2089
    %2114 = vmatpush.msra.mxu0 %v2088
    %2115 = vmatpush.msra.mxu0 %v2087
    %2116 = vmatpush.msra.mxu0 %v2086
    %2117 = vmatpush.msra.mxu0 %v2085
    %2118 = vmatpush.msra.mxu0 %v2084
    %2119 = vmatmul.f32.gmra.mxu0 %v2101
    %v2120 = vpop.f32.mrf.mxu0
    %v2121 = vadd.f32 0.0, %v2120
    %2122 = vdwg.mxu0
    %v2124 = vrot.slane %v2066, 5
    %2126 = vmatpush.msra.mxu0 %v2082
    %2127 = vmatpush.msra.mxu0 %v2081
    %2128 = vmatpush.msra.mxu0 %v2080
    %2129 = vmatpush.msra.mxu0 %v2079
    %2130 = vmatpush.msra.mxu0 %v2078
    %2131 = vmatpush.msra.mxu0 %v2077
    %2132 = vmatpush.msra.mxu0 %v2076
    %2133 = vmatpush.msra.mxu0 %v2075
    %2134 = vmatpush.msra.mxu0 %v2074
    %2135 = vmatpush.msra.mxu0 %v2073
    %2136 = vmatpush.msra.mxu0 %v2072
    %2137 = vmatpush.msra.mxu0 %v2071
    %2138 = vmatpush.msra.mxu0 %v2070
    %2139 = vmatpush.msra.mxu0 %v2069
    %2140 = vmatpush.msra.mxu0 %v2068
    %2141 = vmatpush.msra.mxu0 %v2067
    %2142 = vmatmul.f32.gmra.mxu0 %v2124
    %v2143 = vpop.f32.mrf.mxu0
    %v2144 = vadd.f32 %v2121, %v2143
    %2145 = vdwg.mxu0
    %v2146 = vld [vmem:[%s12] sm:$0x1]
    %v2147 = vadd.f32 %v2144, %v2146
    %v2148 = vld [vmem:[#allocation19] sm:$0xff]
    %v2149 = vld [vmem:[#allocation19 + $0x8] sm:$0xff]
    %v2150 = vld [vmem:[#allocation19 + $0x10] sm:$0xff]
    %v2151 = vld [vmem:[#allocation19 + $0x18] sm:$0xff]
    %v2152 = vld [vmem:[#allocation19 + $0x20] sm:$0xff]
    %v2153 = vld [vmem:[#allocation19 + $0x28] sm:$0xff]
    %v2154 = vld [vmem:[#allocation19 + $0x30] sm:$0xff]
    %v2155 = vld [vmem:[#allocation19 + $0x38] sm:$0xff]
    %v2156 = vld [vmem:[#allocation19 + $0x40] sm:$0xff]
    %v2157 = vld [vmem:[#allocation19 + $0x48] sm:$0xff]
    %v2158 = vld [vmem:[#allocation19 + $0x50] sm:$0xff]
    %v2159 = vld [vmem:[#allocation19 + $0x58] sm:$0xff]
    %v2160 = vld [vmem:[#allocation19 + $0x60] sm:$0xff]
    %v2161 = vld [vmem:[#allocation19 + $0x68] sm:$0xff]
    %v2162 = vld [vmem:[#allocation19 + $0x70] sm:$0xff]
    %v2163 = vld [vmem:[#allocation19 + $0x78] sm:$0xff]
    %2164 = vmatpush.msra.mxu0 %v2163
    %2165 = vmatpush.msra.mxu0 %v2162
    %2166 = vmatpush.msra.mxu0 %v2161
    %2167 = vmatpush.msra.mxu0 %v2160
    %2168 = vmatpush.msra.mxu0 %v2159
    %2169 = vmatpush.msra.mxu0 %v2158
    %2170 = vmatpush.msra.mxu0 %v2157
    %2171 = vmatpush.msra.mxu0 %v2156
    %2172 = vmatpush.msra.mxu0 %v2155
    %2173 = vmatpush.msra.mxu0 %v2154
    %2174 = vmatpush.msra.mxu0 %v2153
    %2175 = vmatpush.msra.mxu0 %v2152
    %2176 = vmatpush.msra.mxu0 %v2151
    %2177 = vmatpush.msra.mxu0 %v2150
    %2178 = vmatpush.msra.mxu0 %v2149
    %2179 = vmatpush.msra.mxu0 %v2148
    %2180 = vmatmul.f32.gmra.mxu0 %v2147
    %v2181 = vpop.f32.mrf.mxu0
    %v2182 = vadd.f32 0.0, %v2181
    %2183 = vdwg.mxu0
    %v2184 = vxor.u32 %v2182, 2147483648
    %v2185 = vmul.f32 %v2184, 1.442695
    %v2186 = vpow.pop %v2185
    %v2187 = vadd.f32 %v2186, 1.0
    %v2188 = vrcp.pop %v2187
    %v2189 = vmul.f32 %v2187, %v2188
    %v2190 = vsub.f32 1.0, %v2189
    %v2191 = vmul.f32 %v2188, %v2190
    %v2192 = vadd.f32 %v2188, %v2191
    %vm2193 = vweird.f32 %v2187
    %vm2194 = vweird.f32 %v2188
    %vm2195 = vmor %vm2193, %vm2194
    %v2196 = vsel %vm2195, %v2188, %v2192
    %v2197 = vand.u32 2147483647, %v2187
    %vm2198 = vcmp.eq.f32.partialorder %v2197, 8.507059e+37
    %v2199 = vand.u32 %v2187, 2147483648
    %v2200 = vor.u32 1.1754944e-38, %v2199
    %v2201 = vsel %vm2198, %v2200, %v2196
    %v2202 = vmul.f32 1.0, %v2201
    %v2203 = vld [vmem:[#allocation20] sm:$0xff]
    %v2204 = vld [vmem:[#allocation20 + $0x8] sm:$0xff]
    %v2205 = vld [vmem:[#allocation20 + $0x10] sm:$0xff]
    %v2206 = vld [vmem:[#allocation20 + $0x18] sm:$0xff]
    %v2207 = vld [vmem:[#allocation20 + $0x20] sm:$0xff]
    %v2208 = vld [vmem:[#allocation20 + $0x28] sm:$0xff]
    %v2209 = vld [vmem:[#allocation20 + $0x30] sm:$0xff]
    %v2210 = vld [vmem:[#allocation20 + $0x38] sm:$0xff]
    %v2211 = vld [vmem:[#allocation20 + $0x40] sm:$0xff]
    %v2212 = vld [vmem:[#allocation20 + $0x48] sm:$0xff]
    %v2213 = vld [vmem:[#allocation20 + $0x50] sm:$0xff]
    %v2214 = vld [vmem:[#allocation20 + $0x58] sm:$0xff]
    %v2215 = vld [vmem:[#allocation20 + $0x60] sm:$0xff]
    %v2216 = vld [vmem:[#allocation20 + $0x68] sm:$0xff]
    %v2217 = vld [vmem:[#allocation20 + $0x70] sm:$0xff]
    %v2218 = vld [vmem:[#allocation20 + $0x78] sm:$0xff]
    %2219 = vmatpush.msra.mxu0 %v2218
    %2220 = vmatpush.msra.mxu0 %v2217
    %2221 = vmatpush.msra.mxu0 %v2216
    %2222 = vmatpush.msra.mxu0 %v2215
    %2223 = vmatpush.msra.mxu0 %v2214
    %2224 = vmatpush.msra.mxu0 %v2213
    %2225 = vmatpush.msra.mxu0 %v2212
    %2226 = vmatpush.msra.mxu0 %v2211
    %2227 = vmatpush.msra.mxu0 %v2210
    %2228 = vmatpush.msra.mxu0 %v2209
    %2229 = vmatpush.msra.mxu0 %v2208
    %2230 = vmatpush.msra.mxu0 %v2207
    %2231 = vmatpush.msra.mxu0 %v2206
    %2232 = vmatpush.msra.mxu0 %v2205
    %2233 = vmatpush.msra.mxu0 %v2204
    %2234 = vmatpush.msra.mxu0 %v2203
    %2235 = vmatmul.f32.gmra.mxu0 %v2202
    %v2236 = vpop.f32.mrf.mxu0
    %v2237 = vadd.f32 0.0, %v2236
    %2238 = vdwg.mxu0
    %v2239 = vadd.f32 %v2202, %v2237
    %v2240 = vld [vmem:[%s15] sm:$0x1]
    %v2241 = vadd.f32 %v2239, %v2240
    %v2242 = vlaneseq
    %v2243 = vand.u32 %v2242, 127
    %vm2244 = vcmp.lt.s32.totalorder %v2243, 10
    %v2245 = vsel %vm2244, 1, 0
    %v2246 = vcvt.s32.f32 %v2245
    %v2247 = vmul.f32 %v2241, %v2246
    %vm2248 = vcmask 1040384
    %v2249 = vsel %vm2248, %v2247, 0.0
    %2250 = vadd.xlane.f32.xlu0 %v2249
    %v2251 = vpop.xlane.xlu0 %2250
    %v2252 = vmul.f32 %v2251, 0.1
    %v2253 = vsub.f32 %v2241, %v2252
    %v2254 = vmul.f32 %v2253, %v2246
    %v2255 = vmul.f32 %v2254, %v2254
    %v2256 = vsel %vm2248, %v2255, 0.0
    %2257 = vadd.xlane.f32.xlu0 %v2256
    %v2258 = vpop.xlane.xlu0 %2257
    %v2259 = vmul.f32 %v2258, 0.1
    %v2260 = vadd.f32 %v2259, 1e-05
    %v2261 = vrsqrt.pop %v2260
    %v2262 = vmul.f32 %v2261, %v2260
    %v2263 = vmul.f32 %v2262, %v2261
    %v2264 = vmul.f32 0.5, %v2263
    %v2265 = vsub.f32 1.5, %v2264
    %v2266 = vmul.f32 %v2261, %v2265
    %vm2267 = vweird.f32 %v2260
    %vm2268 = vweird.f32 %v2261
    %vm2269 = vmor %vm2267, %vm2268
    %v2270 = vsel %vm2269, %v2261, %v2266
    %v2271 = vmul.f32 %v2254, %v2270
    %v2272 = vld [vmem:[%s16] sm:$0x1]
    %v2273 = vmul.f32 %v2271, %v2272
    %v2274 = vld [vmem:[%s17] sm:$0x1]
    %v2275 = vadd.f32 %v2273, %v2274
    %v2276 = vld [vmem:[#allocation22] sm:$0xff]
    %v2277 = vld [vmem:[#allocation22 + $0x8] sm:$0xff]
    %v2278 = vld [vmem:[#allocation22 + $0x10] sm:$0xff]
    %v2279 = vld [vmem:[#allocation22 + $0x18] sm:$0xff]
    %v2280 = vld [vmem:[#allocation22 + $0x20] sm:$0xff]
    %v2281 = vld [vmem:[#allocation22 + $0x28] sm:$0xff]
    %v2282 = vld [vmem:[#allocation22 + $0x30] sm:$0xff]
    %v2283 = vld [vmem:[#allocation22 + $0x38] sm:$0xff]
    %v2284 = vld [vmem:[#allocation22 + $0x40] sm:$0xff]
    %v2285 = vld [vmem:[#allocation22 + $0x48] sm:$0xff]
    %v2286 = vld [vmem:[#allocation22 + $0x50] sm:$0xff]
    %v2287 = vld [vmem:[#allocation22 + $0x58] sm:$0xff]
    %v2288 = vld [vmem:[#allocation22 + $0x60] sm:$0xff]
    %v2289 = vld [vmem:[#allocation22 + $0x68] sm:$0xff]
    %v2290 = vld [vmem:[#allocation22 + $0x70] sm:$0xff]
    %v2291 = vld [vmem:[#allocation22 + $0x78] sm:$0xff]
    %v2292 = vld [vmem:[%s19] sm:$0x1]
    %2293 = vmatpush.msra.mxu0 %v2291
    %2294 = vmatpush.msra.mxu0 %v2290
    %2295 = vmatpush.msra.mxu0 %v2289
    %2296 = vmatpush.msra.mxu0 %v2288
    %2297 = vmatpush.msra.mxu0 %v2287
    %2298 = vmatpush.msra.mxu0 %v2286
    %2299 = vmatpush.msra.mxu0 %v2285
    %2300 = vmatpush.msra.mxu0 %v2284
    %2301 = vmatpush.msra.mxu0 %v2283
    %2302 = vmatpush.msra.mxu0 %v2282
    %2303 = vmatpush.msra.mxu0 %v2281
    %2304 = vmatpush.msra.mxu0 %v2280
    %2305 = vmatpush.msra.mxu0 %v2279
    %2306 = vmatpush.msra.mxu0 %v2278
    %2307 = vmatpush.msra.mxu0 %v2277
    %2308 = vmatpush.msra.mxu0 %v2276
    %2309 = vmatmul.f32.gmra.mxu0 %v2147
    %v2310 = vpop.f32.mrf.mxu0
    %v2311 = vadd.f32 %v2292, %v2310
    %2312 = vdwg.mxu0
    %v2313 = vxor.u32 %v2311, 2147483648
    %v2314 = vmul.f32 %v2313, 1.442695
    %v2315 = vpow.pop %v2314
    %v2316 = vadd.f32 %v2315, 1.0
    %v2317 = vrcp.pop %v2316
    %v2318 = vmul.f32 %v2316, %v2317
    %v2319 = vsub.f32 1.0, %v2318
    %v2320 = vmul.f32 %v2317, %v2319
    %v2321 = vadd.f32 %v2317, %v2320
    %vm2322 = vweird.f32 %v2316
    %vm2323 = vweird.f32 %v2317
    %vm2324 = vmor %vm2322, %vm2323
    %v2325 = vsel %vm2324, %v2317, %v2321
    %v2326 = vand.u32 2147483647, %v2316
    %vm2327 = vcmp.eq.f32.partialorder %v2326, 8.507059e+37
    %v2328 = vand.u32 %v2316, 2147483648
    %v2329 = vor.u32 1.1754944e-38, %v2328
    %v2330 = vsel %vm2327, %v2329, %v2325
    %v2331 = vmul.f32 1.0, %v2330
    %v2332 = vld [vmem:[#allocation23] sm:$0xff]
    %v2333 = vld [vmem:[#allocation23 + $0x8] sm:$0xff]
    %v2334 = vld [vmem:[#allocation23 + $0x10] sm:$0xff]
    %v2335 = vld [vmem:[#allocation23 + $0x18] sm:$0xff]
    %v2336 = vld [vmem:[#allocation23 + $0x20] sm:$0xff]
    %v2337 = vld [vmem:[#allocation23 + $0x28] sm:$0xff]
    %v2338 = vld [vmem:[#allocation23 + $0x30] sm:$0xff]
    %v2339 = vld [vmem:[#allocation23 + $0x38] sm:$0xff]
    %v2340 = vld [vmem:[#allocation23 + $0x40] sm:$0xff]
    %v2341 = vld [vmem:[#allocation23 + $0x48] sm:$0xff]
    %v2342 = vld [vmem:[#allocation23 + $0x50] sm:$0xff]
    %v2343 = vld [vmem:[#allocation23 + $0x58] sm:$0xff]
    %v2344 = vld [vmem:[#allocation23 + $0x60] sm:$0xff]
    %v2345 = vld [vmem:[#allocation23 + $0x68] sm:$0xff]
    %v2346 = vld [vmem:[#allocation23 + $0x70] sm:$0xff]
    %v2347 = vld [vmem:[#allocation23 + $0x78] sm:$0xff]
    %2348 = vmatpush.msra.mxu0 %v2347
    %2349 = vmatpush.msra.mxu0 %v2346
    %2350 = vmatpush.msra.mxu0 %v2345
    %2351 = vmatpush.msra.mxu0 %v2344
    %2352 = vmatpush.msra.mxu0 %v2343
    %2353 = vmatpush.msra.mxu0 %v2342
    %2354 = vmatpush.msra.mxu0 %v2341
    %2355 = vmatpush.msra.mxu0 %v2340
    %2356 = vmatpush.msra.mxu0 %v2339
    %2357 = vmatpush.msra.mxu0 %v2338
    %2358 = vmatpush.msra.mxu0 %v2337
    %2359 = vmatpush.msra.mxu0 %v2336
    %2360 = vmatpush.msra.mxu0 %v2335
    %2361 = vmatpush.msra.mxu0 %v2334
    %2362 = vmatpush.msra.mxu0 %v2333
    %2363 = vmatpush.msra.mxu0 %v2332
    %2364 = vmatmul.f32.gmra.mxu0 %v2331
    %v2365 = vpop.f32.mrf.mxu0
    %v2366 = vadd.f32 0.0, %v2365
    %2367 = vdwg.mxu0
    %v2368 = vmul.f32 %v2366, %v2275
    %2369 = vst [vmem:[#allocation26] sm:$0x1] %v2368
    %v2370 = vxor.u32 %v2368, 2147483648
    %v2371 = vmul.f32 %v2370, 1.442695
    %v2372 = vpow.pop %v2371
    %v2373 = vadd.f32 %v2372, 1.0
    %v2374 = vrcp.pop %v2373
    %v2375 = vmul.f32 %v2373, %v2374
    %v2376 = vsub.f32 1.0, %v2375
    %v2377 = vmul.f32 %v2374, %v2376
    %v2378 = vadd.f32 %v2374, %v2377
    %vm2379 = vweird.f32 %v2373
    %vm2380 = vweird.f32 %v2374
    %vm2381 = vmor %vm2379, %vm2380
    %v2382 = vsel %vm2381, %v2374, %v2378
    %v2383 = vand.u32 2147483647, %v2373
    %vm2384 = vcmp.eq.f32.partialorder %v2383, 8.507059e+37
    %v2385 = vand.u32 %v2373, 2147483648
    %v2386 = vor.u32 1.1754944e-38, %v2385
    %v2387 = vsel %vm2384, %v2386, %v2382
    %v2388 = vmul.f32 1.0, %v2387
    %v2389 = vld [vmem:[#allocation25] sm:$0xff]
    %v2390 = vld [vmem:[#allocation25 + $0x8] sm:$0xff]
    %v2391 = vld [vmem:[#allocation25 + $0x10] sm:$0xff]
    %v2392 = vld [vmem:[#allocation25 + $0x18] sm:$0xff]
    %v2393 = vld [vmem:[#allocation25 + $0x20] sm:$0xff]
    %v2394 = vld [vmem:[#allocation25 + $0x28] sm:$0xff]
    %v2395 = vld [vmem:[#allocation25 + $0x30] sm:$0xff]
    %v2396 = vld [vmem:[#allocation25 + $0x38] sm:$0xff]
    %v2397 = vld [vmem:[#allocation25 + $0x40] sm:$0xff]
    %v2398 = vld [vmem:[#allocation25 + $0x48] sm:$0xff]
    %v2399 = vld [vmem:[#allocation25 + $0x50] sm:$0xff]
    %v2400 = vld [vmem:[#allocation25 + $0x58] sm:$0xff]
    %v2401 = vld [vmem:[#allocation25 + $0x60] sm:$0xff]
    %v2402 = vld [vmem:[#allocation25 + $0x68] sm:$0xff]
    %v2403 = vld [vmem:[#allocation25 + $0x70] sm:$0xff]
    %v2404 = vld [vmem:[#allocation25 + $0x78] sm:$0xff]
    %2405 = vmatpush.msra.mxu0 %v2404
    %2406 = vmatpush.msra.mxu0 %v2403
    %2407 = vmatpush.msra.mxu0 %v2402
    %2408 = vmatpush.msra.mxu0 %v2401
    %2409 = vmatpush.msra.mxu0 %v2400
    %2410 = vmatpush.msra.mxu0 %v2399
    %2411 = vmatpush.msra.mxu0 %v2398
    %2412 = vmatpush.msra.mxu0 %v2397
    %2413 = vmatpush.msra.mxu0 %v2396
    %2414 = vmatpush.msra.mxu0 %v2395
    %2415 = vmatpush.msra.mxu0 %v2394
    %2416 = vmatpush.msra.mxu0 %v2393
    %2417 = vmatpush.msra.mxu0 %v2392
    %2418 = vmatpush.msra.mxu0 %v2391
    %2419 = vmatpush.msra.mxu0 %v2390
    %2420 = vmatpush.msra.mxu0 %v2389
    %2421 = vmatmul.f32.gmra.mxu0 %v2388
    %v2422 = vpop.f32.mrf.mxu0
    %v2423 = vadd.f32 0.0, %v2422
    %2424 = vdwg.mxu0
    %v2425 = vmul.f32 %v2423, %v2388
    %v2426 = vsel %vm2248, %v2425, 0.0
    %2427 = vadd.xlane.f32.xlu0 %v2426
    %v2428 = vpop.xlane.xlu0 %2427
    %v2429 = vmul.f32 %v2428, 0.0005
    %vm2430 = vcmask 0
    %2431 = vst.msk [vmem:[#allocation27] sm:$0x1] %vm2430, %v2429
    // Predicated region
    $region150: #{tpu_custom_call.1} parent=1 // pred_check
      _
    $region151: #{tpu_custom_call.1} parent=1 // pred_check_branch
      %2433 = sbr.rel (0) target = $region153
    $region152: #{tpu_custom_call.1} parent=1 // pred_region
      %2435 = vsyncadd [#allocation4], 0
      %s2437 = sshll.u32 [#allocation26], 4
      %s2438 = int_to_ptr.vmem [resolvable:$true] %s2437
      %s2439 = sshll.u32 %s22, 4
      %s2440 = int_to_ptr.hbm [resolvable:$true] %s2439
      %2442 = dma.vmem_to_hbm [thread:$0]  %s2438, 16, %s2440, [#allocation4]
    $region153: #{tpu_custom_call.1} parent=1 // pred_fallthru
      _
    // Predicated region
    $region154: #{tpu_custom_call.1} parent=1 // pred_check
      _
    $region155: #{tpu_custom_call.1} parent=1 // pred_check_branch
      %2444 = sbr.rel (0) target = $region157
    $region156: #{tpu_custom_call.1} parent=1 // pred_region
      %2446 = vsyncadd [#allocation28], 0
      %s2448 = sshll.u32 [#allocation27], 4
      %s2449 = int_to_ptr.vmem [resolvable:$true] %s2448
      %s2450 = sshll.u32 %s23, 4
      %s2451 = int_to_ptr.hbm [resolvable:$true] %s2450
      %2453 = dma.vmem_to_hbm [thread:$0]  %s2449, 16, %s2451, [#allocation28]
    $region157: #{tpu_custom_call.1} parent=1 // pred_fallthru
      _
    // Predicated region
    $region158: #{tpu_custom_call.1} parent=1 // pred_check
      _
    $region159: #{tpu_custom_call.1} parent=1 // pred_check_branch
      %2455 = sbr.rel (0) target = $region161
    $region160: #{tpu_custom_call.1} parent=1 // pred_region
      %2457 = dma.done [#allocation4], 16
    $region161: #{tpu_custom_call.1} parent=1 // pred_fallthru
      _
    // Predicated region
    $region162: #{tpu_custom_call.1} parent=1 // pred_check
      _
    $region163: #{tpu_custom_call.1} parent=1 // pred_check_branch
      %2459 = sbr.rel (0) target = $region165
    $region164: #{tpu_custom_call.1} parent=1 // pred_region
      %2461 = dma.done [#allocation28], 16
    $region165: #{tpu_custom_call.1} parent=1 // pred_fallthru
      _
    %2462 = vsyncpa [#allocation3], 1
    %2463 = vsyncpa [#allocation6], 1
    %2464 = vsyncpa [#allocation9], 1
    %2465 = vsyncpa [#allocation12], 1
    %2466 = vsyncpa [#allocation15], 1
    %2467 = vsyncpa [#allocation18], 1
    %2468 = vsyncpa [#allocation21], 1
    %2469 = vsyncpa [#allocation24], 1
    %2470 = vsyncpa [#allocation4], 1
    %2471 = vsyncpa [#allocation28], 1

</llo_original>
